<compile_context>
chip_gen: v7x
topology: tpu7x:2x2x1
jax: 0.10.0
libtpu: 0.0.40
codegen_flags: <defaults>
</compile_context>

<pallas_src>
import jax
import jax.numpy as jnp
import numpy as np
from jax import lax
from jax.experimental import pallas as pl
from jax.experimental.pallas import tpu as pltpu

_PI = float(np.pi)   # torch.acos(torch.zeros(1)).item() * 2


def _sigmoid(x):
    return 1.0 / (1.0 + jnp.exp(-x))


# ------------------------------ Pallas kernels -------------------------------

def _conv_kernel(pat_ref, w_ref, b_ref, o_ref):
    # o = relu(patches @ Wc + b): the 3x3/stride2/pad1 conv as an im2col matmul.
    y = jnp.dot(pat_ref[...], w_ref[...], preferred_element_type=jnp.float32)
    o_ref[...] = jnp.maximum(y + b_ref[...], 0.0)


def pallas_conv(pat, w, b):
    M = pat.shape[0]
    N = w.shape[1]
    return pl.pallas_call(
        _conv_kernel,
        out_shape=jax.ShapeDtypeStruct((M, N), jnp.float32),
    )(pat, w, b)


def _trunk_kernel(feat_ref, act_ref,
                  w1_ref, b1_ref, w2_ref, b2_ref, w3_ref, b3_ref, w4_ref, b4_ref,
                  w5_ref, b5_ref, w6_ref, b6_ref,
                  wih_ref, whh_ref, blstm_ref,
                  w7_ref, b7_ref, w8_ref, b8_ref,
                  w9_ref, b9_ref, w10_ref, b10_ref,
                  ecol_ref, pos_ref,
                  hseq_ref):
    """Fused: linear1..4 -> (h0, c0); linear5..6; LSTM(16->64); heads + yaw."""
    f32 = jnp.float32
    B = feat_ref.shape[0]
    TB = act_ref.shape[0]
    T = TB // B
    H = whh_ref.shape[0]

    def dense(x, w_ref, b_ref, relu):
        y = jnp.dot(x, w_ref[...], preferred_element_type=f32) + b_ref[...]
        return jnp.maximum(y, 0.0) if relu else y

    # --- image trunk: linear1..linear4 (linear4 has no ReLU) ---
    x = dense(feat_ref[...], w1_ref, b1_ref, True)
    x = dense(x, w2_ref, b2_ref, True)
    x = dense(x, w3_ref, b3_ref, True)
    x = dense(x, w4_ref, b4_ref, False)              # (B, 2H)
    h = x[:, 0:H]                                    # h_0 = chunk(x, 2, dim=1)[0]
    c = x[:, H:2 * H]                                # c_0 = chunk(x, 2, dim=1)[1]

    # --- action trunk: linear5, linear6, then the LSTM input projection ---
    y = dense(act_ref[...], w5_ref, b5_ref, True)
    y = dense(y, w6_ref, b6_ref, True)               # (T*B, 16), time-major rows
    ihg = jnp.dot(y, wih_ref[...], preferred_element_type=f32) + blstm_ref[...]

    # --- LSTM(16 -> 64), batch_first; unrolled over the static T timesteps ---
    for t in range(T):
        gates = ihg[t * B:(t + 1) * B, :] + jnp.dot(
            h, whh_ref[...], preferred_element_type=f32)
        i_g = _sigmoid(gates[:, 0:H])
        f_g = _sigmoid(gates[:, H:2 * H])
        g_g = jnp.tanh(gates[:, 2 * H:3 * H])
        o_g = _sigmoid(gates[:, 3 * H:4 * H])
        c = f_g * c + i_g * g_g
        h = o_g * jnp.tanh(c)
        hseq_ref[t * B:(t + 1) * B, :] = h           # full rnn_output sequence

    rnn_out = hseq_ref[...]                          # (T*B, H)

    # --- heads ---
    e = dense(rnn_out, w7_ref, b7_ref, True)
    e = dense(e, w8_ref, b8_ref, False)              # (T*B, 1)
    p = dense(rnn_out, w9_ref, b9_ref, True)
    p = dense(p, w10_ref, b10_ref, False)            # (T*B, 3)
    lane = lax.broadcasted_iota(jnp.int32, p.shape, 1)
    p = jnp.where(lane == p.shape[1] - 1, jnp.tanh(p) * _PI, p)   # yaw = tanh*pi

    ecol_ref[...] = e
    pos_ref[...] = p


def pallas_trunk(feat, act_tm, pk):
    TB = act_tm.shape[0]
    H = pk["w_hh"].shape[0]
    return pl.pallas_call(
        _trunk_kernel,
        out_shape=(jax.ShapeDtypeStruct((TB, 1), jnp.float32),
                   jax.ShapeDtypeStruct((TB, 3), jnp.float32)),
        scratch_shapes=[pltpu.VMEM((TB, H), jnp.float32)],
    )(feat, act_tm,
      pk["w1p"], pk["b1"], pk["w2"], pk["b2"], pk["w3"], pk["b3"],
      pk["w4"], pk["b4"],
      pk["w5"], pk["b5"], pk["w6"], pk["b6"],
      pk["w_ih"], pk["w_hh"], pk["b_lstm"],
      pk["w7"], pk["b7"], pk["w8"], pk["b8"],
      pk["w9"], pk["b9"], pk["w10"], pk["b10"])


# ----------------------------- Forward wrapper -------------------------------

def _im2col_s2_k3_p1(xf):
    """xf: (N, H, W, C) NHWC -> (N*Ho*Wo, 9*C) patches for conv k3/s2/p1."""
    N, H, W, C = xf.shape
    Ho, Wo = H // 2, W // 2
    xp = jnp.pad(xf, ((0, 0), (1, 1), (1, 1), (0, 0)))
    patches = []
    for dh in range(3):
        for dw in range(3):
            patches.append(
                lax.slice(xp, (0, dh, dw, 0),
                          (N, dh + 2 * Ho, dw + 2 * Wo, C), (1, 2, 2, 1)))
    pat = jnp.stack(patches, axis=-2)                # (N, Ho, Wo, 9, C)
    return pat.reshape(N * Ho * Wo, 9 * C), Ho, Wo


def badgr_forward(pk, image, action):
    """image: (B, Cin, H, W) NCHW; action: (B, T, 2) -> (e_col, position)."""
    B = image.shape[0]
    T = action.shape[1]

    # --- encoder ---
    # TODO(synk): `set_encoder(encoder_name, is_pretrained)` is an external,
    # unspecified pretrained backbone; replaced by a deterministic
    # Conv2d(3->8, k3, s2, p1) + ReLU whose flattened output feeds linear1.
    xf = jnp.transpose(image, (0, 2, 3, 1))          # NCHW -> NHWC (glue)
    pat, _, _ = _im2col_s2_k3_p1(xf)
    conv = pallas_conv(pat, pk["conv_w2d"], pk["conv_b"])    # (B*Ho*Wo, Cenc)
    # NHWC row-major flatten; linear1's rows were permuted offline so this
    # matches torch.flatten(x, 1) on the NCHW encoder output (no transpose op).
    feat = conv.reshape(B, -1)

    # Action rows time-major so the fused kernel slices one (B, 4H) gate block
    # per timestep at a static offset (no (B,T,G)->(T,B,G) transpose of ihg).
    act_tm = jnp.transpose(action, (1, 0, 2)).reshape(T * B, action.shape[2])

    ecol_flat, pos_flat = pallas_trunk(feat, act_tm, pk)
    e_col = ecol_flat.reshape(T, B, 1).transpose(1, 0, 2)    # (B, T, 1)
    position = pos_flat.reshape(T, B, 3).transpose(1, 0, 2)  # (B, T, 3)
    return e_col, position


# -------------------------------- Parameters ---------------------------------

def init_params(key, *, c_in=3, c_enc=8, ho=8, wo=8, hidden=64):
    """PyTorch-convention params (linear1 rows in NCHW-flatten order)."""
    enc_flat = c_enc * ho * wo
    keys = jax.random.split(key, 26)
    s = 0.05
    it = iter(range(26))

    def w(shape):
        return s * jax.random.normal(keys[next(it)], shape, jnp.float32)

    p = {"conv_w": w((3, 3, c_in, c_enc)), "conv_b": w((c_enc,))}
    dims = [(enc_flat, 256), (256, 256), (256, 128), (128, 128),
            (2, 16), (16, 16)]
    for li, (din, dout) in enumerate(dims, start=1):
        p[f"w{li}"] = w((din, dout))
        p[f"b{li}"] = w((dout,))
    G = 4 * hidden
    p["w_ih"] = w((16, G))        # = W_ih^T, gate order (i, f, g, o)
    p["w_hh"] = w((hidden, G))    # = W_hh^T
    p["b_ih"] = w((G,))
    p["b_hh"] = w((G,))
    for li, (din, dout) in zip((7, 8, 9, 10),
                               [(hidden, 32), (32, 1), (hidden, 32), (32, 3)]):
        p[f"w{li}"] = w((din, dout))
        p[f"b{li}"] = w((dout,))
    return p


def prepare_params(raw, *, c_enc, ho, wo):
    """One-time (outside jit) repack: fold the NCHW flatten into linear1's rows,
    fuse the two LSTM biases, reshape biases to (1, N) row vectors."""
    idx_nchw = np.arange(c_enc * ho * wo).reshape(c_enc, ho, wo)
    perm = jnp.asarray(idx_nchw.transpose(1, 2, 0).reshape(-1))   # NHWC pos -> NCHW row
    pk = {
        "conv_w2d": raw["conv_w"].reshape(-1, raw["conv_w"].shape[-1]),
        "conv_b": raw["conv_b"].reshape(1, -1),
        "w1p": raw["w1"][perm, :],
        "w_ih": raw["w_ih"],
        "w_hh": raw["w_hh"],
        "b_lstm": (raw["b_ih"] + raw["b_hh"]).reshape(1, -1),
    }
    for li in range(1, 11):
        if li != 1:
            pk[f"w{li}"] = raw[f"w{li}"]
        pk[f"b{li}"] = raw[f"b{li}"].reshape(1, -1)
    return pk


# ----------------------------- Pure-JAX reference ----------------------------

def reference_forward(raw, image, action):
    relu = lambda v: jnp.maximum(v, 0.0)
    B = image.shape[0]
    H = raw["w_hh"].shape[0]

    xf = jnp.transpose(image, (0, 2, 3, 1))
    conv = lax.conv_general_dilated(
        xf, raw["conv_w"], window_strides=(2, 2), padding=((1, 1), (1, 1)),
        dimension_numbers=("NHWC", "HWIO", "NHWC"))
    conv = relu(conv + raw["conv_b"])
    feat = jnp.transpose(conv, (0, 3, 1, 2)).reshape(B, -1)   # torch.flatten(x, 1)

    x = relu(feat @ raw["w1"] + raw["b1"])
    x = relu(x @ raw["w2"] + raw["b2"])
    x = relu(x @ raw["w3"] + raw["b3"])
    x = x @ raw["w4"] + raw["b4"]
    h0, c0 = x[:, :H], x[:, H:2 * H]

    y = relu(action @ raw["w5"] + raw["b5"])
    y = relu(y @ raw["w6"] + raw["b6"])                        # (B, T, 16)
    b_lstm = raw["b_ih"] + raw["b_hh"]

    def step(carry, y_t):
        h, c = carry
        gates = y_t @ raw["w_ih"] + b_lstm + h @ raw["w_hh"]
        i = _sigmoid(gates[:, 0:H])
        f = _sigmoid(gates[:, H:2 * H])
        g = jnp.tanh(gates[:, 2 * H:3 * H])
        o = _sigmoid(gates[:, 3 * H:4 * H])
        c = f * c + i * g
        h = o * jnp.tanh(c)
        return (h, c), h

    _, hs = lax.scan(step, (h0, c0), jnp.transpose(y, (1, 0, 2)))
    rnn_out = jnp.transpose(hs, (1, 0, 2))                     # (B, T, H)

    e_col = relu(rnn_out @ raw["w7"] + raw["b7"]) @ raw["w8"] + raw["b8"]
    pos = relu(rnn_out @ raw["w9"] + raw["b9"]) @ raw["w10"] + raw["b10"]
    pos = pos.at[..., -1].set(jnp.tanh(pos[..., -1]) * _PI)
    return e_col, pos


# ----------------------------------- Main ------------------------------------

if __name__ == "__main__":
    B, C_IN, H_IMG, W_IMG = 2, 3, 16, 16
    T, C_ENC = 8, 8
    HO, WO = H_IMG // 2, W_IMG // 2

    key = jax.random.PRNGKey(0)
    k_img, k_act, k_par = jax.random.split(key, 3)
    image = jax.random.normal(k_img, (B, C_IN, H_IMG, W_IMG), jnp.float32)
    action = jax.random.normal(k_act, (B, T, 2), jnp.float32)

    raw = init_params(k_par, c_in=C_IN, c_enc=C_ENC, ho=HO, wo=WO, hidden=64)
    pk = prepare_params(raw, c_enc=C_ENC, ho=HO, wo=WO)

    fwd = jax.jit(badgr_forward)
    e_col, position = jax.block_until_ready(fwd(pk, image, action))

    e_ref, p_ref = jax.block_until_ready(reference_forward(raw, image, action))

    assert e_col.shape == (B, T, 1), e_col.shape
    assert position.shape == (B, T, 3), position.shape
    np.testing.assert_allclose(np.asarray(e_col), np.asarray(e_ref),
                               rtol=2e-3, atol=2e-3)
    np.testing.assert_allclose(np.asarray(position), np.asarray(p_ref),
                               rtol=2e-3, atol=2e-3)
    print("KERNEL_OK")
</pallas_src>

<mosaic_0001>
module attributes {stable_mosaic.version = 11 : i64} {
  func.func @_conv_kernel(%arg0: memref<128x27xf32, #tpu.memory_space<vmem>>, %arg1: memref<27x8xf32, #tpu.memory_space<vmem>>, %arg2: memref<1x8xf32, #tpu.memory_space<vmem>>, %arg3: memref<128x8xf32, #tpu.memory_space<vmem>>) attributes {dimension_semantics = [], scalar_prefetch = 0 : i64, scratch_operands = 0 : i64, tpu.core_type = #tpu.core_type<tc>} {
    %c0 = arith.constant 0 : index
    %c0_0 = arith.constant 0 : index
    %0 = vector.load %arg0[%c0, %c0_0] : memref<128x27xf32, #tpu.memory_space<vmem>>, vector<128x27xf32>
    %c0_1 = arith.constant 0 : index
    %c0_2 = arith.constant 0 : index
    %1 = vector.load %arg1[%c0_1, %c0_2] : memref<27x8xf32, #tpu.memory_space<vmem>>, vector<27x8xf32>
    %cst = arith.constant dense<0.000000e+00> : vector<128x8xf32>
    %2 = tpu.matmul %0, %1, %cst {dimension_numbers = #tpu.dot_dimension_numbers<[1], [0], [0], [1], [0, 0, 1, 1], [], []>} : vector<128x27xf32>, vector<27x8xf32>, vector<128x8xf32> -> vector<128x8xf32>
    %c0_3 = arith.constant 0 : index
    %c0_4 = arith.constant 0 : index
    %3 = vector.load %arg2[%c0_3, %c0_4] : memref<1x8xf32, #tpu.memory_space<vmem>>, vector<1x8xf32>
    %4 = vector.broadcast %3 : vector<1x8xf32> to vector<128x8xf32>
    %5 = arith.addf %2, %4 : vector<128x8xf32>
    %cst_5 = arith.constant 0.000000e+00 : f32
    %6 = vector.broadcast %cst_5 : f32 to vector<128x8xf32>
    %7 = arith.maximumf %5, %6 : vector<128x8xf32>
    %c0_6 = arith.constant 0 : index
    %c0_7 = arith.constant 0 : index
    %8 = vector.load %arg3[%c0_6, %c0_7] : memref<128x8xf32, #tpu.memory_space<vmem>>, vector<128x8xf32>
    tpu.vector_store %arg3[%c0_6, %c0_7], %7 {strides = array<i32>} : memref<128x8xf32, #tpu.memory_space<vmem>>, vector<128x8xf32>,
    return
  }
}

module attributes {stable_mosaic.version = 11 : i64} {
  func.func @_trunk_kernel(%arg0: memref<2x512xf32, #tpu.memory_space<vmem>>, %arg1: memref<16x2xf32, #tpu.memory_space<vmem>>, %arg2: memref<512x256xf32, #tpu.memory_space<vmem>>, %arg3: memref<1x256xf32, #tpu.memory_space<vmem>>, %arg4: memref<256x256xf32, #tpu.memory_space<vmem>>, %arg5: memref<1x256xf32, #tpu.memory_space<vmem>>, %arg6: memref<256x128xf32, #tpu.memory_space<vmem>>, %arg7: memref<1x128xf32, #tpu.memory_space<vmem>>, %arg8: memref<128x128xf32, #tpu.memory_space<vmem>>, %arg9: memref<1x128xf32, #tpu.memory_space<vmem>>, %arg10: memref<2x16xf32, #tpu.memory_space<vmem>>, %arg11: memref<1x16xf32, #tpu.memory_space<vmem>>, %arg12: memref<16x16xf32, #tpu.memory_space<vmem>>, %arg13: memref<1x16xf32, #tpu.memory_space<vmem>>, %arg14: memref<16x256xf32, #tpu.memory_space<vmem>>, %arg15: memref<64x256xf32, #tpu.memory_space<vmem>>, %arg16: memref<1x256xf32, #tpu.memory_space<vmem>>, %arg17: memref<64x32xf32, #tpu.memory_space<vmem>>, %arg18: memref<1x32xf32, #tpu.memory_space<vmem>>, %arg19: memref<32x1xf32, #tpu.memory_space<vmem>>, %arg20: memref<1x1xf32, #tpu.memory_space<vmem>>, %arg21: memref<64x32xf32, #tpu.memory_space<vmem>>, %arg22: memref<1x32xf32, #tpu.memory_space<vmem>>, %arg23: memref<32x3xf32, #tpu.memory_space<vmem>>, %arg24: memref<1x3xf32, #tpu.memory_space<vmem>>, %arg25: memref<16x1xf32, #tpu.memory_space<vmem>>, %arg26: memref<16x3xf32, #tpu.memory_space<vmem>>, %arg27: memref<16x64xf32, #tpu.memory_space<vmem>>) attributes {dimension_semantics = [], scalar_prefetch = 0 : i64, scratch_operands = 1 : i64, tpu.core_type = #tpu.core_type<tc>} {
    %c0 = arith.constant 0 : index
    %c0_0 = arith.constant 0 : index
    %0 = vector.load %arg0[%c0, %c0_0] : memref<2x512xf32, #tpu.memory_space<vmem>>, vector<2x512xf32>
    %c0_1 = arith.constant 0 : index
    %c0_2 = arith.constant 0 : index
    %1 = vector.load %arg2[%c0_1, %c0_2] : memref<512x256xf32, #tpu.memory_space<vmem>>, vector<512x256xf32>
    %cst = arith.constant dense<0.000000e+00> : vector<2x256xf32>
    %2 = tpu.matmul %0, %1, %cst {dimension_numbers = #tpu.dot_dimension_numbers<[1], [0], [0], [1], [0, 0, 1, 1], [], []>} : vector<2x512xf32>, vector<512x256xf32>, vector<2x256xf32> -> vector<2x256xf32>
    %c0_3 = arith.constant 0 : index
    %c0_4 = arith.constant 0 : index
    %3 = vector.load %arg3[%c0_3, %c0_4] : memref<1x256xf32, #tpu.memory_space<vmem>>, vector<1x256xf32>
    %4 = vector.broadcast %3 : vector<1x256xf32> to vector<2x256xf32>
    %5 = arith.addf %2, %4 : vector<2x256xf32>
    %cst_5 = arith.constant 0.000000e+00 : f32
    %6 = vector.broadcast %cst_5 : f32 to vector<2x256xf32>
    %7 = arith.maximumf %5, %6 : vector<2x256xf32>
    %c0_6 = arith.constant 0 : index
    %c0_7 = arith.constant 0 : index
    %8 = vector.load %arg4[%c0_6, %c0_7] : memref<256x256xf32, #tpu.memory_space<vmem>>, vector<256x256xf32>
    %cst_8 = arith.constant dense<0.000000e+00> : vector<2x256xf32>
    %9 = tpu.matmul %7, %8, %cst_8 {dimension_numbers = #tpu.dot_dimension_numbers<[1], [0], [0], [1], [0, 0, 1, 1], [], []>} : vector<2x256xf32>, vector<256x256xf32>, vector<2x256xf32> -> vector<2x256xf32>
    %c0_9 = arith.constant 0 : index
    %c0_10 = arith.constant 0 : index
    %10 = vector.load %arg5[%c0_9, %c0_10] : memref<1x256xf32, #tpu.memory_space<vmem>>, vector<1x256xf32>
    %11 = vector.broadcast %10 : vector<1x256xf32> to vector<2x256xf32>
    %12 = arith.addf %9, %11 : vector<2x256xf32>
    %cst_11 = arith.constant 0.000000e+00 : f32
    %13 = vector.broadcast %cst_11 : f32 to vector<2x256xf32>
    %14 = arith.maximumf %12, %13 : vector<2x256xf32>
    %c0_12 = arith.constant 0 : index
    %c0_13 = arith.constant 0 : index
    %15 = vector.load %arg6[%c0_12, %c0_13] : memref<256x128xf32, #tpu.memory_space<vmem>>, vector<256x128xf32>
    %cst_14 = arith.constant dense<0.000000e+00> : vector<2x128xf32>
    %16 = tpu.matmul %14, %15, %cst_14 {dimension_numbers = #tpu.dot_dimension_numbers<[1], [0], [0], [1], [0, 0, 1, 1], [], []>} : vector<2x256xf32>, vector<256x128xf32>, vector<2x128xf32> -> vector<2x128xf32>
    %c0_15 = arith.constant 0 : index
    %c0_16 = arith.constant 0 : index
    %17 = vector.load %arg7[%c0_15, %c0_16] : memref<1x128xf32, #tpu.memory_space<vmem>>, vector<1x128xf32>
    %18 = vector.broadcast %17 : vector<1x128xf32> to vector<2x128xf32>
    %19 = arith.addf %16, %18 : vector<2x128xf32>
    %cst_17 = arith.constant 0.000000e+00 : f32
    %20 = vector.broadcast %cst_17 : f32 to vector<2x128xf32>
    %21 = arith.maximumf %19, %20 : vector<2x128xf32>
    %c0_18 = arith.constant 0 : index
    %c0_19 = arith.constant 0 : index
    %22 = vector.load %arg8[%c0_18, %c0_19] : memref<128x128xf32, #tpu.memory_space<vmem>>, vector<128x128xf32>
    %cst_20 = arith.constant dense<0.000000e+00> : vector<2x128xf32>
    %23 = tpu.matmul %21, %22, %cst_20 {dimension_numbers = #tpu.dot_dimension_numbers<[1], [0], [0], [1], [0, 0, 1, 1], [], []>} : vector<2x128xf32>, vector<128x128xf32>, vector<2x128xf32> -> vector<2x128xf32>
    %c0_21 = arith.constant 0 : index
    %c0_22 = arith.constant 0 : index
    %24 = vector.load %arg9[%c0_21, %c0_22] : memref<1x128xf32, #tpu.memory_space<vmem>>, vector<1x128xf32>
    %25 = vector.broadcast %24 : vector<1x128xf32> to vector<2x128xf32>
    %26 = arith.addf %23, %25 : vector<2x128xf32>
    %27 = vector.extract_strided_slice %26 {offsets = [0, 0], sizes = [2, 64], strides = [1, 1]} : vector<2x128xf32> to vector<2x64xf32>
    %28 = vector.extract_strided_slice %26 {offsets = [0, 64], sizes = [2, 64], strides = [1, 1]} : vector<2x128xf32> to vector<2x64xf32>
    %c0_23 = arith.constant 0 : index
    %c0_24 = arith.constant 0 : index
    %29 = vector.load %arg1[%c0_23, %c0_24] : memref<16x2xf32, #tpu.memory_space<vmem>>, vector<16x2xf32>
    %c0_25 = arith.constant 0 : index
    %c0_26 = arith.constant 0 : index
    %30 = vector.load %arg10[%c0_25, %c0_26] : memref<2x16xf32, #tpu.memory_space<vmem>>, vector<2x16xf32>
    %cst_27 = arith.constant dense<0.000000e+00> : vector<16x16xf32>
    %31 = tpu.matmul %29, %30, %cst_27 {dimension_numbers = #tpu.dot_dimension_numbers<[1], [0], [0], [1], [0, 0, 1, 1], [], []>} : vector<16x2xf32>, vector<2x16xf32>, vector<16x16xf32> -> vector<16x16xf32>
    %c0_28 = arith.constant 0 : index
    %c0_29 = arith.constant 0 : index
    %32 = vector.load %arg11[%c0_28, %c0_29] : memref<1x16xf32, #tpu.memory_space<vmem>>, vector<1x16xf32>
    %33 = vector.broadcast %32 : vector<1x16xf32> to vector<16x16xf32>
    %34 = arith.addf %31, %33 : vector<16x16xf32>
    %cst_30 = arith.constant 0.000000e+00 : f32
    %35 = vector.broadcast %cst_30 : f32 to vector<16x16xf32>
    %36 = arith.maximumf %34, %35 : vector<16x16xf32>
    %c0_31 = arith.constant 0 : index
    %c0_32 = arith.constant 0 : index
    %37 = vector.load %arg12[%c0_31, %c0_32] : memref<16x16xf32, #tpu.memory_space<vmem>>, vector<16x16xf32>
    %cst_33 = arith.constant dense<0.000000e+00> : vector<16x16xf32>
    %38 = tpu.matmul %36, %37, %cst_33 {dimension_numbers = #tpu.dot_dimension_numbers<[1], [0], [0], [1], [0, 0, 1, 1], [], []>} : vector<16x16xf32>, vector<16x16xf32>, vector<16x16xf32> -> vector<16x16xf32>
    %c0_34 = arith.constant 0 : index
    %c0_35 = arith.constant 0 : index
    %39 = vector.load %arg13[%c0_34, %c0_35] : memref<1x16xf32, #tpu.memory_space<vmem>>, vector<1x16xf32>
    %40 = vector.broadcast %39 : vector<1x16xf32> to vector<16x16xf32>
    %41 = arith.addf %38, %40 : vector<16x16xf32>
    %cst_36 = arith.constant 0.000000e+00 : f32
    %42 = vector.broadcast %cst_36 : f32 to vector<16x16xf32>
    %43 = arith.maximumf %41, %42 : vector<16x16xf32>
    %c0_37 = arith.constant 0 : index
    %c0_38 = arith.constant 0 : index
    %44 = vector.load %arg14[%c0_37, %c0_38] : memref<16x256xf32, #tpu.memory_space<vmem>>, vector<16x256xf32>
    %cst_39 = arith.constant dense<0.000000e+00> : vector<16x256xf32>
    %45 = tpu.matmul %43, %44, %cst_39 {dimension_numbers = #tpu.dot_dimension_numbers<[1], [0], [0], [1], [0, 0, 1, 1], [], []>} : vector<16x16xf32>, vector<16x256xf32>, vector<16x256xf32> -> vector<16x256xf32>
    %c0_40 = arith.constant 0 : index
    %c0_41 = arith.constant 0 : index
    %46 = vector.load %arg16[%c0_40, %c0_41] : memref<1x256xf32, #tpu.memory_space<vmem>>, vector<1x256xf32>
    %47 = vector.broadcast %46 : vector<1x256xf32> to vector<16x256xf32>
    %48 = arith.addf %45, %47 : vector<16x256xf32>
    %49 = vector.extract_strided_slice %48 {offsets = [0, 0], sizes = [2, 256], strides = [1, 1]} : vector<16x256xf32> to vector<2x256xf32>
    %c0_42 = arith.constant 0 : index
    %c0_43 = arith.constant 0 : index
    %50 = vector.load %arg15[%c0_42, %c0_43] : memref<64x256xf32, #tpu.memory_space<vmem>>, vector<64x256xf32>
    %cst_44 = arith.constant dense<0.000000e+00> : vector<2x256xf32>
    %51 = tpu.matmul %27, %50, %cst_44 {dimension_numbers = #tpu.dot_dimension_numbers<[1], [0], [0], [1], [0, 0, 1, 1], [], []>} : vector<2x64xf32>, vector<64x256xf32>, vector<2x256xf32> -> vector<2x256xf32>
    %52 = arith.addf %49, %51 : vector<2x256xf32>
    %53 = vector.extract_strided_slice %52 {offsets = [0, 0], sizes = [2, 64], strides = [1, 1]} : vector<2x256xf32> to vector<2x64xf32>
    %cst_45 = arith.constant 0.000000e+00 : f32
    %54 = vector.broadcast %cst_45 : f32 to vector<2x64xf32>
    %55 = arith.subf %54, %53 : vector<2x64xf32>
    %56 = math.exp %55 : vector<2x64xf32>
    %cst_46 = arith.constant 1.000000e+00 : f32
    %57 = vector.broadcast %cst_46 : f32 to vector<2x64xf32>
    %58 = arith.addf %57, %56 : vector<2x64xf32>
    %cst_47 = arith.constant 1.000000e+00 : f32
    %59 = vector.broadcast %cst_47 : f32 to vector<2x64xf32>
    %60 = arith.divf %59, %58 : vector<2x64xf32>
    %61 = vector.extract_strided_slice %52 {offsets = [0, 64], sizes = [2, 64], strides = [1, 1]} : vector<2x256xf32> to vector<2x64xf32>
    %cst_48 = arith.constant 0.000000e+00 : f32
    %62 = vector.broadcast %cst_48 : f32 to vector<2x64xf32>
    %63 = arith.subf %62, %61 : vector<2x64xf32>
    %64 = math.exp %63 : vector<2x64xf32>
    %cst_49 = arith.constant 1.000000e+00 : f32
    %65 = vector.broadcast %cst_49 : f32 to vector<2x64xf32>
    %66 = arith.addf %65, %64 : vector<2x64xf32>
    %cst_50 = arith.constant 1.000000e+00 : f32
    %67 = vector.broadcast %cst_50 : f32 to vector<2x64xf32>
    %68 = arith.divf %67, %66 : vector<2x64xf32>
    %69 = vector.extract_strided_slice %52 {offsets = [0, 128], sizes = [2, 64], strides = [1, 1]} : vector<2x256xf32> to vector<2x64xf32>
    %70 = math.tanh %69 : vector<2x64xf32>
    %71 = vector.extract_strided_slice %52 {offsets = [0, 192], sizes = [2, 64], strides = [1, 1]} : vector<2x256xf32> to vector<2x64xf32>
    %cst_51 = arith.constant 0.000000e+00 : f32
    %72 = vector.broadcast %cst_51 : f32 to vector<2x64xf32>
    %73 = arith.subf %72, %71 : vector<2x64xf32>
    %74 = math.exp %73 : vector<2x64xf32>
    %cst_52 = arith.constant 1.000000e+00 : f32
    %75 = vector.broadcast %cst_52 : f32 to vector<2x64xf32>
    %76 = arith.addf %75, %74 : vector<2x64xf32>
    %cst_53 = arith.constant 1.000000e+00 : f32
    %77 = vector.broadcast %cst_53 : f32 to vector<2x64xf32>
    %78 = arith.divf %77, %76 : vector<2x64xf32>
    %79 = arith.mulf %68, %28 : vector<2x64xf32>
    %80 = arith.mulf %60, %70 : vector<2x64xf32>
    %81 = arith.addf %79, %80 : vector<2x64xf32>
    %82 = math.tanh %81 : vector<2x64xf32>
    %83 = arith.mulf %78, %82 : vector<2x64xf32>
    %c0_54 = arith.constant 0 : index
    %c0_55 = arith.constant 0 : index
    %84 = vector.load %arg27[%c0_54, %c0_55] : memref<16x64xf32, #tpu.memory_space<vmem>>, vector<2x64xf32>
    tpu.vector_store %arg27[%c0_54, %c0_55], %83 {strides = array<i32>} : memref<16x64xf32, #tpu.memory_space<vmem>>, vector<2x64xf32>,
    %85 = vector.extract_strided_slice %48 {offsets = [2, 0], sizes = [2, 256], strides = [1, 1]} : vector<16x256xf32> to vector<2x256xf32>
    %c0_56 = arith.constant 0 : index
    %c0_57 = arith.constant 0 : index
    %86 = vector.load %arg15[%c0_56, %c0_57] : memref<64x256xf32, #tpu.memory_space<vmem>>, vector<64x256xf32>
    %cst_58 = arith.constant dense<0.000000e+00> : vector<2x256xf32>
    %87 = tpu.matmul %83, %86, %cst_58 {dimension_numbers = #tpu.dot_dimension_numbers<[1], [0], [0], [1], [0, 0, 1, 1], [], []>} : vector<2x64xf32>, vector<64x256xf32>, vector<2x256xf32> -> vector<2x256xf32>
    %88 = arith.addf %85, %87 : vector<2x256xf32>
    %89 = vector.extract_strided_slice %88 {offsets = [0, 0], sizes = [2, 64], strides = [1, 1]} : vector<2x256xf32> to vector<2x64xf32>
    %cst_59 = arith.constant 0.000000e+00 : f32
    %90 = vector.broadcast %cst_59 : f32 to vector<2x64xf32>
    %91 = arith.subf %90, %89 : vector<2x64xf32>
    %92 = math.exp %91 : vector<2x64xf32>
    %cst_60 = arith.constant 1.000000e+00 : f32
    %93 = vector.broadcast %cst_60 : f32 to vector<2x64xf32>
    %94 = arith.addf %93, %92 : vector<2x64xf32>
    %cst_61 = arith.constant 1.000000e+00 : f32
    %95 = vector.broadcast %cst_61 : f32 to vector<2x64xf32>
    %96 = arith.divf %95, %94 : vector<2x64xf32>
    %97 = vector.extract_strided_slice %88 {offsets = [0, 64], sizes = [2, 64], strides = [1, 1]} : vector<2x256xf32> to vector<2x64xf32>
    %cst_62 = arith.constant 0.000000e+00 : f32
    %98 = vector.broadcast %cst_62 : f32 to vector<2x64xf32>
    %99 = arith.subf %98, %97 : vector<2x64xf32>
    %100 = math.exp %99 : vector<2x64xf32>
    %cst_63 = arith.constant 1.000000e+00 : f32
    %101 = vector.broadcast %cst_63 : f32 to vector<2x64xf32>
    %102 = arith.addf %101, %100 : vector<2x64xf32>
    %cst_64 = arith.constant 1.000000e+00 : f32
    %103 = vector.broadcast %cst_64 : f32 to vector<2x64xf32>
    %104 = arith.divf %103, %102 : vector<2x64xf32>
    %105 = vector.extract_strided_slice %88 {offsets = [0, 128], sizes = [2, 64], strides = [1, 1]} : vector<2x256xf32> to vector<2x64xf32>
    %106 = math.tanh %105 : vector<2x64xf32>
    %107 = vector.extract_strided_slice %88 {offsets = [0, 192], sizes = [2, 64], strides = [1, 1]} : vector<2x256xf32> to vector<2x64xf32>
    %cst_65 = arith.constant 0.000000e+00 : f32
    %108 = vector.broadcast %cst_65 : f32 to vector<2x64xf32>
    %109 = arith.subf %108, %107 : vector<2x64xf32>
    %110 = math.exp %109 : vector<2x64xf32>
    %cst_66 = arith.constant 1.000000e+00 : f32
    %111 = vector.broadcast %cst_66 : f32 to vector<2x64xf32>
    %112 = arith.addf %111, %110 : vector<2x64xf32>
    %cst_67 = arith.constant 1.000000e+00 : f32
    %113 = vector.broadcast %cst_67 : f32 to vector<2x64xf32>
    %114 = arith.divf %113, %112 : vector<2x64xf32>
    %115 = arith.mulf %104, %81 : vector<2x64xf32>
    %116 = arith.mulf %96, %106 : vector<2x64xf32>
    %117 = arith.addf %115, %116 : vector<2x64xf32>
    %118 = math.tanh %117 : vector<2x64xf32>
    %119 = arith.mulf %114, %118 : vector<2x64xf32>
    %c2 = arith.constant 2 : index
    %c0_68 = arith.constant 0 : index
    %120 = vector.load %arg27[%c2, %c0_68] : memref<16x64xf32, #tpu.memory_space<vmem>>, vector<2x64xf32>
    tpu.vector_store %arg27[%c2, %c0_68], %119 {strides = array<i32>} : memref<16x64xf32, #tpu.memory_space<vmem>>, vector<2x64xf32>,
    %121 = vector.extract_strided_slice %48 {offsets = [4, 0], sizes = [2, 256], strides = [1, 1]} : vector<16x256xf32> to vector<2x256xf32>
    %c0_69 = arith.constant 0 : index
    %c0_70 = arith.constant 0 : index
    %122 = vector.load %arg15[%c0_69, %c0_70] : memref<64x256xf32, #tpu.memory_space<vmem>>, vector<64x256xf32>
    %cst_71 = arith.constant dense<0.000000e+00> : vector<2x256xf32>
    %123 = tpu.matmul %119, %122, %cst_71 {dimension_numbers = #tpu.dot_dimension_numbers<[1], [0], [0], [1], [0, 0, 1, 1], [], []>} : vector<2x64xf32>, vector<64x256xf32>, vector<2x256xf32> -> vector<2x256xf32>
    %124 = arith.addf %121, %123 : vector<2x256xf32>
    %125 = vector.extract_strided_slice %124 {offsets = [0, 0], sizes = [2, 64], strides = [1, 1]} : vector<2x256xf32> to vector<2x64xf32>
    %cst_72 = arith.constant 0.000000e+00 : f32
    %126 = vector.broadcast %cst_72 : f32 to vector<2x64xf32>
    %127 = arith.subf %126, %125 : vector<2x64xf32>
    %128 = math.exp %127 : vector<2x64xf32>
    %cst_73 = arith.constant 1.000000e+00 : f32
    %129 = vector.broadcast %cst_73 : f32 to vector<2x64xf32>
    %130 = arith.addf %129, %128 : vector<2x64xf32>
    %cst_74 = arith.constant 1.000000e+00 : f32
    %131 = vector.broadcast %cst_74 : f32 to vector<2x64xf32>
    %132 = arith.divf %131, %130 : vector<2x64xf32>
    %133 = vector.extract_strided_slice %124 {offsets = [0, 64], sizes = [2, 64], strides = [1, 1]} : vector<2x256xf32> to vector<2x64xf32>
    %cst_75 = arith.constant 0.000000e+00 : f32
    %134 = vector.broadcast %cst_75 : f32 to vector<2x64xf32>
    %135 = arith.subf %134, %133 : vector<2x64xf32>
    %136 = math.exp %135 : vector<2x64xf32>
    %cst_76 = arith.constant 1.000000e+00 : f32
    %137 = vector.broadcast %cst_76 : f32 to vector<2x64xf32>
    %138 = arith.addf %137, %136 : vector<2x64xf32>
    %cst_77 = arith.constant 1.000000e+00 : f32
    %139 = vector.broadcast %cst_77 : f32 to vector<2x64xf32>
    %140 = arith.divf %139, %138 : vector<2x64xf32>
    %141 = vector.extract_strided_slice %124 {offsets = [0, 128], sizes = [2, 64], strides = [1, 1]} : vector<2x256xf32> to vector<2x64xf32>
    %142 = math.tanh %141 : vector<2x64xf32>
    %143 = vector.extract_strided_slice %124 {offsets = [0, 192], sizes = [2, 64], strides = [1, 1]} : vector<2x256xf32> to vector<2x64xf32>
    %cst_78 = arith.constant 0.000000e+00 : f32
    %144 = vector.broadcast %cst_78 : f32 to vector<2x64xf32>
    %145 = arith.subf %144, %143 : vector<2x64xf32>
    %146 = math.exp %145 : vector<2x64xf32>
    %cst_79 = arith.constant 1.000000e+00 : f32
    %147 = vector.broadcast %cst_79 : f32 to vector<2x64xf32>
    %148 = arith.addf %147, %146 : vector<2x64xf32>
    %cst_80 = arith.constant 1.000000e+00 : f32
    %149 = vector.broadcast %cst_80 : f32 to vector<2x64xf32>
    %150 = arith.divf %149, %148 : vector<2x64xf32>
    %151 = arith.mulf %140, %117 : vector<2x64xf32>
    %152 = arith.mulf %132, %142 : vector<2x64xf32>
    %153 = arith.addf %151, %152 : vector<2x64xf32>
    %154 = math.tanh %153 : vector<2x64xf32>
    %155 = arith.mulf %150, %154 : vector<2x64xf32>
    %c4 = arith.constant 4 : index
    %c0_81 = arith.constant 0 : index
    %156 = vector.load %arg27[%c4, %c0_81] : memref<16x64xf32, #tpu.memory_space<vmem>>, vector<2x64xf32>
    tpu.vector_store %arg27[%c4, %c0_81], %155 {strides = array<i32>} : memref<16x64xf32, #tpu.memory_space<vmem>>, vector<2x64xf32>,
    %157 = vector.extract_strided_slice %48 {offsets = [6, 0], sizes = [2, 256], strides = [1, 1]} : vector<16x256xf32> to vector<2x256xf32>
    %c0_82 = arith.constant 0 : index
    %c0_83 = arith.constant 0 : index
    %158 = vector.load %arg15[%c0_82, %c0_83] : memref<64x256xf32, #tpu.memory_space<vmem>>, vector<64x256xf32>
    %cst_84 = arith.constant dense<0.000000e+00> : vector<2x256xf32>
    %159 = tpu.matmul %155, %158, %cst_84 {dimension_numbers = #tpu.dot_dimension_numbers<[1], [0], [0], [1], [0, 0, 1, 1], [], []>} : vector<2x64xf32>, vector<64x256xf32>, vector<2x256xf32> -> vector<2x256xf32>
    %160 = arith.addf %157, %159 : vector<2x256xf32>
    %161 = vector.extract_strided_slice %160 {offsets = [0, 0], sizes = [2, 64], strides = [1, 1]} : vector<2x256xf32> to vector<2x64xf32>
    %cst_85 = arith.constant 0.000000e+00 : f32
    %162 = vector.broadcast %cst_85 : f32 to vector<2x64xf32>
    %163 = arith.subf %162, %161 : vector<2x64xf32>
    %164 = math.exp %163 : vector<2x64xf32>
    %cst_86 = arith.constant 1.000000e+00 : f32
    %165 = vector.broadcast %cst_86 : f32 to vector<2x64xf32>
    %166 = arith.addf %165, %164 : vector<2x64xf32>
    %cst_87 = arith.constant 1.000000e+00 : f32
    %167 = vector.broadcast %cst_87 : f32 to vector<2x64xf32>
    %168 = arith.divf %167, %166 : vector<2x64xf32>
    %169 = vector.extract_strided_slice %160 {offsets = [0, 64], sizes = [2, 64], strides = [1, 1]} : vector<2x256xf32> to vector<2x64xf32>
    %cst_88 = arith.constant 0.000000e+00 : f32
    %170 = vector.broadcast %cst_88 : f32 to vector<2x64xf32>
    %171 = arith.subf %170, %169 : vector<2x64xf32>
    %172 = math.exp %171 : vector<2x64xf32>
    %cst_89 = arith.constant 1.000000e+00 : f32
    %173 = vector.broadcast %cst_89 : f32 to vector<2x64xf32>
    %174 = arith.addf %173, %172 : vector<2x64xf32>
    %cst_90 = arith.constant 1.000000e+00 : f32
    %175 = vector.broadcast %cst_90 : f32 to vector<2x64xf32>
    %176 = arith.divf %175, %174 : vector<2x64xf32>
    %177 = vector.extract_strided_slice %160 {offsets = [0, 128], sizes = [2, 64], strides = [1, 1]} : vector<2x256xf32> to vector<2x64xf32>
    %178 = math.tanh %177 : vector<2x64xf32>
    %179 = vector.extract_strided_slice %160 {offsets = [0, 192], sizes = [2, 64], strides = [1, 1]} : vector<2x256xf32> to vector<2x64xf32>
    %cst_91 = arith.constant 0.000000e+00 : f32
    %180 = vector.broadcast %cst_91 : f32 to vector<2x64xf32>
    %181 = arith.subf %180, %179 : vector<2x64xf32>
    %182 = math.exp %181 : vector<2x64xf32>
    %cst_92 = arith.constant 1.000000e+00 : f32
    %183 = vector.broadcast %cst_92 : f32 to vector<2x64xf32>
    %184 = arith.addf %183, %182 : vector<2x64xf32>
    %cst_93 = arith.constant 1.000000e+00 : f32
    %185 = vector.broadcast %cst_93 : f32 to vector<2x64xf32>
    %186 = arith.divf %185, %184 : vector<2x64xf32>
    %187 = arith.mulf %176, %153 : vector<2x64xf32>
    %188 = arith.mulf %168, %178 : vector<2x64xf32>
    %189 = arith.addf %187, %188 : vector<2x64xf32>
    %190 = math.tanh %189 : vector<2x64xf32>
    %191 = arith.mulf %186, %190 : vector<2x64xf32>
    %c6 = arith.constant 6 : index
    %c0_94 = arith.constant 0 : index
    %192 = vector.load %arg27[%c6, %c0_94] : memref<16x64xf32, #tpu.memory_space<vmem>>, vector<2x64xf32>
    tpu.vector_store %arg27[%c6, %c0_94], %191 {strides = array<i32>} : memref<16x64xf32, #tpu.memory_space<vmem>>, vector<2x64xf32>,
    %193 = vector.extract_strided_slice %48 {offsets = [8, 0], sizes = [2, 256], strides = [1, 1]} : vector<16x256xf32> to vector<2x256xf32>
    %c0_95 = arith.constant 0 : index
    %c0_96 = arith.constant 0 : index
    %194 = vector.load %arg15[%c0_95, %c0_96] : memref<64x256xf32, #tpu.memory_space<vmem>>, vector<64x256xf32>
    %cst_97 = arith.constant dense<0.000000e+00> : vector<2x256xf32>
    %195 = tpu.matmul %191, %194, %cst_97 {dimension_numbers = #tpu.dot_dimension_numbers<[1], [0], [0], [1], [0, 0, 1, 1], [], []>} : vector<2x64xf32>, vector<64x256xf32>, vector<2x256xf32> -> vector<2x256xf32>
    %196 = arith.addf %193, %195 : vector<2x256xf32>
    %197 = vector.extract_strided_slice %196 {offsets = [0, 0], sizes = [2, 64], strides = [1, 1]} : vector<2x256xf32> to vector<2x64xf32>
    %cst_98 = arith.constant 0.000000e+00 : f32
    %198 = vector.broadcast %cst_98 : f32 to vector<2x64xf32>
    %199 = arith.subf %198, %197 : vector<2x64xf32>
    %200 = math.exp %199 : vector<2x64xf32>
    %cst_99 = arith.constant 1.000000e+00 : f32
    %201 = vector.broadcast %cst_99 : f32 to vector<2x64xf32>
    %202 = arith.addf %201, %200 : vector<2x64xf32>
    %cst_100 = arith.constant 1.000000e+00 : f32
    %203 = vector.broadcast %cst_100 : f32 to vector<2x64xf32>
    %204 = arith.divf %203, %202 : vector<2x64xf32>
    %205 = vector.extract_strided_slice %196 {offsets = [0, 64], sizes = [2, 64], strides = [1, 1]} : vector<2x256xf32> to vector<2x64xf32>
    %cst_101 = arith.constant 0.000000e+00 : f32
    %206 = vector.broadcast %cst_101 : f32 to vector<2x64xf32>
    %207 = arith.subf %206, %205 : vector<2x64xf32>
    %208 = math.exp %207 : vector<2x64xf32>
    %cst_102 = arith.constant 1.000000e+00 : f32
    %209 = vector.broadcast %cst_102 : f32 to vector<2x64xf32>
    %210 = arith.addf %209, %208 : vector<2x64xf32>
    %cst_103 = arith.constant 1.000000e+00 : f32
    %211 = vector.broadcast %cst_103 : f32 to vector<2x64xf32>
    %212 = arith.divf %211, %210 : vector<2x64xf32>
    %213 = vector.extract_strided_slice %196 {offsets = [0, 128], sizes = [2, 64], strides = [1, 1]} : vector<2x256xf32> to vector<2x64xf32>
    %214 = math.tanh %213 : vector<2x64xf32>
    %215 = vector.extract_strided_slice %196 {offsets = [0, 192], sizes = [2, 64], strides = [1, 1]} : vector<2x256xf32> to vector<2x64xf32>
    %cst_104 = arith.constant 0.000000e+00 : f32
    %216 = vector.broadcast %cst_104 : f32 to vector<2x64xf32>
    %217 = arith.subf %216, %215 : vector<2x64xf32>
    %218 = math.exp %217 : vector<2x64xf32>
    %cst_105 = arith.constant 1.000000e+00 : f32
    %219 = vector.broadcast %cst_105 : f32 to vector<2x64xf32>
    %220 = arith.addf %219, %218 : vector<2x64xf32>
    %cst_106 = arith.constant 1.000000e+00 : f32
    %221 = vector.broadcast %cst_106 : f32 to vector<2x64xf32>
    %222 = arith.divf %221, %220 : vector<2x64xf32>
    %223 = arith.mulf %212, %189 : vector<2x64xf32>
    %224 = arith.mulf %204, %214 : vector<2x64xf32>
    %225 = arith.addf %223, %224 : vector<2x64xf32>
    %226 = math.tanh %225 : vector<2x64xf32>
    %227 = arith.mulf %222, %226 : vector<2x64xf32>
    %c8 = arith.constant 8 : index
    %c0_107 = arith.constant 0 : index
    %228 = vector.load %arg27[%c8, %c0_107] : memref<16x64xf32, #tpu.memory_space<vmem>>, vector<2x64xf32>
    tpu.vector_store %arg27[%c8, %c0_107], %227 {strides = array<i32>} : memref<16x64xf32, #tpu.memory_space<vmem>>, vector<2x64xf32>,
    %229 = vector.extract_strided_slice %48 {offsets = [10, 0], sizes = [2, 256], strides = [1, 1]} : vector<16x256xf32> to vector<2x256xf32>
    %c0_108 = arith.constant 0 : index
    %c0_109 = arith.constant 0 : index
    %230 = vector.load %arg15[%c0_108, %c0_109] : memref<64x256xf32, #tpu.memory_space<vmem>>, vector<64x256xf32>
    %cst_110 = arith.constant dense<0.000000e+00> : vector<2x256xf32>
    %231 = tpu.matmul %227, %230, %cst_110 {dimension_numbers = #tpu.dot_dimension_numbers<[1], [0], [0], [1], [0, 0, 1, 1], [], []>} : vector<2x64xf32>, vector<64x256xf32>, vector<2x256xf32> -> vector<2x256xf32>
    %232 = arith.addf %229, %231 : vector<2x256xf32>
    %233 = vector.extract_strided_slice %232 {offsets = [0, 0], sizes = [2, 64], strides = [1, 1]} : vector<2x256xf32> to vector<2x64xf32>
    %cst_111 = arith.constant 0.000000e+00 : f32
    %234 = vector.broadcast %cst_111 : f32 to vector<2x64xf32>
    %235 = arith.subf %234, %233 : vector<2x64xf32>
    %236 = math.exp %235 : vector<2x64xf32>
    %cst_112 = arith.constant 1.000000e+00 : f32
    %237 = vector.broadcast %cst_112 : f32 to vector<2x64xf32>
    %238 = arith.addf %237, %236 : vector<2x64xf32>
    %cst_113 = arith.constant 1.000000e+00 : f32
    %239 = vector.broadcast %cst_113 : f32 to vector<2x64xf32>
    %240 = arith.divf %239, %238 : vector<2x64xf32>
    %241 = vector.extract_strided_slice %232 {offsets = [0, 64], sizes = [2, 64], strides = [1, 1]} : vector<2x256xf32> to vector<2x64xf32>
    %cst_114 = arith.constant 0.000000e+00 : f32
    %242 = vector.broadcast %cst_114 : f32 to vector<2x64xf32>
    %243 = arith.subf %242, %241 : vector<2x64xf32>
    %244 = math.exp %243 : vector<2x64xf32>
    %cst_115 = arith.constant 1.000000e+00 : f32
    %245 = vector.broadcast %cst_115 : f32 to vector<2x64xf32>
    %246 = arith.addf %245, %244 : vector<2x64xf32>
    %cst_116 = arith.constant 1.000000e+00 : f32
    %247 = vector.broadcast %cst_116 : f32 to vector<2x64xf32>
    %248 = arith.divf %247, %246 : vector<2x64xf32>
    %249 = vector.extract_strided_slice %232 {offsets = [0, 128], sizes = [2, 64], strides = [1, 1]} : vector<2x256xf32> to vector<2x64xf32>
    %250 = math.tanh %249 : vector<2x64xf32>
    %251 = vector.extract_strided_slice %232 {offsets = [0, 192], sizes = [2, 64], strides = [1, 1]} : vector<2x256xf32> to vector<2x64xf32>
    %cst_117 = arith.constant 0.000000e+00 : f32
    %252 = vector.broadcast %cst_117 : f32 to vector<2x64xf32>
    %253 = arith.subf %252, %251 : vector<2x64xf32>
    %254 = math.exp %253 : vector<2x64xf32>
    %cst_118 = arith.constant 1.000000e+00 : f32
    %255 = vector.broadcast %cst_118 : f32 to vector<2x64xf32>
    %256 = arith.addf %255, %254 : vector<2x64xf32>
    %cst_119 = arith.constant 1.000000e+00 : f32
    %257 = vector.broadcast %cst_119 : f32 to vector<2x64xf32>
    %258 = arith.divf %257, %256 : vector<2x64xf32>
    %259 = arith.mulf %248, %225 : vector<2x64xf32>
    %260 = arith.mulf %240, %250 : vector<2x64xf32>
    %261 = arith.addf %259, %260 : vector<2x64xf32>
    %262 = math.tanh %261 : vector<2x64xf32>
    %263 = arith.mulf %258, %262 : vector<2x64xf32>
    %c10 = arith.constant 10 : index
    %c0_120 = arith.constant 0 : index
    %264 = vector.load %arg27[%c10, %c0_120] : memref<16x64xf32, #tpu.memory_space<vmem>>, vector<2x64xf32>
    tpu.vector_store %arg27[%c10, %c0_120], %263 {strides = array<i32>} : memref<16x64xf32, #tpu.memory_space<vmem>>, vector<2x64xf32>,
    %265 = vector.extract_strided_slice %48 {offsets = [12, 0], sizes = [2, 256], strides = [1, 1]} : vector<16x256xf32> to vector<2x256xf32>
    %c0_121 = arith.constant 0 : index
    %c0_122 = arith.constant 0 : index
    %266 = vector.load %arg15[%c0_121, %c0_122] : memref<64x256xf32, #tpu.memory_space<vmem>>, vector<64x256xf32>
    %cst_123 = arith.constant dense<0.000000e+00> : vector<2x256xf32>
    %267 = tpu.matmul %263, %266, %cst_123 {dimension_numbers = #tpu.dot_dimension_numbers<[1], [0], [0], [1], [0, 0, 1, 1], [], []>} : vector<2x64xf32>, vector<64x256xf32>, vector<2x256xf32> -> vector<2x256xf32>
    %268 = arith.addf %265, %267 : vector<2x256xf32>
    %269 = vector.extract_strided_slice %268 {offsets = [0, 0], sizes = [2, 64], strides = [1, 1]} : vector<2x256xf32> to vector<2x64xf32>
    %cst_124 = arith.constant 0.000000e+00 : f32
    %270 = vector.broadcast %cst_124 : f32 to vector<2x64xf32>
    %271 = arith.subf %270, %269 : vector<2x64xf32>
    %272 = math.exp %271 : vector<2x64xf32>
    %cst_125 = arith.constant 1.000000e+00 : f32
    %273 = vector.broadcast %cst_125 : f32 to vector<2x64xf32>
    %274 = arith.addf %273, %272 : vector<2x64xf32>
    %cst_126 = arith.constant 1.000000e+00 : f32
    %275 = vector.broadcast %cst_126 : f32 to vector<2x64xf32>
    %276 = arith.divf %275, %274 : vector<2x64xf32>
    %277 = vector.extract_strided_slice %268 {offsets = [0, 64], sizes = [2, 64], strides = [1, 1]} : vector<2x256xf32> to vector<2x64xf32>
    %cst_127 = arith.constant 0.000000e+00 : f32
    %278 = vector.broadcast %cst_127 : f32 to vector<2x64xf32>
    %279 = arith.subf %278, %277 : vector<2x64xf32>
    %280 = math.exp %279 : vector<2x64xf32>
    %cst_128 = arith.constant 1.000000e+00 : f32
    %281 = vector.broadcast %cst_128 : f32 to vector<2x64xf32>
    %282 = arith.addf %281, %280 : vector<2x64xf32>
    %cst_129 = arith.constant 1.000000e+00 : f32
    %283 = vector.broadcast %cst_129 : f32 to vector<2x64xf32>
    %284 = arith.divf %283, %282 : vector<2x64xf32>
    %285 = vector.extract_strided_slice %268 {offsets = [0, 128], sizes = [2, 64], strides = [1, 1]} : vector<2x256xf32> to vector<2x64xf32>
    %286 = math.tanh %285 : vector<2x64xf32>
    %287 = vector.extract_strided_slice %268 {offsets = [0, 192], sizes = [2, 64], strides = [1, 1]} : vector<2x256xf32> to vector<2x64xf32>
    %cst_130 = arith.constant 0.000000e+00 : f32
    %288 = vector.broadcast %cst_130 : f32 to vector<2x64xf32>
    %289 = arith.subf %288, %287 : vector<2x64xf32>
    %290 = math.exp %289 : vector<2x64xf32>
    %cst_131 = arith.constant 1.000000e+00 : f32
    %291 = vector.broadcast %cst_131 : f32 to vector<2x64xf32>
    %292 = arith.addf %291, %290 : vector<2x64xf32>
    %cst_132 = arith.constant 1.000000e+00 : f32
    %293 = vector.broadcast %cst_132 : f32 to vector<2x64xf32>
    %294 = arith.divf %293, %292 : vector<2x64xf32>
    %295 = arith.mulf %284, %261 : vector<2x64xf32>
    %296 = arith.mulf %276, %286 : vector<2x64xf32>
    %297 = arith.addf %295, %296 : vector<2x64xf32>
    %298 = math.tanh %297 : vector<2x64xf32>
    %299 = arith.mulf %294, %298 : vector<2x64xf32>
    %c12 = arith.constant 12 : index
    %c0_133 = arith.constant 0 : index
    %300 = vector.load %arg27[%c12, %c0_133] : memref<16x64xf32, #tpu.memory_space<vmem>>, vector<2x64xf32>
    tpu.vector_store %arg27[%c12, %c0_133], %299 {strides = array<i32>} : memref<16x64xf32, #tpu.memory_space<vmem>>, vector<2x64xf32>,
    %301 = vector.extract_strided_slice %48 {offsets = [14, 0], sizes = [2, 256], strides = [1, 1]} : vector<16x256xf32> to vector<2x256xf32>
    %c0_134 = arith.constant 0 : index
    %c0_135 = arith.constant 0 : index
    %302 = vector.load %arg15[%c0_134, %c0_135] : memref<64x256xf32, #tpu.memory_space<vmem>>, vector<64x256xf32>
    %cst_136 = arith.constant dense<0.000000e+00> : vector<2x256xf32>
    %303 = tpu.matmul %299, %302, %cst_136 {dimension_numbers = #tpu.dot_dimension_numbers<[1], [0], [0], [1], [0, 0, 1, 1], [], []>} : vector<2x64xf32>, vector<64x256xf32>, vector<2x256xf32> -> vector<2x256xf32>
    %304 = arith.addf %301, %303 : vector<2x256xf32>
    %305 = vector.extract_strided_slice %304 {offsets = [0, 0], sizes = [2, 64], strides = [1, 1]} : vector<2x256xf32> to vector<2x64xf32>
    %cst_137 = arith.constant 0.000000e+00 : f32
    %306 = vector.broadcast %cst_137 : f32 to vector<2x64xf32>
    %307 = arith.subf %306, %305 : vector<2x64xf32>
    %308 = math.exp %307 : vector<2x64xf32>
    %cst_138 = arith.constant 1.000000e+00 : f32
    %309 = vector.broadcast %cst_138 : f32 to vector<2x64xf32>
    %310 = arith.addf %309, %308 : vector<2x64xf32>
    %cst_139 = arith.constant 1.000000e+00 : f32
    %311 = vector.broadcast %cst_139 : f32 to vector<2x64xf32>
    %312 = arith.divf %311, %310 : vector<2x64xf32>
    %313 = vector.extract_strided_slice %304 {offsets = [0, 64], sizes = [2, 64], strides = [1, 1]} : vector<2x256xf32> to vector<2x64xf32>
    %cst_140 = arith.constant 0.000000e+00 : f32
    %314 = vector.broadcast %cst_140 : f32 to vector<2x64xf32>
    %315 = arith.subf %314, %313 : vector<2x64xf32>
    %316 = math.exp %315 : vector<2x64xf32>
    %cst_141 = arith.constant 1.000000e+00 : f32
    %317 = vector.broadcast %cst_141 : f32 to vector<2x64xf32>
    %318 = arith.addf %317, %316 : vector<2x64xf32>
    %cst_142 = arith.constant 1.000000e+00 : f32
    %319 = vector.broadcast %cst_142 : f32 to vector<2x64xf32>
    %320 = arith.divf %319, %318 : vector<2x64xf32>
    %321 = vector.extract_strided_slice %304 {offsets = [0, 128], sizes = [2, 64], strides = [1, 1]} : vector<2x256xf32> to vector<2x64xf32>
    %322 = math.tanh %321 : vector<2x64xf32>
    %323 = vector.extract_strided_slice %304 {offsets = [0, 192], sizes = [2, 64], strides = [1, 1]} : vector<2x256xf32> to vector<2x64xf32>
    %cst_143 = arith.constant 0.000000e+00 : f32
    %324 = vector.broadcast %cst_143 : f32 to vector<2x64xf32>
    %325 = arith.subf %324, %323 : vector<2x64xf32>
    %326 = math.exp %325 : vector<2x64xf32>
    %cst_144 = arith.constant 1.000000e+00 : f32
    %327 = vector.broadcast %cst_144 : f32 to vector<2x64xf32>
    %328 = arith.addf %327, %326 : vector<2x64xf32>
    %cst_145 = arith.constant 1.000000e+00 : f32
    %329 = vector.broadcast %cst_145 : f32 to vector<2x64xf32>
    %330 = arith.divf %329, %328 : vector<2x64xf32>
    %331 = arith.mulf %320, %297 : vector<2x64xf32>
    %332 = arith.mulf %312, %322 : vector<2x64xf32>
    %333 = arith.addf %331, %332 : vector<2x64xf32>
    %334 = math.tanh %333 : vector<2x64xf32>
    %335 = arith.mulf %330, %334 : vector<2x64xf32>
    %c14 = arith.constant 14 : index
    %c0_146 = arith.constant 0 : index
    %336 = vector.load %arg27[%c14, %c0_146] : memref<16x64xf32, #tpu.memory_space<vmem>>, vector<2x64xf32>
    tpu.vector_store %arg27[%c14, %c0_146], %335 {strides = array<i32>} : memref<16x64xf32, #tpu.memory_space<vmem>>, vector<2x64xf32>,
    %c0_147 = arith.constant 0 : index
    %c0_148 = arith.constant 0 : index
    %337 = vector.load %arg27[%c0_147, %c0_148] : memref<16x64xf32, #tpu.memory_space<vmem>>, vector<16x64xf32>
    %c0_149 = arith.constant 0 : index
    %c0_150 = arith.constant 0 : index
    %338 = vector.load %arg17[%c0_149, %c0_150] : memref<64x32xf32, #tpu.memory_space<vmem>>, vector<64x32xf32>
    %cst_151 = arith.constant dense<0.000000e+00> : vector<16x32xf32>
    %339 = tpu.matmul %337, %338, %cst_151 {dimension_numbers = #tpu.dot_dimension_numbers<[1], [0], [0], [1], [0, 0, 1, 1], [], []>} : vector<16x64xf32>, vector<64x32xf32>, vector<16x32xf32> -> vector<16x32xf32>
    %c0_152 = arith.constant 0 : index
    %c0_153 = arith.constant 0 : index
    %340 = vector.load %arg18[%c0_152, %c0_153] : memref<1x32xf32, #tpu.memory_space<vmem>>, vector<1x32xf32>
    %341 = vector.broadcast %340 : vector<1x32xf32> to vector<16x32xf32>
    %342 = arith.addf %339, %341 : vector<16x32xf32>
    %cst_154 = arith.constant 0.000000e+00 : f32
    %343 = vector.broadcast %cst_154 : f32 to vector<16x32xf32>
    %344 = arith.maximumf %342, %343 : vector<16x32xf32>
    %c0_155 = arith.constant 0 : index
    %c0_156 = arith.constant 0 : index
    %345 = vector.load %arg19[%c0_155, %c0_156] : memref<32x1xf32, #tpu.memory_space<vmem>>, vector<32x1xf32>
    %cst_157 = arith.constant dense<0.000000e+00> : vector<16x1xf32>
    %346 = tpu.matmul %344, %345, %cst_157 {dimension_numbers = #tpu.dot_dimension_numbers<[1], [0], [0], [1], [0, 0, 1, 1], [], []>} : vector<16x32xf32>, vector<32x1xf32>, vector<16x1xf32> -> vector<16x1xf32>
    %c0_158 = arith.constant 0 : index
    %c0_159 = arith.constant 0 : index
    %347 = vector.load %arg20[%c0_158, %c0_159] : memref<1x1xf32, #tpu.memory_space<vmem>>, vector<1x1xf32>
    %348 = vector.broadcast %347 : vector<1x1xf32> to vector<16x1xf32>
    %349 = arith.addf %346, %348 : vector<16x1xf32>
    %c0_160 = arith.constant 0 : index
    %c0_161 = arith.constant 0 : index
    %350 = vector.load %arg21[%c0_160, %c0_161] : memref<64x32xf32, #tpu.memory_space<vmem>>, vector<64x32xf32>
    %cst_162 = arith.constant dense<0.000000e+00> : vector<16x32xf32>
    %351 = tpu.matmul %337, %350, %cst_162 {dimension_numbers = #tpu.dot_dimension_numbers<[1], [0], [0], [1], [0, 0, 1, 1], [], []>} : vector<16x64xf32>, vector<64x32xf32>, vector<16x32xf32> -> vector<16x32xf32>
    %c0_163 = arith.constant 0 : index
    %c0_164 = arith.constant 0 : index
    %352 = vector.load %arg22[%c0_163, %c0_164] : memref<1x32xf32, #tpu.memory_space<vmem>>, vector<1x32xf32>
    %353 = vector.broadcast %352 : vector<1x32xf32> to vector<16x32xf32>
    %354 = arith.addf %351, %353 : vector<16x32xf32>
    %cst_165 = arith.constant 0.000000e+00 : f32
    %355 = vector.broadcast %cst_165 : f32 to vector<16x32xf32>
    %356 = arith.maximumf %354, %355 : vector<16x32xf32>
    %c0_166 = arith.constant 0 : index
    %c0_167 = arith.constant 0 : index
    %357 = vector.load %arg23[%c0_166, %c0_167] : memref<32x3xf32, #tpu.memory_space<vmem>>, vector<32x3xf32>
    %cst_168 = arith.constant dense<0.000000e+00> : vector<16x3xf32>
    %358 = tpu.matmul %356, %357, %cst_168 {dimension_numbers = #tpu.dot_dimension_numbers<[1], [0], [0], [1], [0, 0, 1, 1], [], []>} : vector<16x32xf32>, vector<32x3xf32>, vector<16x3xf32> -> vector<16x3xf32>
    %c0_169 = arith.constant 0 : index
    %c0_170 = arith.constant 0 : index
    %359 = vector.load %arg24[%c0_169, %c0_170] : memref<1x3xf32, #tpu.memory_space<vmem>>, vector<1x3xf32>
    %360 = vector.broadcast %359 : vector<1x3xf32> to vector<16x3xf32>
    %361 = arith.addf %358, %360 : vector<16x3xf32>
    %362 = tpu.iota {dimensions = array<i32: 1>} : vector<16x3xi32>
    %c2_i32 = arith.constant 2 : i32
    %363 = vector.broadcast %c2_i32 : i32 to vector<16x3xi32>
    %364 = arith.cmpi eq, %362, %363 : vector<16x3xi32>
    %365 = math.tanh %361 : vector<16x3xf32>
    %cst_171 = arith.constant 3.14159274 : f32
    %366 = vector.broadcast %cst_171 : f32 to vector<16x3xf32>
    %367 = arith.mulf %365, %366 : vector<16x3xf32>
    %368 = arith.select %364, %367, %361 : vector<16x3xi1>, vector<16x3xf32>
    %c0_172 = arith.constant 0 : index
    %c0_173 = arith.constant 0 : index
    %369 = vector.load %arg25[%c0_172, %c0_173] : memref<16x1xf32, #tpu.memory_space<vmem>>, vector<16x1xf32>
    tpu.vector_store %arg25[%c0_172, %c0_173], %349 {strides = array<i32>} : memref<16x1xf32, #tpu.memory_space<vmem>>, vector<16x1xf32>,
    %c0_174 = arith.constant 0 : index
    %c0_175 = arith.constant 0 : index
    %370 = vector.load %arg26[%c0_174, %c0_175] : memref<16x3xf32, #tpu.memory_space<vmem>>, vector<16x3xf32>
    tpu.vector_store %arg26[%c0_174, %c0_175], %368 {strides = array<i32>} : memref<16x3xf32, #tpu.memory_space<vmem>>, vector<16x3xf32>,
    return
  }
}

</mosaic_0001>

<llo_original>
// kernel: badgr_forward.2
$region0: #{badgr_forward.2}
  #allocation0 [shape = 'u32[]', space=smem, size = 0x4, offset = 0x4, fixed_abs, tag = 'smem constant byte address 0x4 - core index']
  #allocation1 [shape = 'u32[144,128]{1,0:T(1,128)}', space=vmem, size = 0x12000, scoped, tag = 'internal scratch']
  %s0 = inlined_call_operand.vmem [shape: f32[128,27], index: 0, kind: input, shape index: {}]
  %s1 = inlined_call_operand.vmem [shape: f32[27,8], index: 1, kind: input, shape index: {}]
  %s2 = inlined_call_operand.vmem [shape: f32[1,8], index: 2, kind: input, shape index: {}]
  %s3 = inlined_call_operand.vmem [shape: f32[128,8], index: 3, kind: output, shape index: {}]
  %s4 = sld [smem:[#allocation0]]
  $region22: #{badgr_forward.2} parent=0
    _
  %s6 = ssub.s32 1, %s4
  %s7 = scalar_select 0, %s6, %s4
  // Predicated region
  $region2: #{badgr_forward.2} parent=0 // pred_check
    _
  $region3: #{badgr_forward.2} parent=0 // pred_check_branch
    %9 = sbr.rel (0) target = $region5
  $region4: #{badgr_forward.2} parent=0 // pred_region
    _
  $region5: #{badgr_forward.2} parent=0 // pred_fallthru
    _
  // Predicated region
  $region6: #{badgr_forward.2} parent=0 // pred_check
    _
  $region7: #{badgr_forward.2} parent=0 // pred_check_branch
    %11 = sbr.rel (0) target = $region9
  $region8: #{badgr_forward.2} parent=0 // pred_region
    _
  $region9: #{badgr_forward.2} parent=0 // pred_fallthru
    _
  // Predicated region
  $region10: #{badgr_forward.2} parent=0 // pred_check
    _
  $region11: #{badgr_forward.2} parent=0 // pred_check_branch
    %13 = sbr.rel (0) target = $region13
  $region12: #{badgr_forward.2} parent=0 // pred_region
    _
  $region13: #{badgr_forward.2} parent=0 // pred_fallthru
    _
  %v14 = vld [vmem:[%s0] sm:$0xff]
  %v15 = vld [vmem:[%s0 + $0x8] sm:$0xff]
  %v16 = vld [vmem:[%s0 + $0x10] sm:$0xff]
  %v17 = vld [vmem:[%s0 + $0x18] sm:$0xff]
  %v18 = vld [vmem:[%s0 + $0x20] sm:$0xff]
  %v19 = vld [vmem:[%s0 + $0x28] sm:$0xff]
  %v20 = vld [vmem:[%s0 + $0x30] sm:$0xff]
  %v21 = vld [vmem:[%s0 + $0x38] sm:$0xff]
  %v22 = vld [vmem:[%s0 + $0x40] sm:$0xff]
  %v23 = vld [vmem:[%s0 + $0x48] sm:$0xff]
  %v24 = vld [vmem:[%s0 + $0x50] sm:$0xff]
  %v25 = vld [vmem:[%s0 + $0x58] sm:$0xff]
  %v26 = vld [vmem:[%s0 + $0x60] sm:$0xff]
  %v27 = vld [vmem:[%s0 + $0x68] sm:$0xff]
  %v28 = vld [vmem:[%s0 + $0x70] sm:$0xff]
  %v29 = vld [vmem:[%s0 + $0x78] sm:$0xff]
  %v30 = vld [vmem:[%s1] sm:$0xff]
  %v31 = vld [vmem:[%s1 + $0x8] sm:$0xff]
  %v32 = vld [vmem:[%s1 + $0x10] sm:$0xff]
  %v33 = vld [vmem:[%s1 + $0x18] sm:$0x7]
  %v34 = vld [vmem:[%s2] sm:$0x1]
  %v36 = vlaneseq
  %v37 = vshrl.u32 %v36, 7
  %v38 = vsub.s32 0, %v37
  %v39 = vrot.slane %v34, %v38
  %vm41 = vcmask 220160
  %v43 = vsel %vm41, %v14, 0
  %v46 = vsel %vm41, %v15, 0
  %v49 = vsel %vm41, %v16, 0
  %v52 = vsel %vm41, %v17, 0
  %v55 = vsel %vm41, %v18, 0
  %v58 = vsel %vm41, %v19, 0
  %v61 = vsel %vm41, %v20, 0
  %v64 = vsel %vm41, %v21, 0
  %v67 = vsel %vm41, %v22, 0
  %v70 = vsel %vm41, %v23, 0
  %v73 = vsel %vm41, %v24, 0
  %v76 = vsel %vm41, %v25, 0
  %v79 = vsel %vm41, %v26, 0
  %v82 = vsel %vm41, %v27, 0
  %v85 = vsel %vm41, %v28, 0
  %v88 = vsel %vm41, %v29, 0
  %vm90 = vcmask 1042432
  %v92 = vsel %vm90, %v33, 0
  %94 = vmatprep.subr.mxu0 0.0
  %95 = vmatpush1.msra.mxu0 %v30
  %96 = vmatprep.subr.mxu0 0.0
  %97 = vmatpush1.msra.mxu0 %v31
  %98 = vmatprep.subr.mxu0 0.0
  %99 = vmatpush1.msra.mxu0 %v32
  %100 = vmatprep.subr.mxu0 0.0
  %101 = vmatpush1.msra.mxu0 %v92
  %102 = vmatprep.subr.mxu0 0.0
  %103 = vmatpush1.msra.mxu0 0.0
  %104 = vmatprep.subr.mxu0 0.0
  %105 = vmatpush1.msra.mxu0 0.0
  %106 = vmatprep.subr.mxu0 0.0
  %107 = vmatpush1.msra.mxu0 0.0
  %108 = vmatprep.subr.mxu0 0.0
  %109 = vmatpush1.msra.mxu0 0.0
  %110 = vmatprep.subr.mxu0 0.0
  %111 = vmatpush1.msra.mxu0 0.0
  %112 = vmatprep.subr.mxu0 0.0
  %113 = vmatpush1.msra.mxu0 0.0
  %114 = vmatprep.subr.mxu0 0.0
  %115 = vmatpush1.msra.mxu0 0.0
  %116 = vmatprep.subr.mxu0 0.0
  %117 = vmatpush1.msra.mxu0 0.0
  %118 = vmatprep.subr.mxu0 0.0
  %119 = vmatpush1.msra.mxu0 0.0
  %120 = vmatprep.subr.mxu0 0.0
  %121 = vmatpush1.msra.mxu0 0.0
  %122 = vmatprep.subr.mxu0 0.0
  %123 = vmatpush1.msra.mxu0 0.0
  %124 = vmatprep.subr.mxu0 0.0
  %125 = vmatpush1.msra.mxu0 0.0
  %126 = vmatprep.subr.mxu0 0.0
  %127 = vmatpush1.msra.mxu0 0.0
  %128 = vmatprep.subr.mxu0 0.0
  %129 = vmatpush1.msra.mxu0 0.0
  %130 = vmatprep.subr.mxu0 0.0
  %131 = vmatpush1.msra.mxu0 0.0
  %132 = vmatprep.subr.mxu0 0.0
  %133 = vmatpush1.msra.mxu0 0.0
  %134 = vmatprep.subr.mxu0 0.0
  %135 = vmatpush1.msra.mxu0 0.0
  %136 = vmatprep.subr.mxu0 0.0
  %137 = vmatpush1.msra.mxu0 0.0
  %138 = vmatprep.subr.mxu0 0.0
  %139 = vmatpush1.msra.mxu0 0.0
  %140 = vmatprep.subr.mxu0 0.0
  %141 = vmatpush1.msra.mxu0 0.0
  %142 = vmatprep.subr.mxu0 0.0
  %143 = vmatpush1.msra.mxu0 0.0
  %144 = vmatprep.subr.mxu0 0.0
  %145 = vmatpush1.msra.mxu0 0.0
  %146 = vmatprep.subr.mxu0 0.0
  %147 = vmatpush1.msra.mxu0 0.0
  %148 = vmatprep.subr.mxu0 0.0
  %149 = vmatpush1.msra.mxu0 0.0
  %150 = vmatprep.subr.mxu0 0.0
  %151 = vmatpush1.msra.mxu0 0.0
  %152 = vmatprep.subr.mxu0 0.0
  %153 = vmatpush1.msra.mxu0 0.0
  %154 = vmatprep.subr.mxu0 0.0
  %155 = vmatpush1.msra.mxu0 0.0
  %156 = vmatprep.subr.mxu0 0.0
  %157 = vmatpush1.msra.mxu0 0.0
  %158 = vmatprep.mubr.f32.mxu0 0.0
  %159 = vmatmul.mubr.f32.gmra.mrb[0].mxu0 %v43
  %v160 = vpop.f32.mrb[0].mxu0
  %v161 = vadd.f32 %v39, %v160
  %v162 = vpop.f32.mrb[0].mxu0
  %163 = vmatprep.mubr.f32.mxu0 0.0
  %164 = vmatmul.mubr.f32.gmra.mrb[0].mxu0 %v46
  %v165 = vpop.f32.mrb[0].mxu0
  %v166 = vadd.f32 %v39, %v165
  %v167 = vpop.f32.mrb[0].mxu0
  %168 = vmatprep.mubr.f32.mxu0 0.0
  %169 = vmatmul.mubr.f32.gmra.mrb[0].mxu0 %v49
  %v170 = vpop.f32.mrb[0].mxu0
  %v171 = vadd.f32 %v39, %v170
  %v172 = vpop.f32.mrb[0].mxu0
  %173 = vmatprep.mubr.f32.mxu0 0.0
  %174 = vmatmul.mubr.f32.gmra.mrb[0].mxu0 %v52
  %v175 = vpop.f32.mrb[0].mxu0
  %v176 = vadd.f32 %v39, %v175
  %v177 = vpop.f32.mrb[0].mxu0
  %178 = vmatprep.mubr.f32.mxu0 0.0
  %179 = vmatmul.mubr.f32.gmra.mrb[0].mxu0 %v55
  %v180 = vpop.f32.mrb[0].mxu0
  %v181 = vadd.f32 %v39, %v180
  %v182 = vpop.f32.mrb[0].mxu0
  %183 = vmatprep.mubr.f32.mxu0 0.0
  %184 = vmatmul.mubr.f32.gmra.mrb[0].mxu0 %v58
  %v185 = vpop.f32.mrb[0].mxu0
  %v186 = vadd.f32 %v39, %v185
  %v187 = vpop.f32.mrb[0].mxu0
  %188 = vmatprep.mubr.f32.mxu0 0.0
  %189 = vmatmul.mubr.f32.gmra.mrb[0].mxu0 %v61
  %v190 = vpop.f32.mrb[0].mxu0
  %v191 = vadd.f32 %v39, %v190
  %v192 = vpop.f32.mrb[0].mxu0
  %193 = vmatprep.mubr.f32.mxu0 0.0
  %194 = vmatmul.mubr.f32.gmra.mrb[0].mxu0 %v64
  %v195 = vpop.f32.mrb[0].mxu0
  %v196 = vadd.f32 %v39, %v195
  %v197 = vpop.f32.mrb[0].mxu0
  %198 = vmatprep.mubr.f32.mxu0 0.0
  %199 = vmatmul.mubr.f32.gmra.mrb[0].mxu0 %v67
  %v200 = vpop.f32.mrb[0].mxu0
  %v201 = vadd.f32 %v39, %v200
  %v202 = vpop.f32.mrb[0].mxu0
  %203 = vmatprep.mubr.f32.mxu0 0.0
  %204 = vmatmul.mubr.f32.gmra.mrb[0].mxu0 %v70
  %v205 = vpop.f32.mrb[0].mxu0
  %v206 = vadd.f32 %v39, %v205
  %v207 = vpop.f32.mrb[0].mxu0
  %208 = vmatprep.mubr.f32.mxu0 0.0
  %209 = vmatmul.mubr.f32.gmra.mrb[0].mxu0 %v73
  %v210 = vpop.f32.mrb[0].mxu0
  %v211 = vadd.f32 %v39, %v210
  %v212 = vpop.f32.mrb[0].mxu0
  %213 = vmatprep.mubr.f32.mxu0 0.0
  %214 = vmatmul.mubr.f32.gmra.mrb[0].mxu0 %v76
  %v215 = vpop.f32.mrb[0].mxu0
  %v216 = vadd.f32 %v39, %v215
  %v217 = vpop.f32.mrb[0].mxu0
  %218 = vmatprep.mubr.f32.mxu0 0.0
  %219 = vmatmul.mubr.f32.gmra.mrb[0].mxu0 %v79
  %v220 = vpop.f32.mrb[0].mxu0
  %v221 = vadd.f32 %v39, %v220
  %v222 = vpop.f32.mrb[0].mxu0
  %223 = vmatprep.mubr.f32.mxu0 0.0
  %224 = vmatmul.mubr.f32.gmra.mrb[0].mxu0 %v82
  %v225 = vpop.f32.mrb[0].mxu0
  %v226 = vadd.f32 %v39, %v225
  %v227 = vpop.f32.mrb[0].mxu0
  %228 = vmatprep.mubr.f32.mxu0 0.0
  %229 = vmatmul.mubr.f32.gmra.mrb[0].mxu0 %v85
  %v230 = vpop.f32.mrb[0].mxu0
  %v231 = vadd.f32 %v39, %v230
  %v232 = vpop.f32.mrb[0].mxu0
  %233 = vmatprep.mubr.f32.mxu0 0.0
  %234 = vmatmul.mubr.f32.gmra.mrb[0].mxu0 %v88
  %v235 = vpop.f32.mrb[0].mxu0
  %v236 = vadd.f32 %v39, %v235
  %v237 = vpop.f32.mrb[0].mxu0
  %238 = vdwg.mxu0
  %v239 = vmax.f32 %v161, 0.0
  %v240 = vmax.f32 %v166, 0.0
  %v241 = vmax.f32 %v171, 0.0
  %v242 = vmax.f32 %v176, 0.0
  %v243 = vmax.f32 %v181, 0.0
  %v244 = vmax.f32 %v186, 0.0
  %v245 = vmax.f32 %v191, 0.0
  %v246 = vmax.f32 %v196, 0.0
  %v247 = vmax.f32 %v201, 0.0
  %v248 = vmax.f32 %v206, 0.0
  %v249 = vmax.f32 %v211, 0.0
  %v250 = vmax.f32 %v216, 0.0
  %v251 = vmax.f32 %v221, 0.0
  %v252 = vmax.f32 %v226, 0.0
  %v253 = vmax.f32 %v231, 0.0
  %v254 = vmax.f32 %v236, 0.0
  %vm255 = vcmask 64512
  %256 = vst.msk [vmem:[%s3] sm:$0xff] %vm255, %v239
  %257 = vst.msk [vmem:[%s3 + $0x8] sm:$0xff] %vm255, %v240
  %258 = vst.msk [vmem:[%s3 + $0x10] sm:$0xff] %vm255, %v241
  %259 = vst.msk [vmem:[%s3 + $0x18] sm:$0xff] %vm255, %v242
  %260 = vst.msk [vmem:[%s3 + $0x20] sm:$0xff] %vm255, %v243
  %261 = vst.msk [vmem:[%s3 + $0x28] sm:$0xff] %vm255, %v244
  %262 = vst.msk [vmem:[%s3 + $0x30] sm:$0xff] %vm255, %v245
  %263 = vst.msk [vmem:[%s3 + $0x38] sm:$0xff] %vm255, %v246
  %264 = vst.msk [vmem:[%s3 + $0x40] sm:$0xff] %vm255, %v247
  %265 = vst.msk [vmem:[%s3 + $0x48] sm:$0xff] %vm255, %v248
  %266 = vst.msk [vmem:[%s3 + $0x50] sm:$0xff] %vm255, %v249
  %267 = vst.msk [vmem:[%s3 + $0x58] sm:$0xff] %vm255, %v250
  %268 = vst.msk [vmem:[%s3 + $0x60] sm:$0xff] %vm255, %v251
  %269 = vst.msk [vmem:[%s3 + $0x68] sm:$0xff] %vm255, %v252
  %270 = vst.msk [vmem:[%s3 + $0x70] sm:$0xff] %vm255, %v253
  %271 = vst.msk [vmem:[%s3 + $0x78] sm:$0xff] %vm255, %v254
  // Predicated region
  $region14: #{badgr_forward.2} parent=0 // pred_check
    _
  $region15: #{badgr_forward.2} parent=0 // pred_check_branch
    %273 = sbr.rel (0) target = $region17
  $region16: #{badgr_forward.2} parent=0 // pred_region
    _
  $region17: #{badgr_forward.2} parent=0 // pred_fallthru
    _
  // Predicated region
  $region18: #{badgr_forward.2} parent=0 // pred_check
    _
  $region19: #{badgr_forward.2} parent=0 // pred_check_branch
    %275 = sbr.rel (0) target = $region21
  $region20: #{badgr_forward.2} parent=0 // pred_region
    _
  $region21: #{badgr_forward.2} parent=0 // pred_fallthru
    _

// kernel: badgr_forward.3
$region0: #{badgr_forward.3}
  #allocation0 [shape = 'u32[]', space=smem, size = 0x4, offset = 0x4, fixed_abs, tag = 'smem constant byte address 0x4 - core index']
  #allocation1 [shape = 'u32[144,128]{1,0:T(1,128)}', space=vmem, size = 0x12000, scoped, tag = 'internal scratch']
  #allocation2 [shape = 'f32[16,64]{1,0:T(8,128)}', space=vmem, size = 0x2000, scoped, tag = 'scratch operand']
  #allocation3 [shape = 'f32[1,1]{1,0:T(1,128)S(1)}', space=vmem, size = 0x200, scoped, tag = 'scoped memory for badgr_forward.3']
  %s0 = inlined_call_operand.vmem [shape: f32[2,512], index: 0, kind: input, shape index: {}]
  %s1 = inlined_call_operand.vmem [shape: f32[16,2], index: 1, kind: input, shape index: {}]
  %s2 = inlined_call_operand.vmem [shape: f32[512,256], index: 2, kind: input, shape index: {}]
  %s3 = inlined_call_operand.vmem [shape: f32[1,256], index: 3, kind: input, shape index: {}]
  %s4 = inlined_call_operand.vmem [shape: f32[256,256], index: 4, kind: input, shape index: {}]
  %s5 = inlined_call_operand.vmem [shape: f32[1,256], index: 5, kind: input, shape index: {}]
  %s6 = inlined_call_operand.vmem [shape: f32[256,128], index: 6, kind: input, shape index: {}]
  %s7 = inlined_call_operand.vmem [shape: f32[1,128], index: 7, kind: input, shape index: {}]
  %s8 = inlined_call_operand.vmem [shape: f32[128,128], index: 8, kind: input, shape index: {}]
  %s9 = inlined_call_operand.vmem [shape: f32[1,128], index: 9, kind: input, shape index: {}]
  %s10 = inlined_call_operand.vmem [shape: f32[2,16], index: 10, kind: input, shape index: {}]
  %s11 = inlined_call_operand.vmem [shape: f32[1,16], index: 11, kind: input, shape index: {}]
  %s12 = inlined_call_operand.vmem [shape: f32[16,16], index: 12, kind: input, shape index: {}]
  %s13 = inlined_call_operand.vmem [shape: f32[1,16], index: 13, kind: input, shape index: {}]
  %s14 = inlined_call_operand.vmem [shape: f32[16,256], index: 14, kind: input, shape index: {}]
  %s15 = inlined_call_operand.vmem [shape: f32[64,256], index: 15, kind: input, shape index: {}]
  %s16 = inlined_call_operand.vmem [shape: f32[1,256], index: 16, kind: input, shape index: {}]
  %s17 = inlined_call_operand.vmem [shape: f32[64,32], index: 17, kind: input, shape index: {}]
  %s18 = inlined_call_operand.vmem [shape: f32[1,32], index: 18, kind: input, shape index: {}]
  %s19 = inlined_call_operand.vmem [shape: f32[32,1], index: 19, kind: input, shape index: {}]
  %s20 = inlined_call_operand.<no memory space> [shape: f32[1,1], index: 20, kind: input, shape index: {}]
  %s21 = inlined_call_operand.vmem [shape: f32[64,32], index: 21, kind: input, shape index: {}]
  %s22 = inlined_call_operand.vmem [shape: f32[1,32], index: 22, kind: input, shape index: {}]
  %s23 = inlined_call_operand.vmem [shape: f32[32,3], index: 23, kind: input, shape index: {}]
  %s24 = inlined_call_operand.vmem [shape: f32[1,3], index: 24, kind: input, shape index: {}]
  %s25 = inlined_call_operand.vmem [shape: f32[16,1], index: 25, kind: output, shape index: {0}]
  %s26 = inlined_call_operand.vmem [shape: f32[16,3], index: 26, kind: output, shape index: {1}]
  %27 = xla_tuple %s25, %s26
  %s28 = sld [smem:[#allocation0]]
  $region118: #{badgr_forward.3} parent=0
    _
  %s30 = ssub.s32 1, %s28
  %s31 = scalar_select 0, %s30, %s28
  %v32 = vstv %s20
  %33 = vst [vmem:[#allocation3] sm:$0x1] %v32
  // Predicated region
  $region2: #{badgr_forward.3} parent=0 // pred_check
    _
  $region3: #{badgr_forward.3} parent=0 // pred_check_branch
    %35 = sbr.rel (0) target = $region5
  $region4: #{badgr_forward.3} parent=0 // pred_region
    _
  $region5: #{badgr_forward.3} parent=0 // pred_fallthru
    _
  // Predicated region
  $region6: #{badgr_forward.3} parent=0 // pred_check
    _
  $region7: #{badgr_forward.3} parent=0 // pred_check_branch
    %37 = sbr.rel (0) target = $region9
  $region8: #{badgr_forward.3} parent=0 // pred_region
    _
  $region9: #{badgr_forward.3} parent=0 // pred_fallthru
    _
  // Predicated region
  $region10: #{badgr_forward.3} parent=0 // pred_check
    _
  $region11: #{badgr_forward.3} parent=0 // pred_check_branch
    %39 = sbr.rel (0) target = $region13
  $region12: #{badgr_forward.3} parent=0 // pred_region
    _
  $region13: #{badgr_forward.3} parent=0 // pred_fallthru
    _
  // Predicated region
  $region14: #{badgr_forward.3} parent=0 // pred_check
    _
  $region15: #{badgr_forward.3} parent=0 // pred_check_branch
    %41 = sbr.rel (0) target = $region17
  $region16: #{badgr_forward.3} parent=0 // pred_region
    _
  $region17: #{badgr_forward.3} parent=0 // pred_fallthru
    _
  // Predicated region
  $region18: #{badgr_forward.3} parent=0 // pred_check
    _
  $region19: #{badgr_forward.3} parent=0 // pred_check_branch
    %43 = sbr.rel (0) target = $region21
  $region20: #{badgr_forward.3} parent=0 // pred_region
    _
  $region21: #{badgr_forward.3} parent=0 // pred_fallthru
    _
  // Predicated region
  $region22: #{badgr_forward.3} parent=0 // pred_check
    _
  $region23: #{badgr_forward.3} parent=0 // pred_check_branch
    %45 = sbr.rel (0) target = $region25
  $region24: #{badgr_forward.3} parent=0 // pred_region
    _
  $region25: #{badgr_forward.3} parent=0 // pred_fallthru
    _
  // Predicated region
  $region26: #{badgr_forward.3} parent=0 // pred_check
    _
  $region27: #{badgr_forward.3} parent=0 // pred_check_branch
    %47 = sbr.rel (0) target = $region29
  $region28: #{badgr_forward.3} parent=0 // pred_region
    _
  $region29: #{badgr_forward.3} parent=0 // pred_fallthru
    _
  // Predicated region
  $region30: #{badgr_forward.3} parent=0 // pred_check
    _
  $region31: #{badgr_forward.3} parent=0 // pred_check_branch
    %49 = sbr.rel (0) target = $region33
  $region32: #{badgr_forward.3} parent=0 // pred_region
    _
  $region33: #{badgr_forward.3} parent=0 // pred_fallthru
    _
  // Predicated region
  $region34: #{badgr_forward.3} parent=0 // pred_check
    _
  $region35: #{badgr_forward.3} parent=0 // pred_check_branch
    %51 = sbr.rel (0) target = $region37
  $region36: #{badgr_forward.3} parent=0 // pred_region
    _
  $region37: #{badgr_forward.3} parent=0 // pred_fallthru
    _
  // Predicated region
  $region38: #{badgr_forward.3} parent=0 // pred_check
    _
  $region39: #{badgr_forward.3} parent=0 // pred_check_branch
    %53 = sbr.rel (0) target = $region41
  $region40: #{badgr_forward.3} parent=0 // pred_region
    _
  $region41: #{badgr_forward.3} parent=0 // pred_fallthru
    _
  // Predicated region
  $region42: #{badgr_forward.3} parent=0 // pred_check
    _
  $region43: #{badgr_forward.3} parent=0 // pred_check_branch
    %55 = sbr.rel (0) target = $region45
  $region44: #{badgr_forward.3} parent=0 // pred_region
    _
  $region45: #{badgr_forward.3} parent=0 // pred_fallthru
    _
  // Predicated region
  $region46: #{badgr_forward.3} parent=0 // pred_check
    _
  $region47: #{badgr_forward.3} parent=0 // pred_check_branch
    %57 = sbr.rel (0) target = $region49
  $region48: #{badgr_forward.3} parent=0 // pred_region
    _
  $region49: #{badgr_forward.3} parent=0 // pred_fallthru
    _
  // Predicated region
  $region50: #{badgr_forward.3} parent=0 // pred_check
    _
  $region51: #{badgr_forward.3} parent=0 // pred_check_branch
    %59 = sbr.rel (0) target = $region53
  $region52: #{badgr_forward.3} parent=0 // pred_region
    _
  $region53: #{badgr_forward.3} parent=0 // pred_fallthru
    _
  // Predicated region
  $region54: #{badgr_forward.3} parent=0 // pred_check
    _
  $region55: #{badgr_forward.3} parent=0 // pred_check_branch
    %61 = sbr.rel (0) target = $region57
  $region56: #{badgr_forward.3} parent=0 // pred_region
    _
  $region57: #{badgr_forward.3} parent=0 // pred_fallthru
    _
  // Predicated region
  $region58: #{badgr_forward.3} parent=0 // pred_check
    _
  $region59: #{badgr_forward.3} parent=0 // pred_check_branch
    %63 = sbr.rel (0) target = $region61
  $region60: #{badgr_forward.3} parent=0 // pred_region
    _
  $region61: #{badgr_forward.3} parent=0 // pred_fallthru
    _
  // Predicated region
  $region62: #{badgr_forward.3} parent=0 // pred_check
    _
  $region63: #{badgr_forward.3} parent=0 // pred_check_branch
    %65 = sbr.rel (0) target = $region65
  $region64: #{badgr_forward.3} parent=0 // pred_region
    _
  $region65: #{badgr_forward.3} parent=0 // pred_fallthru
    _
  // Predicated region
  $region66: #{badgr_forward.3} parent=0 // pred_check
    _
  $region67: #{badgr_forward.3} parent=0 // pred_check_branch
    %67 = sbr.rel (0) target = $region69
  $region68: #{badgr_forward.3} parent=0 // pred_region
    _
  $region69: #{badgr_forward.3} parent=0 // pred_fallthru
    _
  // Predicated region
  $region70: #{badgr_forward.3} parent=0 // pred_check
    _
  $region71: #{badgr_forward.3} parent=0 // pred_check_branch
    %69 = sbr.rel (0) target = $region73
  $region72: #{badgr_forward.3} parent=0 // pred_region
    _
  $region73: #{badgr_forward.3} parent=0 // pred_fallthru
    _
  // Predicated region
  $region74: #{badgr_forward.3} parent=0 // pred_check
    _
  $region75: #{badgr_forward.3} parent=0 // pred_check_branch
    %71 = sbr.rel (0) target = $region77
  $region76: #{badgr_forward.3} parent=0 // pred_region
    _
  $region77: #{badgr_forward.3} parent=0 // pred_fallthru
    _
  // Predicated region
  $region78: #{badgr_forward.3} parent=0 // pred_check
    _
  $region79: #{badgr_forward.3} parent=0 // pred_check_branch
    %73 = sbr.rel (0) target = $region81
  $region80: #{badgr_forward.3} parent=0 // pred_region
    _
  $region81: #{badgr_forward.3} parent=0 // pred_fallthru
    _
  // Predicated region
  $region82: #{badgr_forward.3} parent=0 // pred_check
    _
  $region83: #{badgr_forward.3} parent=0 // pred_check_branch
    %75 = sbr.rel (0) target = $region85
  $region84: #{badgr_forward.3} parent=0 // pred_region
    _
  $region85: #{badgr_forward.3} parent=0 // pred_fallthru
    _
  // Predicated region
  $region86: #{badgr_forward.3} parent=0 // pred_check
    _
  $region87: #{badgr_forward.3} parent=0 // pred_check_branch
    %77 = sbr.rel (0) target = $region89
  $region88: #{badgr_forward.3} parent=0 // pred_region
    _
  $region89: #{badgr_forward.3} parent=0 // pred_fallthru
    _
  // Predicated region
  $region90: #{badgr_forward.3} parent=0 // pred_check
    _
  $region91: #{badgr_forward.3} parent=0 // pred_check_branch
    %79 = sbr.rel (0) target = $region93
  $region92: #{badgr_forward.3} parent=0 // pred_region
    _
  $region93: #{badgr_forward.3} parent=0 // pred_fallthru
    _
  // Predicated region
  $region94: #{badgr_forward.3} parent=0 // pred_check
    _
  $region95: #{badgr_forward.3} parent=0 // pred_check_branch
    %81 = sbr.rel (0) target = $region97
  $region96: #{badgr_forward.3} parent=0 // pred_region
    _
  $region97: #{badgr_forward.3} parent=0 // pred_fallthru
    _
  // Predicated region
  $region98: #{badgr_forward.3} parent=0 // pred_check
    _
  $region99: #{badgr_forward.3} parent=0 // pred_check_branch
    %83 = sbr.rel (0) target = $region101
  $region100: #{badgr_forward.3} parent=0 // pred_region
    _
  $region101: #{badgr_forward.3} parent=0 // pred_fallthru
    _
  %v84 = vld [vmem:[%s0] sm:$0xff]
  %v85 = vld [vmem:[%s2] sm:$0xff]
  %v86 = vld [vmem:[%s2 + $0x8] sm:$0xff]
  %v87 = vld [vmem:[%s2 + $0x10] sm:$0xff]
  %v88 = vld [vmem:[%s2 + $0x18] sm:$0xff]
  %v89 = vld [vmem:[%s2 + $0x20] sm:$0xff]
  %v90 = vld [vmem:[%s2 + $0x28] sm:$0xff]
  %v91 = vld [vmem:[%s2 + $0x30] sm:$0xff]
  %v92 = vld [vmem:[%s2 + $0x38] sm:$0xff]
  %v93 = vld [vmem:[%s2 + $0x40] sm:$0xff]
  %v94 = vld [vmem:[%s2 + $0x48] sm:$0xff]
  %v95 = vld [vmem:[%s2 + $0x50] sm:$0xff]
  %v96 = vld [vmem:[%s2 + $0x58] sm:$0xff]
  %v97 = vld [vmem:[%s2 + $0x60] sm:$0xff]
  %v98 = vld [vmem:[%s2 + $0x68] sm:$0xff]
  %v99 = vld [vmem:[%s2 + $0x70] sm:$0xff]
  %v100 = vld [vmem:[%s2 + $0x78] sm:$0xff]
  %v101 = vld [vmem:[%s2 + $0x80] sm:$0xff]
  %v102 = vld [vmem:[%s2 + $0x88] sm:$0xff]
  %v103 = vld [vmem:[%s2 + $0x90] sm:$0xff]
  %v104 = vld [vmem:[%s2 + $0x98] sm:$0xff]
  %v105 = vld [vmem:[%s2 + $0xa0] sm:$0xff]
  %v106 = vld [vmem:[%s2 + $0xa8] sm:$0xff]
  %v107 = vld [vmem:[%s2 + $0xb0] sm:$0xff]
  %v108 = vld [vmem:[%s2 + $0xb8] sm:$0xff]
  %v109 = vld [vmem:[%s2 + $0xc0] sm:$0xff]
  %v110 = vld [vmem:[%s2 + $0xc8] sm:$0xff]
  %v111 = vld [vmem:[%s2 + $0xd0] sm:$0xff]
  %v112 = vld [vmem:[%s2 + $0xd8] sm:$0xff]
  %v113 = vld [vmem:[%s2 + $0xe0] sm:$0xff]
  %v114 = vld [vmem:[%s2 + $0xe8] sm:$0xff]
  %v115 = vld [vmem:[%s2 + $0xf0] sm:$0xff]
  %v116 = vld [vmem:[%s2 + $0xf8] sm:$0xff]
  %v117 = vld [vmem:[%s2 + $0x100] sm:$0xff]
  %v118 = vld [vmem:[%s2 + $0x108] sm:$0xff]
  %v119 = vld [vmem:[%s2 + $0x110] sm:$0xff]
  %v120 = vld [vmem:[%s2 + $0x118] sm:$0xff]
  %v121 = vld [vmem:[%s2 + $0x120] sm:$0xff]
  %v122 = vld [vmem:[%s2 + $0x128] sm:$0xff]
  %v123 = vld [vmem:[%s2 + $0x130] sm:$0xff]
  %v124 = vld [vmem:[%s2 + $0x138] sm:$0xff]
  %v125 = vld [vmem:[%s2 + $0x140] sm:$0xff]
  %v126 = vld [vmem:[%s2 + $0x148] sm:$0xff]
  %v127 = vld [vmem:[%s2 + $0x150] sm:$0xff]
  %v128 = vld [vmem:[%s2 + $0x158] sm:$0xff]
  %v129 = vld [vmem:[%s2 + $0x160] sm:$0xff]
  %v130 = vld [vmem:[%s2 + $0x168] sm:$0xff]
  %v131 = vld [vmem:[%s2 + $0x170] sm:$0xff]
  %v132 = vld [vmem:[%s2 + $0x178] sm:$0xff]
  %v133 = vld [vmem:[%s2 + $0x180] sm:$0xff]
  %v134 = vld [vmem:[%s2 + $0x188] sm:$0xff]
  %v135 = vld [vmem:[%s2 + $0x190] sm:$0xff]
  %v136 = vld [vmem:[%s2 + $0x198] sm:$0xff]
  %v137 = vld [vmem:[%s2 + $0x1a0] sm:$0xff]
  %v138 = vld [vmem:[%s2 + $0x1a8] sm:$0xff]
  %v139 = vld [vmem:[%s2 + $0x1b0] sm:$0xff]
  %v140 = vld [vmem:[%s2 + $0x1b8] sm:$0xff]
  %v141 = vld [vmem:[%s2 + $0x1c0] sm:$0xff]
  %v142 = vld [vmem:[%s2 + $0x1c8] sm:$0xff]
  %v143 = vld [vmem:[%s2 + $0x1d0] sm:$0xff]
  %v144 = vld [vmem:[%s2 + $0x1d8] sm:$0xff]
  %v145 = vld [vmem:[%s2 + $0x1e0] sm:$0xff]
  %v146 = vld [vmem:[%s2 + $0x1e8] sm:$0xff]
  %v147 = vld [vmem:[%s2 + $0x1f0] sm:$0xff]
  %v148 = vld [vmem:[%s2 + $0x1f8] sm:$0xff]
  %v149 = vld [vmem:[%s2 + $0x200] sm:$0xff]
  %v150 = vld [vmem:[%s2 + $0x208] sm:$0xff]
  %v151 = vld [vmem:[%s2 + $0x210] sm:$0xff]
  %v152 = vld [vmem:[%s2 + $0x218] sm:$0xff]
  %v153 = vld [vmem:[%s2 + $0x220] sm:$0xff]
  %v154 = vld [vmem:[%s2 + $0x228] sm:$0xff]
  %v155 = vld [vmem:[%s2 + $0x230] sm:$0xff]
  %v156 = vld [vmem:[%s2 + $0x238] sm:$0xff]
  %v157 = vld [vmem:[%s2 + $0x240] sm:$0xff]
  %v158 = vld [vmem:[%s2 + $0x248] sm:$0xff]
  %v159 = vld [vmem:[%s2 + $0x250] sm:$0xff]
  %v160 = vld [vmem:[%s2 + $0x258] sm:$0xff]
  %v161 = vld [vmem:[%s2 + $0x260] sm:$0xff]
  %v162 = vld [vmem:[%s2 + $0x268] sm:$0xff]
  %v163 = vld [vmem:[%s2 + $0x270] sm:$0xff]
  %v164 = vld [vmem:[%s2 + $0x278] sm:$0xff]
  %v165 = vld [vmem:[%s2 + $0x280] sm:$0xff]
  %v166 = vld [vmem:[%s2 + $0x288] sm:$0xff]
  %v167 = vld [vmem:[%s2 + $0x290] sm:$0xff]
  %v168 = vld [vmem:[%s2 + $0x298] sm:$0xff]
  %v169 = vld [vmem:[%s2 + $0x2a0] sm:$0xff]
  %v170 = vld [vmem:[%s2 + $0x2a8] sm:$0xff]
  %v171 = vld [vmem:[%s2 + $0x2b0] sm:$0xff]
  %v172 = vld [vmem:[%s2 + $0x2b8] sm:$0xff]
  %v173 = vld [vmem:[%s2 + $0x2c0] sm:$0xff]
  %v174 = vld [vmem:[%s2 + $0x2c8] sm:$0xff]
  %v175 = vld [vmem:[%s2 + $0x2d0] sm:$0xff]
  %v176 = vld [vmem:[%s2 + $0x2d8] sm:$0xff]
  %v177 = vld [vmem:[%s2 + $0x2e0] sm:$0xff]
  %v178 = vld [vmem:[%s2 + $0x2e8] sm:$0xff]
  %v179 = vld [vmem:[%s2 + $0x2f0] sm:$0xff]
  %v180 = vld [vmem:[%s2 + $0x2f8] sm:$0xff]
  %v181 = vld [vmem:[%s2 + $0x300] sm:$0xff]
  %v182 = vld [vmem:[%s2 + $0x308] sm:$0xff]
  %v183 = vld [vmem:[%s2 + $0x310] sm:$0xff]
  %v184 = vld [vmem:[%s2 + $0x318] sm:$0xff]
  %v185 = vld [vmem:[%s2 + $0x320] sm:$0xff]
  %v186 = vld [vmem:[%s2 + $0x328] sm:$0xff]
  %v187 = vld [vmem:[%s2 + $0x330] sm:$0xff]
  %v188 = vld [vmem:[%s2 + $0x338] sm:$0xff]
  %v189 = vld [vmem:[%s2 + $0x340] sm:$0xff]
  %v190 = vld [vmem:[%s2 + $0x348] sm:$0xff]
  %v191 = vld [vmem:[%s2 + $0x350] sm:$0xff]
  %v192 = vld [vmem:[%s2 + $0x358] sm:$0xff]
  %v193 = vld [vmem:[%s2 + $0x360] sm:$0xff]
  %v194 = vld [vmem:[%s2 + $0x368] sm:$0xff]
  %v195 = vld [vmem:[%s2 + $0x370] sm:$0xff]
  %v196 = vld [vmem:[%s2 + $0x378] sm:$0xff]
  %v197 = vld [vmem:[%s2 + $0x380] sm:$0xff]
  %v198 = vld [vmem:[%s2 + $0x388] sm:$0xff]
  %v199 = vld [vmem:[%s2 + $0x390] sm:$0xff]
  %v200 = vld [vmem:[%s2 + $0x398] sm:$0xff]
  %v201 = vld [vmem:[%s2 + $0x3a0] sm:$0xff]
  %v202 = vld [vmem:[%s2 + $0x3a8] sm:$0xff]
  %v203 = vld [vmem:[%s2 + $0x3b0] sm:$0xff]
  %v204 = vld [vmem:[%s2 + $0x3b8] sm:$0xff]
  %v205 = vld [vmem:[%s2 + $0x3c0] sm:$0xff]
  %v206 = vld [vmem:[%s2 + $0x3c8] sm:$0xff]
  %v207 = vld [vmem:[%s2 + $0x3d0] sm:$0xff]
  %v208 = vld [vmem:[%s2 + $0x3d8] sm:$0xff]
  %v209 = vld [vmem:[%s2 + $0x3e0] sm:$0xff]
  %v210 = vld [vmem:[%s2 + $0x3e8] sm:$0xff]
  %v211 = vld [vmem:[%s2 + $0x3f0] sm:$0xff]
  %v212 = vld [vmem:[%s2 + $0x3f8] sm:$0xff]
  %v213 = vld [vmem:[%s3] sm:$0x3]
  %v215 = vlaneseq
  %v216 = vshrl.u32 %v215, 7
  %v217 = vsub.s32 0, %v216
  %v218 = vrot.slane %v213, %v217
  %v219 = vlaneseq
  %v220 = vshrl.u32 %v219, 7
  %v221 = vsub.s32 1, %v220
  %v222 = vrot.slane %v213, %v221
  %v226 = vcombine.high %v84, %v84
  %v228 = vunpack.c.l.s4 1983009808
  %v229 = vunpack.c.0.s8 %v228
  %v230 = vlaneseq
  %v231 = vshrl.u32 %v230, 7
  %v232 = vsub.s32 %v229, %v231
  %v233 = vrot.slane %v84, %v232
  %v235 = vunpack.c.l.s4 1983009808
  %v236 = vunpack.c.0.s8 %v235
  %v237 = vlaneseq
  %v238 = vshrl.u32 %v237, 7
  %v239 = vsub.s32 %v236, %v238
  %v240 = vrot.slane %v226, %v239
  %v241 = vcombine.high %v233, %v233
  %v242 = vcombine.high %v240, %v240
  %247 = vmatprep.subr.mxu0 %v86
  %248 = vmatpush1.msra.mxu0 %v85
  %249 = vmatprep.subr.mxu0 %v88
  %250 = vmatpush1.msra.mxu0 %v87
  %251 = vmatprep.subr.mxu0 %v90
  %252 = vmatpush1.msra.mxu0 %v89
  %253 = vmatprep.subr.mxu0 %v92
  %254 = vmatpush1.msra.mxu0 %v91
  %255 = vmatprep.subr.mxu0 %v94
  %256 = vmatpush1.msra.mxu0 %v93
  %257 = vmatprep.subr.mxu0 %v96
  %258 = vmatpush1.msra.mxu0 %v95
  %259 = vmatprep.subr.mxu0 %v98
  %260 = vmatpush1.msra.mxu0 %v97
  %261 = vmatprep.subr.mxu0 %v100
  %262 = vmatpush1.msra.mxu0 %v99
  %263 = vmatprep.subr.mxu0 %v102
  %264 = vmatpush1.msra.mxu0 %v101
  %265 = vmatprep.subr.mxu0 %v104
  %266 = vmatpush1.msra.mxu0 %v103
  %267 = vmatprep.subr.mxu0 %v106
  %268 = vmatpush1.msra.mxu0 %v105
  %269 = vmatprep.subr.mxu0 %v108
  %270 = vmatpush1.msra.mxu0 %v107
  %271 = vmatprep.subr.mxu0 %v110
  %272 = vmatpush1.msra.mxu0 %v109
  %273 = vmatprep.subr.mxu0 %v112
  %274 = vmatpush1.msra.mxu0 %v111
  %275 = vmatprep.subr.mxu0 %v114
  %276 = vmatpush1.msra.mxu0 %v113
  %277 = vmatprep.subr.mxu0 %v116
  %278 = vmatpush1.msra.mxu0 %v115
  %279 = vmatprep.subr.mxu0 %v118
  %280 = vmatpush1.msra.mxu0 %v117
  %281 = vmatprep.subr.mxu0 %v120
  %282 = vmatpush1.msra.mxu0 %v119
  %283 = vmatprep.subr.mxu0 %v122
  %284 = vmatpush1.msra.mxu0 %v121
  %285 = vmatprep.subr.mxu0 %v124
  %286 = vmatpush1.msra.mxu0 %v123
  %287 = vmatprep.subr.mxu0 %v126
  %288 = vmatpush1.msra.mxu0 %v125
  %289 = vmatprep.subr.mxu0 %v128
  %290 = vmatpush1.msra.mxu0 %v127
  %291 = vmatprep.subr.mxu0 %v130
  %292 = vmatpush1.msra.mxu0 %v129
  %293 = vmatprep.subr.mxu0 %v132
  %294 = vmatpush1.msra.mxu0 %v131
  %295 = vmatprep.subr.mxu0 %v134
  %296 = vmatpush1.msra.mxu0 %v133
  %297 = vmatprep.subr.mxu0 %v136
  %298 = vmatpush1.msra.mxu0 %v135
  %299 = vmatprep.subr.mxu0 %v138
  %300 = vmatpush1.msra.mxu0 %v137
  %301 = vmatprep.subr.mxu0 %v140
  %302 = vmatpush1.msra.mxu0 %v139
  %303 = vmatprep.subr.mxu0 %v142
  %304 = vmatpush1.msra.mxu0 %v141
  %305 = vmatprep.subr.mxu0 %v144
  %306 = vmatpush1.msra.mxu0 %v143
  %307 = vmatprep.subr.mxu0 %v146
  %308 = vmatpush1.msra.mxu0 %v145
  %309 = vmatprep.subr.mxu0 %v148
  %310 = vmatpush1.msra.mxu0 %v147
  %311 = vmatprep.mubr.f32.mxu0 %v241
  %312 = vmatmul.mubr.f32.gmra.mrb[0].mxu0 %v233
  %v313 = vpop.f32.mrb[0].mxu0
  %v314 = vadd.f32 %v218, %v313
  %v315 = vpop.f32.mrb[0].mxu0
  %v316 = vadd.f32 %v222, %v315
  %317 = vdwg.mxu0
  %318 = vmatprep.subr.mxu0 %v150
  %319 = vmatpush1.msra.mxu0 %v149
  %320 = vmatprep.subr.mxu0 %v152
  %321 = vmatpush1.msra.mxu0 %v151
  %322 = vmatprep.subr.mxu0 %v154
  %323 = vmatpush1.msra.mxu0 %v153
  %324 = vmatprep.subr.mxu0 %v156
  %325 = vmatpush1.msra.mxu0 %v155
  %326 = vmatprep.subr.mxu0 %v158
  %327 = vmatpush1.msra.mxu0 %v157
  %328 = vmatprep.subr.mxu0 %v160
  %329 = vmatpush1.msra.mxu0 %v159
  %330 = vmatprep.subr.mxu0 %v162
  %331 = vmatpush1.msra.mxu0 %v161
  %332 = vmatprep.subr.mxu0 %v164
  %333 = vmatpush1.msra.mxu0 %v163
  %334 = vmatprep.subr.mxu0 %v166
  %335 = vmatpush1.msra.mxu0 %v165
  %336 = vmatprep.subr.mxu0 %v168
  %337 = vmatpush1.msra.mxu0 %v167
  %338 = vmatprep.subr.mxu0 %v170
  %339 = vmatpush1.msra.mxu0 %v169
  %340 = vmatprep.subr.mxu0 %v172
  %341 = vmatpush1.msra.mxu0 %v171
  %342 = vmatprep.subr.mxu0 %v174
  %343 = vmatpush1.msra.mxu0 %v173
  %344 = vmatprep.subr.mxu0 %v176
  %345 = vmatpush1.msra.mxu0 %v175
  %346 = vmatprep.subr.mxu0 %v178
  %347 = vmatpush1.msra.mxu0 %v177
  %348 = vmatprep.subr.mxu0 %v180
  %349 = vmatpush1.msra.mxu0 %v179
  %350 = vmatprep.subr.mxu0 %v182
  %351 = vmatpush1.msra.mxu0 %v181
  %352 = vmatprep.subr.mxu0 %v184
  %353 = vmatpush1.msra.mxu0 %v183
  %354 = vmatprep.subr.mxu0 %v186
  %355 = vmatpush1.msra.mxu0 %v185
  %356 = vmatprep.subr.mxu0 %v188
  %357 = vmatpush1.msra.mxu0 %v187
  %358 = vmatprep.subr.mxu0 %v190
  %359 = vmatpush1.msra.mxu0 %v189
  %360 = vmatprep.subr.mxu0 %v192
  %361 = vmatpush1.msra.mxu0 %v191
  %362 = vmatprep.subr.mxu0 %v194
  %363 = vmatpush1.msra.mxu0 %v193
  %364 = vmatprep.subr.mxu0 %v196
  %365 = vmatpush1.msra.mxu0 %v195
  %366 = vmatprep.subr.mxu0 %v198
  %367 = vmatpush1.msra.mxu0 %v197
  %368 = vmatprep.subr.mxu0 %v200
  %369 = vmatpush1.msra.mxu0 %v199
  %370 = vmatprep.subr.mxu0 %v202
  %371 = vmatpush1.msra.mxu0 %v201
  %372 = vmatprep.subr.mxu0 %v204
  %373 = vmatpush1.msra.mxu0 %v203
  %374 = vmatprep.subr.mxu0 %v206
  %375 = vmatpush1.msra.mxu0 %v205
  %376 = vmatprep.subr.mxu0 %v208
  %377 = vmatpush1.msra.mxu0 %v207
  %378 = vmatprep.subr.mxu0 %v210
  %379 = vmatpush1.msra.mxu0 %v209
  %380 = vmatprep.subr.mxu0 %v212
  %381 = vmatpush1.msra.mxu0 %v211
  %382 = vmatprep.mubr.f32.mxu0 %v242
  %383 = vmatmul.mubr.f32.gmra.mrb[0].mxu0 %v240
  %v384 = vpop.f32.mrb[0].mxu0
  %v385 = vadd.f32 %v314, %v384
  %v386 = vpop.f32.mrb[0].mxu0
  %v387 = vadd.f32 %v316, %v386
  %388 = vdwg.mxu0
  %v389 = vmax.f32 %v385, 0.0
  %v390 = vmax.f32 %v387, 0.0
  %v391 = vld [vmem:[%s4] sm:$0xff]
  %v392 = vld [vmem:[%s4 + $0x8] sm:$0xff]
  %v393 = vld [vmem:[%s4 + $0x10] sm:$0xff]
  %v394 = vld [vmem:[%s4 + $0x18] sm:$0xff]
  %v395 = vld [vmem:[%s4 + $0x20] sm:$0xff]
  %v396 = vld [vmem:[%s4 + $0x28] sm:$0xff]
  %v397 = vld [vmem:[%s4 + $0x30] sm:$0xff]
  %v398 = vld [vmem:[%s4 + $0x38] sm:$0xff]
  %v399 = vld [vmem:[%s4 + $0x40] sm:$0xff]
  %v400 = vld [vmem:[%s4 + $0x48] sm:$0xff]
  %v401 = vld [vmem:[%s4 + $0x50] sm:$0xff]
  %v402 = vld [vmem:[%s4 + $0x58] sm:$0xff]
  %v403 = vld [vmem:[%s4 + $0x60] sm:$0xff]
  %v404 = vld [vmem:[%s4 + $0x68] sm:$0xff]
  %v405 = vld [vmem:[%s4 + $0x70] sm:$0xff]
  %v406 = vld [vmem:[%s4 + $0x78] sm:$0xff]
  %v407 = vld [vmem:[%s4 + $0x80] sm:$0xff]
  %v408 = vld [vmem:[%s4 + $0x88] sm:$0xff]
  %v409 = vld [vmem:[%s4 + $0x90] sm:$0xff]
  %v410 = vld [vmem:[%s4 + $0x98] sm:$0xff]
  %v411 = vld [vmem:[%s4 + $0xa0] sm:$0xff]
  %v412 = vld [vmem:[%s4 + $0xa8] sm:$0xff]
  %v413 = vld [vmem:[%s4 + $0xb0] sm:$0xff]
  %v414 = vld [vmem:[%s4 + $0xb8] sm:$0xff]
  %v415 = vld [vmem:[%s4 + $0xc0] sm:$0xff]
  %v416 = vld [vmem:[%s4 + $0xc8] sm:$0xff]
  %v417 = vld [vmem:[%s4 + $0xd0] sm:$0xff]
  %v418 = vld [vmem:[%s4 + $0xd8] sm:$0xff]
  %v419 = vld [vmem:[%s4 + $0xe0] sm:$0xff]
  %v420 = vld [vmem:[%s4 + $0xe8] sm:$0xff]
  %v421 = vld [vmem:[%s4 + $0xf0] sm:$0xff]
  %v422 = vld [vmem:[%s4 + $0xf8] sm:$0xff]
  %v423 = vld [vmem:[%s4 + $0x100] sm:$0xff]
  %v424 = vld [vmem:[%s4 + $0x108] sm:$0xff]
  %v425 = vld [vmem:[%s4 + $0x110] sm:$0xff]
  %v426 = vld [vmem:[%s4 + $0x118] sm:$0xff]
  %v427 = vld [vmem:[%s4 + $0x120] sm:$0xff]
  %v428 = vld [vmem:[%s4 + $0x128] sm:$0xff]
  %v429 = vld [vmem:[%s4 + $0x130] sm:$0xff]
  %v430 = vld [vmem:[%s4 + $0x138] sm:$0xff]
  %v431 = vld [vmem:[%s4 + $0x140] sm:$0xff]
  %v432 = vld [vmem:[%s4 + $0x148] sm:$0xff]
  %v433 = vld [vmem:[%s4 + $0x150] sm:$0xff]
  %v434 = vld [vmem:[%s4 + $0x158] sm:$0xff]
  %v435 = vld [vmem:[%s4 + $0x160] sm:$0xff]
  %v436 = vld [vmem:[%s4 + $0x168] sm:$0xff]
  %v437 = vld [vmem:[%s4 + $0x170] sm:$0xff]
  %v438 = vld [vmem:[%s4 + $0x178] sm:$0xff]
  %v439 = vld [vmem:[%s4 + $0x180] sm:$0xff]
  %v440 = vld [vmem:[%s4 + $0x188] sm:$0xff]
  %v441 = vld [vmem:[%s4 + $0x190] sm:$0xff]
  %v442 = vld [vmem:[%s4 + $0x198] sm:$0xff]
  %v443 = vld [vmem:[%s4 + $0x1a0] sm:$0xff]
  %v444 = vld [vmem:[%s4 + $0x1a8] sm:$0xff]
  %v445 = vld [vmem:[%s4 + $0x1b0] sm:$0xff]
  %v446 = vld [vmem:[%s4 + $0x1b8] sm:$0xff]
  %v447 = vld [vmem:[%s4 + $0x1c0] sm:$0xff]
  %v448 = vld [vmem:[%s4 + $0x1c8] sm:$0xff]
  %v449 = vld [vmem:[%s4 + $0x1d0] sm:$0xff]
  %v450 = vld [vmem:[%s4 + $0x1d8] sm:$0xff]
  %v451 = vld [vmem:[%s4 + $0x1e0] sm:$0xff]
  %v452 = vld [vmem:[%s4 + $0x1e8] sm:$0xff]
  %v453 = vld [vmem:[%s4 + $0x1f0] sm:$0xff]
  %v454 = vld [vmem:[%s4 + $0x1f8] sm:$0xff]
  %v455 = vld [vmem:[%s5] sm:$0x3]
  %v457 = vlaneseq
  %v458 = vshrl.u32 %v457, 7
  %v459 = vsub.s32 0, %v458
  %v460 = vrot.slane %v455, %v459
  %v461 = vlaneseq
  %v462 = vshrl.u32 %v461, 7
  %v463 = vsub.s32 1, %v462
  %v464 = vrot.slane %v455, %v463
  %467 = vmatprep.subr.mxu0 %v392
  %468 = vmatpush1.msra.mxu0 %v391
  %469 = vmatprep.subr.mxu0 %v394
  %470 = vmatpush1.msra.mxu0 %v393
  %471 = vmatprep.subr.mxu0 %v396
  %472 = vmatpush1.msra.mxu0 %v395
  %473 = vmatprep.subr.mxu0 %v398
  %474 = vmatpush1.msra.mxu0 %v397
  %475 = vmatprep.subr.mxu0 %v400
  %476 = vmatpush1.msra.mxu0 %v399
  %477 = vmatprep.subr.mxu0 %v402
  %478 = vmatpush1.msra.mxu0 %v401
  %479 = vmatprep.subr.mxu0 %v404
  %480 = vmatpush1.msra.mxu0 %v403
  %481 = vmatprep.subr.mxu0 %v406
  %482 = vmatpush1.msra.mxu0 %v405
  %483 = vmatprep.subr.mxu0 %v408
  %484 = vmatpush1.msra.mxu0 %v407
  %485 = vmatprep.subr.mxu0 %v410
  %486 = vmatpush1.msra.mxu0 %v409
  %487 = vmatprep.subr.mxu0 %v412
  %488 = vmatpush1.msra.mxu0 %v411
  %489 = vmatprep.subr.mxu0 %v414
  %490 = vmatpush1.msra.mxu0 %v413
  %491 = vmatprep.subr.mxu0 %v416
  %492 = vmatpush1.msra.mxu0 %v415
  %493 = vmatprep.subr.mxu0 %v418
  %494 = vmatpush1.msra.mxu0 %v417
  %495 = vmatprep.subr.mxu0 %v420
  %496 = vmatpush1.msra.mxu0 %v419
  %497 = vmatprep.subr.mxu0 %v422
  %498 = vmatpush1.msra.mxu0 %v421
  %499 = vmatprep.subr.mxu0 %v424
  %500 = vmatpush1.msra.mxu0 %v423
  %501 = vmatprep.subr.mxu0 %v426
  %502 = vmatpush1.msra.mxu0 %v425
  %503 = vmatprep.subr.mxu0 %v428
  %504 = vmatpush1.msra.mxu0 %v427
  %505 = vmatprep.subr.mxu0 %v430
  %506 = vmatpush1.msra.mxu0 %v429
  %507 = vmatprep.subr.mxu0 %v432
  %508 = vmatpush1.msra.mxu0 %v431
  %509 = vmatprep.subr.mxu0 %v434
  %510 = vmatpush1.msra.mxu0 %v433
  %511 = vmatprep.subr.mxu0 %v436
  %512 = vmatpush1.msra.mxu0 %v435
  %513 = vmatprep.subr.mxu0 %v438
  %514 = vmatpush1.msra.mxu0 %v437
  %515 = vmatprep.subr.mxu0 %v440
  %516 = vmatpush1.msra.mxu0 %v439
  %517 = vmatprep.subr.mxu0 %v442
  %518 = vmatpush1.msra.mxu0 %v441
  %519 = vmatprep.subr.mxu0 %v444
  %520 = vmatpush1.msra.mxu0 %v443
  %521 = vmatprep.subr.mxu0 %v446
  %522 = vmatpush1.msra.mxu0 %v445
  %523 = vmatprep.subr.mxu0 %v448
  %524 = vmatpush1.msra.mxu0 %v447
  %525 = vmatprep.subr.mxu0 %v450
  %526 = vmatpush1.msra.mxu0 %v449
  %527 = vmatprep.subr.mxu0 %v452
  %528 = vmatpush1.msra.mxu0 %v451
  %529 = vmatprep.subr.mxu0 %v454
  %530 = vmatpush1.msra.mxu0 %v453
  %531 = vmatprep.mubr.f32.mxu0 %v390
  %532 = vmatmul.mubr.f32.gmra.mrb[0].mxu0 %v389
  %v533 = vpop.f32.mrb[0].mxu0
  %v534 = vadd.f32 %v460, %v533
  %v535 = vpop.f32.mrb[0].mxu0
  %v536 = vadd.f32 %v464, %v535
  %537 = vdwg.mxu0
  %v538 = vmax.f32 %v534, 0.0
  %v539 = vmax.f32 %v536, 0.0
  %v540 = vld [vmem:[%s6] sm:$0xff]
  %v541 = vld [vmem:[%s6 + $0x8] sm:$0xff]
  %v542 = vld [vmem:[%s6 + $0x10] sm:$0xff]
  %v543 = vld [vmem:[%s6 + $0x18] sm:$0xff]
  %v544 = vld [vmem:[%s6 + $0x20] sm:$0xff]
  %v545 = vld [vmem:[%s6 + $0x28] sm:$0xff]
  %v546 = vld [vmem:[%s6 + $0x30] sm:$0xff]
  %v547 = vld [vmem:[%s6 + $0x38] sm:$0xff]
  %v548 = vld [vmem:[%s6 + $0x40] sm:$0xff]
  %v549 = vld [vmem:[%s6 + $0x48] sm:$0xff]
  %v550 = vld [vmem:[%s6 + $0x50] sm:$0xff]
  %v551 = vld [vmem:[%s6 + $0x58] sm:$0xff]
  %v552 = vld [vmem:[%s6 + $0x60] sm:$0xff]
  %v553 = vld [vmem:[%s6 + $0x68] sm:$0xff]
  %v554 = vld [vmem:[%s6 + $0x70] sm:$0xff]
  %v555 = vld [vmem:[%s6 + $0x78] sm:$0xff]
  %v556 = vld [vmem:[%s6 + $0x80] sm:$0xff]
  %v557 = vld [vmem:[%s6 + $0x88] sm:$0xff]
  %v558 = vld [vmem:[%s6 + $0x90] sm:$0xff]
  %v559 = vld [vmem:[%s6 + $0x98] sm:$0xff]
  %v560 = vld [vmem:[%s6 + $0xa0] sm:$0xff]
  %v561 = vld [vmem:[%s6 + $0xa8] sm:$0xff]
  %v562 = vld [vmem:[%s6 + $0xb0] sm:$0xff]
  %v563 = vld [vmem:[%s6 + $0xb8] sm:$0xff]
  %v564 = vld [vmem:[%s6 + $0xc0] sm:$0xff]
  %v565 = vld [vmem:[%s6 + $0xc8] sm:$0xff]
  %v566 = vld [vmem:[%s6 + $0xd0] sm:$0xff]
  %v567 = vld [vmem:[%s6 + $0xd8] sm:$0xff]
  %v568 = vld [vmem:[%s6 + $0xe0] sm:$0xff]
  %v569 = vld [vmem:[%s6 + $0xe8] sm:$0xff]
  %v570 = vld [vmem:[%s6 + $0xf0] sm:$0xff]
  %v571 = vld [vmem:[%s6 + $0xf8] sm:$0xff]
  %v572 = vld [vmem:[%s7] sm:$0x1]
  %v574 = vlaneseq
  %v575 = vshrl.u32 %v574, 7
  %v576 = vsub.s32 0, %v575
  %v577 = vrot.slane %v572, %v576
  %579 = vmatprep.subr.mxu0 0.0
  %580 = vmatpush1.msra.mxu0 %v540
  %581 = vmatprep.subr.mxu0 0.0
  %582 = vmatpush1.msra.mxu0 %v541
  %583 = vmatprep.subr.mxu0 0.0
  %584 = vmatpush1.msra.mxu0 %v542
  %585 = vmatprep.subr.mxu0 0.0
  %586 = vmatpush1.msra.mxu0 %v543
  %587 = vmatprep.subr.mxu0 0.0
  %588 = vmatpush1.msra.mxu0 %v544
  %589 = vmatprep.subr.mxu0 0.0
  %590 = vmatpush1.msra.mxu0 %v545
  %591 = vmatprep.subr.mxu0 0.0
  %592 = vmatpush1.msra.mxu0 %v546
  %593 = vmatprep.subr.mxu0 0.0
  %594 = vmatpush1.msra.mxu0 %v547
  %595 = vmatprep.subr.mxu0 0.0
  %596 = vmatpush1.msra.mxu0 %v548
  %597 = vmatprep.subr.mxu0 0.0
  %598 = vmatpush1.msra.mxu0 %v549
  %599 = vmatprep.subr.mxu0 0.0
  %600 = vmatpush1.msra.mxu0 %v550
  %601 = vmatprep.subr.mxu0 0.0
  %602 = vmatpush1.msra.mxu0 %v551
  %603 = vmatprep.subr.mxu0 0.0
  %604 = vmatpush1.msra.mxu0 %v552
  %605 = vmatprep.subr.mxu0 0.0
  %606 = vmatpush1.msra.mxu0 %v553
  %607 = vmatprep.subr.mxu0 0.0
  %608 = vmatpush1.msra.mxu0 %v554
  %609 = vmatprep.subr.mxu0 0.0
  %610 = vmatpush1.msra.mxu0 %v555
  %611 = vmatprep.subr.mxu0 0.0
  %612 = vmatpush1.msra.mxu0 %v556
  %613 = vmatprep.subr.mxu0 0.0
  %614 = vmatpush1.msra.mxu0 %v557
  %615 = vmatprep.subr.mxu0 0.0
  %616 = vmatpush1.msra.mxu0 %v558
  %617 = vmatprep.subr.mxu0 0.0
  %618 = vmatpush1.msra.mxu0 %v559
  %619 = vmatprep.subr.mxu0 0.0
  %620 = vmatpush1.msra.mxu0 %v560
  %621 = vmatprep.subr.mxu0 0.0
  %622 = vmatpush1.msra.mxu0 %v561
  %623 = vmatprep.subr.mxu0 0.0
  %624 = vmatpush1.msra.mxu0 %v562
  %625 = vmatprep.subr.mxu0 0.0
  %626 = vmatpush1.msra.mxu0 %v563
  %627 = vmatprep.subr.mxu0 0.0
  %628 = vmatpush1.msra.mxu0 %v564
  %629 = vmatprep.subr.mxu0 0.0
  %630 = vmatpush1.msra.mxu0 %v565
  %631 = vmatprep.subr.mxu0 0.0
  %632 = vmatpush1.msra.mxu0 %v566
  %633 = vmatprep.subr.mxu0 0.0
  %634 = vmatpush1.msra.mxu0 %v567
  %635 = vmatprep.subr.mxu0 0.0
  %636 = vmatpush1.msra.mxu0 %v568
  %637 = vmatprep.subr.mxu0 0.0
  %638 = vmatpush1.msra.mxu0 %v569
  %639 = vmatprep.subr.mxu0 0.0
  %640 = vmatpush1.msra.mxu0 %v570
  %641 = vmatprep.subr.mxu0 0.0
  %642 = vmatpush1.msra.mxu0 %v571
  %643 = vmatprep.mubr.f32.mxu0 %v539
  %644 = vmatmul.mubr.f32.gmra.mrb[0].mxu0 %v538
  %v645 = vpop.f32.mrb[0].mxu0
  %v646 = vadd.f32 %v577, %v645
  %v647 = vpop.f32.mrb[0].mxu0
  %648 = vdwg.mxu0
  %v649 = vmax.f32 %v646, 0.0
  %v650 = vld [vmem:[%s8] sm:$0xff]
  %v651 = vld [vmem:[%s8 + $0x8] sm:$0xff]
  %v652 = vld [vmem:[%s8 + $0x10] sm:$0xff]
  %v653 = vld [vmem:[%s8 + $0x18] sm:$0xff]
  %v654 = vld [vmem:[%s8 + $0x20] sm:$0xff]
  %v655 = vld [vmem:[%s8 + $0x28] sm:$0xff]
  %v656 = vld [vmem:[%s8 + $0x30] sm:$0xff]
  %v657 = vld [vmem:[%s8 + $0x38] sm:$0xff]
  %v658 = vld [vmem:[%s8 + $0x40] sm:$0xff]
  %v659 = vld [vmem:[%s8 + $0x48] sm:$0xff]
  %v660 = vld [vmem:[%s8 + $0x50] sm:$0xff]
  %v661 = vld [vmem:[%s8 + $0x58] sm:$0xff]
  %v662 = vld [vmem:[%s8 + $0x60] sm:$0xff]
  %v663 = vld [vmem:[%s8 + $0x68] sm:$0xff]
  %v664 = vld [vmem:[%s8 + $0x70] sm:$0xff]
  %v665 = vld [vmem:[%s8 + $0x78] sm:$0xff]
  %v666 = vld [vmem:[%s9] sm:$0x1]
  %v668 = vlaneseq
  %v669 = vshrl.u32 %v668, 7
  %v670 = vsub.s32 0, %v669
  %v671 = vrot.slane %v666, %v670
  %673 = vmatprep.subr.mxu0 0.0
  %674 = vmatpush1.msra.mxu0 %v650
  %675 = vmatprep.subr.mxu0 0.0
  %676 = vmatpush1.msra.mxu0 %v651
  %677 = vmatprep.subr.mxu0 0.0
  %678 = vmatpush1.msra.mxu0 %v652
  %679 = vmatprep.subr.mxu0 0.0
  %680 = vmatpush1.msra.mxu0 %v653
  %681 = vmatprep.subr.mxu0 0.0
  %682 = vmatpush1.msra.mxu0 %v654
  %683 = vmatprep.subr.mxu0 0.0
  %684 = vmatpush1.msra.mxu0 %v655
  %685 = vmatprep.subr.mxu0 0.0
  %686 = vmatpush1.msra.mxu0 %v656
  %687 = vmatprep.subr.mxu0 0.0
  %688 = vmatpush1.msra.mxu0 %v657
  %689 = vmatprep.subr.mxu0 0.0
  %690 = vmatpush1.msra.mxu0 %v658
  %691 = vmatprep.subr.mxu0 0.0
  %692 = vmatpush1.msra.mxu0 %v659
  %693 = vmatprep.subr.mxu0 0.0
  %694 = vmatpush1.msra.mxu0 %v660
  %695 = vmatprep.subr.mxu0 0.0
  %696 = vmatpush1.msra.mxu0 %v661
  %697 = vmatprep.subr.mxu0 0.0
  %698 = vmatpush1.msra.mxu0 %v662
  %699 = vmatprep.subr.mxu0 0.0
  %700 = vmatpush1.msra.mxu0 %v663
  %701 = vmatprep.subr.mxu0 0.0
  %702 = vmatpush1.msra.mxu0 %v664
  %703 = vmatprep.subr.mxu0 0.0
  %704 = vmatpush1.msra.mxu0 %v665
  %705 = vmatprep.subr.mxu0 0.0
  %706 = vmatpush1.msra.mxu0 0.0
  %707 = vmatprep.subr.mxu0 0.0
  %708 = vmatpush1.msra.mxu0 0.0
  %709 = vmatprep.subr.mxu0 0.0
  %710 = vmatpush1.msra.mxu0 0.0
  %711 = vmatprep.subr.mxu0 0.0
  %712 = vmatpush1.msra.mxu0 0.0
  %713 = vmatprep.subr.mxu0 0.0
  %714 = vmatpush1.msra.mxu0 0.0
  %715 = vmatprep.subr.mxu0 0.0
  %716 = vmatpush1.msra.mxu0 0.0
  %717 = vmatprep.subr.mxu0 0.0
  %718 = vmatpush1.msra.mxu0 0.0
  %719 = vmatprep.subr.mxu0 0.0
  %720 = vmatpush1.msra.mxu0 0.0
  %721 = vmatprep.subr.mxu0 0.0
  %722 = vmatpush1.msra.mxu0 0.0
  %723 = vmatprep.subr.mxu0 0.0
  %724 = vmatpush1.msra.mxu0 0.0
  %725 = vmatprep.subr.mxu0 0.0
  %726 = vmatpush1.msra.mxu0 0.0
  %727 = vmatprep.subr.mxu0 0.0
  %728 = vmatpush1.msra.mxu0 0.0
  %729 = vmatprep.subr.mxu0 0.0
  %730 = vmatpush1.msra.mxu0 0.0
  %731 = vmatprep.subr.mxu0 0.0
  %732 = vmatpush1.msra.mxu0 0.0
  %733 = vmatprep.subr.mxu0 0.0
  %734 = vmatpush1.msra.mxu0 0.0
  %735 = vmatprep.subr.mxu0 0.0
  %736 = vmatpush1.msra.mxu0 0.0
  %737 = vmatprep.mubr.f32.mxu0 0.0
  %738 = vmatmul.mubr.f32.gmra.mrb[0].mxu0 %v649
  %v739 = vpop.f32.mrb[0].mxu0
  %v740 = vadd.f32 %v671, %v739
  %v741 = vpop.f32.mrb[0].mxu0
  %742 = vdwg.mxu0
  %v743 = vld [vmem:[%s1] sm:$0xff]
  %v744 = vld [vmem:[%s1 + $0x8] sm:$0xff]
  %v745 = vld [vmem:[%s10] sm:$0x3]
  %v746 = vld [vmem:[%s11] sm:$0x1]
  %v748 = vlaneseq
  %v749 = vshrl.u32 %v748, 7
  %v750 = vsub.s32 0, %v749
  %v751 = vrot.slane %v746, %v750
  %vm753 = vcmask 15360
  %v755 = vsel %vm753, %v743, 0
  %v758 = vsel %vm753, %v744, 0
  %vm760 = vcmask 1041408
  %v762 = vsel %vm760, %v745, 0
  %764 = vmatprep.subr.mxu0 0.0
  %765 = vmatpush1.msra.mxu0 %v762
  %766 = vmatprep.subr.mxu0 0.0
  %767 = vmatpush1.msra.mxu0 0.0
  %768 = vmatprep.subr.mxu0 0.0
  %769 = vmatpush1.msra.mxu0 0.0
  %770 = vmatprep.subr.mxu0 0.0
  %771 = vmatpush1.msra.mxu0 0.0
  %772 = vmatprep.subr.mxu0 0.0
  %773 = vmatpush1.msra.mxu0 0.0
  %774 = vmatprep.subr.mxu0 0.0
  %775 = vmatpush1.msra.mxu0 0.0
  %776 = vmatprep.subr.mxu0 0.0
  %777 = vmatpush1.msra.mxu0 0.0
  %778 = vmatprep.subr.mxu0 0.0
  %779 = vmatpush1.msra.mxu0 0.0
  %780 = vmatprep.subr.mxu0 0.0
  %781 = vmatpush1.msra.mxu0 0.0
  %782 = vmatprep.subr.mxu0 0.0
  %783 = vmatpush1.msra.mxu0 0.0
  %784 = vmatprep.subr.mxu0 0.0
  %785 = vmatpush1.msra.mxu0 0.0
  %786 = vmatprep.subr.mxu0 0.0
  %787 = vmatpush1.msra.mxu0 0.0
  %788 = vmatprep.subr.mxu0 0.0
  %789 = vmatpush1.msra.mxu0 0.0
  %790 = vmatprep.subr.mxu0 0.0
  %791 = vmatpush1.msra.mxu0 0.0
  %792 = vmatprep.subr.mxu0 0.0
  %793 = vmatpush1.msra.mxu0 0.0
  %794 = vmatprep.subr.mxu0 0.0
  %795 = vmatpush1.msra.mxu0 0.0
  %796 = vmatprep.subr.mxu0 0.0
  %797 = vmatpush1.msra.mxu0 0.0
  %798 = vmatprep.subr.mxu0 0.0
  %799 = vmatpush1.msra.mxu0 0.0
  %800 = vmatprep.subr.mxu0 0.0
  %801 = vmatpush1.msra.mxu0 0.0
  %802 = vmatprep.subr.mxu0 0.0
  %803 = vmatpush1.msra.mxu0 0.0
  %804 = vmatprep.subr.mxu0 0.0
  %805 = vmatpush1.msra.mxu0 0.0
  %806 = vmatprep.subr.mxu0 0.0
  %807 = vmatpush1.msra.mxu0 0.0
  %808 = vmatprep.subr.mxu0 0.0
  %809 = vmatpush1.msra.mxu0 0.0
  %810 = vmatprep.subr.mxu0 0.0
  %811 = vmatpush1.msra.mxu0 0.0
  %812 = vmatprep.subr.mxu0 0.0
  %813 = vmatpush1.msra.mxu0 0.0
  %814 = vmatprep.subr.mxu0 0.0
  %815 = vmatpush1.msra.mxu0 0.0
  %816 = vmatprep.subr.mxu0 0.0
  %817 = vmatpush1.msra.mxu0 0.0
  %818 = vmatprep.subr.mxu0 0.0
  %819 = vmatpush1.msra.mxu0 0.0
  %820 = vmatprep.subr.mxu0 0.0
  %821 = vmatpush1.msra.mxu0 0.0
  %822 = vmatprep.subr.mxu0 0.0
  %823 = vmatpush1.msra.mxu0 0.0
  %824 = vmatprep.subr.mxu0 0.0
  %825 = vmatpush1.msra.mxu0 0.0
  %826 = vmatprep.subr.mxu0 0.0
  %827 = vmatpush1.msra.mxu0 0.0
  %828 = vmatprep.mubr.f32.mxu0 0.0
  %829 = vmatmul.mubr.f32.gmra.mrb[0].mxu0 %v755
  %v830 = vpop.f32.mrb[0].mxu0
  %v831 = vadd.f32 %v751, %v830
  %v832 = vpop.f32.mrb[0].mxu0
  %833 = vmatprep.mubr.f32.mxu0 0.0
  %834 = vmatmul.mubr.f32.gmra.mrb[0].mxu0 %v758
  %v835 = vpop.f32.mrb[0].mxu0
  %v836 = vadd.f32 %v751, %v835
  %v837 = vpop.f32.mrb[0].mxu0
  %838 = vdwg.mxu0
  %v839 = vmax.f32 %v831, 0.0
  %v840 = vmax.f32 %v836, 0.0
  %v841 = vld [vmem:[%s12] sm:$0xff]
  %v842 = vld [vmem:[%s12 + $0x8] sm:$0xff]
  %v843 = vld [vmem:[%s13] sm:$0x1]
  %v845 = vlaneseq
  %v846 = vshrl.u32 %v845, 7
  %v847 = vsub.s32 0, %v846
  %v848 = vrot.slane %v843, %v847
  %vm850 = vcmask 130048
  %v852 = vsel %vm850, %v839, 0
  %v855 = vsel %vm850, %v840, 0
  %857 = vmatprep.subr.mxu0 0.0
  %858 = vmatpush1.msra.mxu0 %v841
  %859 = vmatprep.subr.mxu0 0.0
  %860 = vmatpush1.msra.mxu0 %v842
  %861 = vmatprep.subr.mxu0 0.0
  %862 = vmatpush1.msra.mxu0 0.0
  %863 = vmatprep.subr.mxu0 0.0
  %864 = vmatpush1.msra.mxu0 0.0
  %865 = vmatprep.subr.mxu0 0.0
  %866 = vmatpush1.msra.mxu0 0.0
  %867 = vmatprep.subr.mxu0 0.0
  %868 = vmatpush1.msra.mxu0 0.0
  %869 = vmatprep.subr.mxu0 0.0
  %870 = vmatpush1.msra.mxu0 0.0
  %871 = vmatprep.subr.mxu0 0.0
  %872 = vmatpush1.msra.mxu0 0.0
  %873 = vmatprep.subr.mxu0 0.0
  %874 = vmatpush1.msra.mxu0 0.0
  %875 = vmatprep.subr.mxu0 0.0
  %876 = vmatpush1.msra.mxu0 0.0
  %877 = vmatprep.subr.mxu0 0.0
  %878 = vmatpush1.msra.mxu0 0.0
  %879 = vmatprep.subr.mxu0 0.0
  %880 = vmatpush1.msra.mxu0 0.0
  %881 = vmatprep.subr.mxu0 0.0
  %882 = vmatpush1.msra.mxu0 0.0
  %883 = vmatprep.subr.mxu0 0.0
  %884 = vmatpush1.msra.mxu0 0.0
  %885 = vmatprep.subr.mxu0 0.0
  %886 = vmatpush1.msra.mxu0 0.0
  %887 = vmatprep.subr.mxu0 0.0
  %888 = vmatpush1.msra.mxu0 0.0
  %889 = vmatprep.subr.mxu0 0.0
  %890 = vmatpush1.msra.mxu0 0.0
  %891 = vmatprep.subr.mxu0 0.0
  %892 = vmatpush1.msra.mxu0 0.0
  %893 = vmatprep.subr.mxu0 0.0
  %894 = vmatpush1.msra.mxu0 0.0
  %895 = vmatprep.subr.mxu0 0.0
  %896 = vmatpush1.msra.mxu0 0.0
  %897 = vmatprep.subr.mxu0 0.0
  %898 = vmatpush1.msra.mxu0 0.0
  %899 = vmatprep.subr.mxu0 0.0
  %900 = vmatpush1.msra.mxu0 0.0
  %901 = vmatprep.subr.mxu0 0.0
  %902 = vmatpush1.msra.mxu0 0.0
  %903 = vmatprep.subr.mxu0 0.0
  %904 = vmatpush1.msra.mxu0 0.0
  %905 = vmatprep.subr.mxu0 0.0
  %906 = vmatpush1.msra.mxu0 0.0
  %907 = vmatprep.subr.mxu0 0.0
  %908 = vmatpush1.msra.mxu0 0.0
  %909 = vmatprep.subr.mxu0 0.0
  %910 = vmatpush1.msra.mxu0 0.0
  %911 = vmatprep.subr.mxu0 0.0
  %912 = vmatpush1.msra.mxu0 0.0
  %913 = vmatprep.subr.mxu0 0.0
  %914 = vmatpush1.msra.mxu0 0.0
  %915 = vmatprep.subr.mxu0 0.0
  %916 = vmatpush1.msra.mxu0 0.0
  %917 = vmatprep.subr.mxu0 0.0
  %918 = vmatpush1.msra.mxu0 0.0
  %919 = vmatprep.subr.mxu0 0.0
  %920 = vmatpush1.msra.mxu0 0.0
  %921 = vmatprep.mubr.f32.mxu0 0.0
  %922 = vmatmul.mubr.f32.gmra.mrb[0].mxu0 %v852
  %v923 = vpop.f32.mrb[0].mxu0
  %v924 = vadd.f32 %v848, %v923
  %v925 = vpop.f32.mrb[0].mxu0
  %926 = vmatprep.mubr.f32.mxu0 0.0
  %927 = vmatmul.mubr.f32.gmra.mrb[0].mxu0 %v855
  %v928 = vpop.f32.mrb[0].mxu0
  %v929 = vadd.f32 %v848, %v928
  %v930 = vpop.f32.mrb[0].mxu0
  %931 = vdwg.mxu0
  %v932 = vmax.f32 %v924, 0.0
  %v933 = vmax.f32 %v929, 0.0
  %v934 = vld [vmem:[%s14] sm:$0xff]
  %v935 = vld [vmem:[%s14 + $0x8] sm:$0xff]
  %v936 = vld [vmem:[%s14 + $0x10] sm:$0xff]
  %v937 = vld [vmem:[%s14 + $0x18] sm:$0xff]
  %v938 = vld [vmem:[%s16] sm:$0x3]
  %v940 = vlaneseq
  %v941 = vshrl.u32 %v940, 7
  %v942 = vsub.s32 0, %v941
  %v943 = vrot.slane %v938, %v942
  %v944 = vlaneseq
  %v945 = vshrl.u32 %v944, 7
  %v946 = vsub.s32 1, %v945
  %v947 = vrot.slane %v938, %v946
  %v951 = vsel %vm850, %v932, 0
  %v954 = vsel %vm850, %v933, 0
  %956 = vmatprep.subr.mxu0 %v935
  %957 = vmatpush1.msra.mxu0 %v934
  %958 = vmatprep.subr.mxu0 %v937
  %959 = vmatpush1.msra.mxu0 %v936
  %960 = vmatprep.subr.mxu0 0.0
  %961 = vmatpush1.msra.mxu0 0.0
  %962 = vmatprep.subr.mxu0 0.0
  %963 = vmatpush1.msra.mxu0 0.0
  %964 = vmatprep.subr.mxu0 0.0
  %965 = vmatpush1.msra.mxu0 0.0
  %966 = vmatprep.subr.mxu0 0.0
  %967 = vmatpush1.msra.mxu0 0.0
  %968 = vmatprep.subr.mxu0 0.0
  %969 = vmatpush1.msra.mxu0 0.0
  %970 = vmatprep.subr.mxu0 0.0
  %971 = vmatpush1.msra.mxu0 0.0
  %972 = vmatprep.subr.mxu0 0.0
  %973 = vmatpush1.msra.mxu0 0.0
  %974 = vmatprep.subr.mxu0 0.0
  %975 = vmatpush1.msra.mxu0 0.0
  %976 = vmatprep.subr.mxu0 0.0
  %977 = vmatpush1.msra.mxu0 0.0
  %978 = vmatprep.subr.mxu0 0.0
  %979 = vmatpush1.msra.mxu0 0.0
  %980 = vmatprep.subr.mxu0 0.0
  %981 = vmatpush1.msra.mxu0 0.0
  %982 = vmatprep.subr.mxu0 0.0
  %983 = vmatpush1.msra.mxu0 0.0
  %984 = vmatprep.subr.mxu0 0.0
  %985 = vmatpush1.msra.mxu0 0.0
  %986 = vmatprep.subr.mxu0 0.0
  %987 = vmatpush1.msra.mxu0 0.0
  %988 = vmatprep.subr.mxu0 0.0
  %989 = vmatpush1.msra.mxu0 0.0
  %990 = vmatprep.subr.mxu0 0.0
  %991 = vmatpush1.msra.mxu0 0.0
  %992 = vmatprep.subr.mxu0 0.0
  %993 = vmatpush1.msra.mxu0 0.0
  %994 = vmatprep.subr.mxu0 0.0
  %995 = vmatpush1.msra.mxu0 0.0
  %996 = vmatprep.subr.mxu0 0.0
  %997 = vmatpush1.msra.mxu0 0.0
  %998 = vmatprep.subr.mxu0 0.0
  %999 = vmatpush1.msra.mxu0 0.0
  %1000 = vmatprep.subr.mxu0 0.0
  %1001 = vmatpush1.msra.mxu0 0.0
  %1002 = vmatprep.subr.mxu0 0.0
  %1003 = vmatpush1.msra.mxu0 0.0
  %1004 = vmatprep.subr.mxu0 0.0
  %1005 = vmatpush1.msra.mxu0 0.0
  %1006 = vmatprep.subr.mxu0 0.0
  %1007 = vmatpush1.msra.mxu0 0.0
  %1008 = vmatprep.subr.mxu0 0.0
  %1009 = vmatpush1.msra.mxu0 0.0
  %1010 = vmatprep.subr.mxu0 0.0
  %1011 = vmatpush1.msra.mxu0 0.0
  %1012 = vmatprep.subr.mxu0 0.0
  %1013 = vmatpush1.msra.mxu0 0.0
  %1014 = vmatprep.subr.mxu0 0.0
  %1015 = vmatpush1.msra.mxu0 0.0
  %1016 = vmatprep.subr.mxu0 0.0
  %1017 = vmatpush1.msra.mxu0 0.0
  %1018 = vmatprep.subr.mxu0 0.0
  %1019 = vmatpush1.msra.mxu0 0.0
  %1020 = vmatprep.mubr.f32.mxu0 0.0
  %1021 = vmatmul.mubr.f32.gmra.mrb[0].mxu0 %v951
  %v1022 = vpop.f32.mrb[0].mxu0
  %v1023 = vadd.f32 %v943, %v1022
  %v1024 = vpop.f32.mrb[0].mxu0
  %v1025 = vadd.f32 %v947, %v1024
  %1026 = vmatprep.mubr.f32.mxu0 0.0
  %1027 = vmatmul.mubr.f32.gmra.mrb[0].mxu0 %v954
  %v1028 = vpop.f32.mrb[0].mxu0
  %v1029 = vadd.f32 %v943, %v1028
  %v1030 = vpop.f32.mrb[0].mxu0
  %v1031 = vadd.f32 %v947, %v1030
  %1032 = vdwg.mxu0
  %v1033 = vld [vmem:[%s15] sm:$0xff]
  %v1034 = vld [vmem:[%s15 + $0x8] sm:$0xff]
  %v1035 = vld [vmem:[%s15 + $0x10] sm:$0xff]
  %v1036 = vld [vmem:[%s15 + $0x18] sm:$0xff]
  %v1037 = vld [vmem:[%s15 + $0x20] sm:$0xff]
  %v1038 = vld [vmem:[%s15 + $0x28] sm:$0xff]
  %v1039 = vld [vmem:[%s15 + $0x30] sm:$0xff]
  %v1040 = vld [vmem:[%s15 + $0x38] sm:$0xff]
  %v1041 = vld [vmem:[%s15 + $0x40] sm:$0xff]
  %v1042 = vld [vmem:[%s15 + $0x48] sm:$0xff]
  %v1043 = vld [vmem:[%s15 + $0x50] sm:$0xff]
  %v1044 = vld [vmem:[%s15 + $0x58] sm:$0xff]
  %v1045 = vld [vmem:[%s15 + $0x60] sm:$0xff]
  %v1046 = vld [vmem:[%s15 + $0x68] sm:$0xff]
  %v1047 = vld [vmem:[%s15 + $0x70] sm:$0xff]
  %v1048 = vld [vmem:[%s15 + $0x78] sm:$0xff]
  %vm1049 = vcmask 523264
  %v1051 = vsel %vm1049, %v740, 0
  %1053 = vmatprep.subr.mxu0 %v1034
  %1054 = vmatpush1.msra.mxu0 %v1033
  %1055 = vmatprep.subr.mxu0 %v1036
  %1056 = vmatpush1.msra.mxu0 %v1035
  %1057 = vmatprep.subr.mxu0 %v1038
  %1058 = vmatpush1.msra.mxu0 %v1037
  %1059 = vmatprep.subr.mxu0 %v1040
  %1060 = vmatpush1.msra.mxu0 %v1039
  %1061 = vmatprep.subr.mxu0 %v1042
  %1062 = vmatpush1.msra.mxu0 %v1041
  %1063 = vmatprep.subr.mxu0 %v1044
  %1064 = vmatpush1.msra.mxu0 %v1043
  %1065 = vmatprep.subr.mxu0 %v1046
  %1066 = vmatpush1.msra.mxu0 %v1045
  %1067 = vmatprep.subr.mxu0 %v1048
  %1068 = vmatpush1.msra.mxu0 %v1047
  %1069 = vmatprep.subr.mxu0 0.0
  %1070 = vmatpush1.msra.mxu0 0.0
  %1071 = vmatprep.subr.mxu0 0.0
  %1072 = vmatpush1.msra.mxu0 0.0
  %1073 = vmatprep.subr.mxu0 0.0
  %1074 = vmatpush1.msra.mxu0 0.0
  %1075 = vmatprep.subr.mxu0 0.0
  %1076 = vmatpush1.msra.mxu0 0.0
  %1077 = vmatprep.subr.mxu0 0.0
  %1078 = vmatpush1.msra.mxu0 0.0
  %1079 = vmatprep.subr.mxu0 0.0
  %1080 = vmatpush1.msra.mxu0 0.0
  %1081 = vmatprep.subr.mxu0 0.0
  %1082 = vmatpush1.msra.mxu0 0.0
  %1083 = vmatprep.subr.mxu0 0.0
  %1084 = vmatpush1.msra.mxu0 0.0
  %1085 = vmatprep.subr.mxu0 0.0
  %1086 = vmatpush1.msra.mxu0 0.0
  %1087 = vmatprep.subr.mxu0 0.0
  %1088 = vmatpush1.msra.mxu0 0.0
  %1089 = vmatprep.subr.mxu0 0.0
  %1090 = vmatpush1.msra.mxu0 0.0
  %1091 = vmatprep.subr.mxu0 0.0
  %1092 = vmatpush1.msra.mxu0 0.0
  %1093 = vmatprep.subr.mxu0 0.0
  %1094 = vmatpush1.msra.mxu0 0.0
  %1095 = vmatprep.subr.mxu0 0.0
  %1096 = vmatpush1.msra.mxu0 0.0
  %1097 = vmatprep.subr.mxu0 0.0
  %1098 = vmatpush1.msra.mxu0 0.0
  %1099 = vmatprep.subr.mxu0 0.0
  %1100 = vmatpush1.msra.mxu0 0.0
  %1101 = vmatprep.subr.mxu0 0.0
  %1102 = vmatpush1.msra.mxu0 0.0
  %1103 = vmatprep.subr.mxu0 0.0
  %1104 = vmatpush1.msra.mxu0 0.0
  %1105 = vmatprep.subr.mxu0 0.0
  %1106 = vmatpush1.msra.mxu0 0.0
  %1107 = vmatprep.subr.mxu0 0.0
  %1108 = vmatpush1.msra.mxu0 0.0
  %1109 = vmatprep.subr.mxu0 0.0
  %1110 = vmatpush1.msra.mxu0 0.0
  %1111 = vmatprep.subr.mxu0 0.0
  %1112 = vmatpush1.msra.mxu0 0.0
  %1113 = vmatprep.subr.mxu0 0.0
  %1114 = vmatpush1.msra.mxu0 0.0
  %1115 = vmatprep.subr.mxu0 0.0
  %1116 = vmatpush1.msra.mxu0 0.0
  %1117 = vmatprep.mubr.f32.mxu0 0.0
  %1118 = vmatmul.mubr.f32.gmra.mrb[0].mxu0 %v1051
  %v1119 = vpop.f32.mrb[0].mxu0
  %v1120 = vadd.f32 0.0, %v1119
  %v1121 = vpop.f32.mrb[0].mxu0
  %v1122 = vadd.f32 0.0, %v1121
  %1123 = vdwg.mxu0
  %v1124 = vadd.f32 %v1023, %v1120
  %v1125 = vadd.f32 %v1025, %v1122
  %v1126 = vsub.f32 0.0, %v1124
  %v1127 = vmul.f32 %v1126, 1.442695
  %v1128 = vpow.pop %v1127
  %v1129 = vadd.f32 %v1128, 1.0
  %v1130 = vrcp.pop %v1129
  %v1131 = vmul.f32 1.0, %v1130
  %v1132 = vtanh.pop %v1125
  %v1133 = vsub.f32 0.0, %v1125
  %v1134 = vmul.f32 %v1133, 1.442695
  %v1135 = vpow.pop %v1134
  %v1136 = vadd.f32 %v1135, 1.0
  %v1137 = vrcp.pop %v1136
  %v1138 = vmul.f32 1.0, %v1137
  %v1139 = vmul.f32 %v1131, %v740
  %v1140 = vmul.f32 %v1131, %v1132
  %1142 = vrot.lane.b32.xlu0 %v1140, 64
  %v1143 = vpop.permute.xlu0 %1142
  %v1145 = vadd.f32 %v1139, %v1143
  %v1146 = vtanh.pop %v1145
  %v1147 = vmul.f32 %v1138, %v1146
  %1149 = vrot.lane.b32.xlu0 %v1147, 64
  %v1150 = vpop.permute.xlu0 %1149
  %vm1152 = vcmask 517120
  %1153 = vst.msk [vmem:[#allocation2] sm:$0x3] %vm1152, %v1150
  %v1154 = vld [vmem:[%s15] sm:$0xff]
  %v1155 = vld [vmem:[%s15 + $0x8] sm:$0xff]
  %v1156 = vld [vmem:[%s15 + $0x10] sm:$0xff]
  %v1157 = vld [vmem:[%s15 + $0x18] sm:$0xff]
  %v1158 = vld [vmem:[%s15 + $0x20] sm:$0xff]
  %v1159 = vld [vmem:[%s15 + $0x28] sm:$0xff]
  %v1160 = vld [vmem:[%s15 + $0x30] sm:$0xff]
  %v1161 = vld [vmem:[%s15 + $0x38] sm:$0xff]
  %v1162 = vld [vmem:[%s15 + $0x40] sm:$0xff]
  %v1163 = vld [vmem:[%s15 + $0x48] sm:$0xff]
  %v1164 = vld [vmem:[%s15 + $0x50] sm:$0xff]
  %v1165 = vld [vmem:[%s15 + $0x58] sm:$0xff]
  %v1166 = vld [vmem:[%s15 + $0x60] sm:$0xff]
  %v1167 = vld [vmem:[%s15 + $0x68] sm:$0xff]
  %v1168 = vld [vmem:[%s15 + $0x70] sm:$0xff]
  %v1169 = vld [vmem:[%s15 + $0x78] sm:$0xff]
  %v1170 = vsel %vm1049, %v1150, 0
  %1172 = vmatprep.subr.mxu0 %v1155
  %1173 = vmatpush1.msra.mxu0 %v1154
  %1174 = vmatprep.subr.mxu0 %v1157
  %1175 = vmatpush1.msra.mxu0 %v1156
  %1176 = vmatprep.subr.mxu0 %v1159
  %1177 = vmatpush1.msra.mxu0 %v1158
  %1178 = vmatprep.subr.mxu0 %v1161
  %1179 = vmatpush1.msra.mxu0 %v1160
  %1180 = vmatprep.subr.mxu0 %v1163
  %1181 = vmatpush1.msra.mxu0 %v1162
  %1182 = vmatprep.subr.mxu0 %v1165
  %1183 = vmatpush1.msra.mxu0 %v1164
  %1184 = vmatprep.subr.mxu0 %v1167
  %1185 = vmatpush1.msra.mxu0 %v1166
  %1186 = vmatprep.subr.mxu0 %v1169
  %1187 = vmatpush1.msra.mxu0 %v1168
  %1188 = vmatprep.subr.mxu0 0.0
  %1189 = vmatpush1.msra.mxu0 0.0
  %1190 = vmatprep.subr.mxu0 0.0
  %1191 = vmatpush1.msra.mxu0 0.0
  %1192 = vmatprep.subr.mxu0 0.0
  %1193 = vmatpush1.msra.mxu0 0.0
  %1194 = vmatprep.subr.mxu0 0.0
  %1195 = vmatpush1.msra.mxu0 0.0
  %1196 = vmatprep.subr.mxu0 0.0
  %1197 = vmatpush1.msra.mxu0 0.0
  %1198 = vmatprep.subr.mxu0 0.0
  %1199 = vmatpush1.msra.mxu0 0.0
  %1200 = vmatprep.subr.mxu0 0.0
  %1201 = vmatpush1.msra.mxu0 0.0
  %1202 = vmatprep.subr.mxu0 0.0
  %1203 = vmatpush1.msra.mxu0 0.0
  %1204 = vmatprep.subr.mxu0 0.0
  %1205 = vmatpush1.msra.mxu0 0.0
  %1206 = vmatprep.subr.mxu0 0.0
  %1207 = vmatpush1.msra.mxu0 0.0
  %1208 = vmatprep.subr.mxu0 0.0
  %1209 = vmatpush1.msra.mxu0 0.0
  %1210 = vmatprep.subr.mxu0 0.0
  %1211 = vmatpush1.msra.mxu0 0.0
  %1212 = vmatprep.subr.mxu0 0.0
  %1213 = vmatpush1.msra.mxu0 0.0
  %1214 = vmatprep.subr.mxu0 0.0
  %1215 = vmatpush1.msra.mxu0 0.0
  %1216 = vmatprep.subr.mxu0 0.0
  %1217 = vmatpush1.msra.mxu0 0.0
  %1218 = vmatprep.subr.mxu0 0.0
  %1219 = vmatpush1.msra.mxu0 0.0
  %1220 = vmatprep.subr.mxu0 0.0
  %1221 = vmatpush1.msra.mxu0 0.0
  %1222 = vmatprep.subr.mxu0 0.0
  %1223 = vmatpush1.msra.mxu0 0.0
  %1224 = vmatprep.subr.mxu0 0.0
  %1225 = vmatpush1.msra.mxu0 0.0
  %1226 = vmatprep.subr.mxu0 0.0
  %1227 = vmatpush1.msra.mxu0 0.0
  %1228 = vmatprep.subr.mxu0 0.0
  %1229 = vmatpush1.msra.mxu0 0.0
  %1230 = vmatprep.subr.mxu0 0.0
  %1231 = vmatpush1.msra.mxu0 0.0
  %1232 = vmatprep.subr.mxu0 0.0
  %1233 = vmatpush1.msra.mxu0 0.0
  %1234 = vmatprep.subr.mxu0 0.0
  %1235 = vmatpush1.msra.mxu0 0.0
  %1236 = vmatprep.mubr.f32.mxu0 0.0
  %1237 = vmatmul.mubr.f32.gmra.mrb[0].mxu0 %v1170
  %v1238 = vpop.f32.mrb[0].mxu0
  %v1239 = vadd.f32 0.0, %v1238
  %v1240 = vpop.f32.mrb[0].mxu0
  %v1241 = vadd.f32 0.0, %v1240
  %1242 = vdwg.mxu0
  %v1245 = vrot.slane %v1239, 6
  %v1246 = vrot.slane %v1241, 6
  %v1249 = vadd.f32 %v1023, %v1245
  %v1250 = vadd.f32 %v1025, %v1246
  %v1251 = vsub.f32 0.0, %v1249
  %v1252 = vmul.f32 %v1251, 1.442695
  %v1253 = vpow.pop %v1252
  %v1254 = vadd.f32 %v1253, 1.0
  %v1255 = vrcp.pop %v1254
  %v1256 = vmul.f32 1.0, %v1255
  %v1257 = vtanh.pop %v1250
  %v1258 = vsub.f32 0.0, %v1250
  %v1259 = vmul.f32 %v1258, 1.442695
  %v1260 = vpow.pop %v1259
  %v1261 = vadd.f32 %v1260, 1.0
  %v1262 = vrcp.pop %v1261
  %v1263 = vmul.f32 1.0, %v1262
  %v1265 = vrot.slane %v1145, 6
  %v1267 = vmul.f32 %v1256, %v1265
  %v1268 = vmul.f32 %v1256, %v1257
  %1270 = vrot.lane.b32.xlu0 %v1268, 64
  %v1271 = vpop.permute.xlu0 %1270
  %v1273 = vadd.f32 %v1267, %v1271
  %v1274 = vtanh.pop %v1273
  %v1275 = vmul.f32 %v1263, %v1274
  %1277 = vrot.lane.b32.xlu0 %v1275, 64
  %v1278 = vpop.permute.xlu0 %1277
  %vm1280 = vcmask 519170
  %1281 = vst.msk [vmem:[#allocation2] sm:$0xc] %vm1280, %v1278
  %v1282 = vld [vmem:[%s15] sm:$0xff]
  %v1283 = vld [vmem:[%s15 + $0x8] sm:$0xff]
  %v1284 = vld [vmem:[%s15 + $0x10] sm:$0xff]
  %v1285 = vld [vmem:[%s15 + $0x18] sm:$0xff]
  %v1286 = vld [vmem:[%s15 + $0x20] sm:$0xff]
  %v1287 = vld [vmem:[%s15 + $0x28] sm:$0xff]
  %v1288 = vld [vmem:[%s15 + $0x30] sm:$0xff]
  %v1289 = vld [vmem:[%s15 + $0x38] sm:$0xff]
  %v1290 = vld [vmem:[%s15 + $0x40] sm:$0xff]
  %v1291 = vld [vmem:[%s15 + $0x48] sm:$0xff]
  %v1292 = vld [vmem:[%s15 + $0x50] sm:$0xff]
  %v1293 = vld [vmem:[%s15 + $0x58] sm:$0xff]
  %v1294 = vld [vmem:[%s15 + $0x60] sm:$0xff]
  %v1295 = vld [vmem:[%s15 + $0x68] sm:$0xff]
  %v1296 = vld [vmem:[%s15 + $0x70] sm:$0xff]
  %v1297 = vld [vmem:[%s15 + $0x78] sm:$0xff]
  %v1298 = vrot.slane %v1275, 2
  %1299 = vrot.lane.b32.xlu0 %v1298, 64
  %v1300 = vpop.permute.xlu0 %1299
  %v1301 = vsel %vm1049, %v1300, 0
  %1303 = vmatprep.subr.mxu0 %v1283
  %1304 = vmatpush1.msra.mxu0 %v1282
  %1305 = vmatprep.subr.mxu0 %v1285
  %1306 = vmatpush1.msra.mxu0 %v1284
  %1307 = vmatprep.subr.mxu0 %v1287
  %1308 = vmatpush1.msra.mxu0 %v1286
  %1309 = vmatprep.subr.mxu0 %v1289
  %1310 = vmatpush1.msra.mxu0 %v1288
  %1311 = vmatprep.subr.mxu0 %v1291
  %1312 = vmatpush1.msra.mxu0 %v1290
  %1313 = vmatprep.subr.mxu0 %v1293
  %1314 = vmatpush1.msra.mxu0 %v1292
  %1315 = vmatprep.subr.mxu0 %v1295
  %1316 = vmatpush1.msra.mxu0 %v1294
  %1317 = vmatprep.subr.mxu0 %v1297
  %1318 = vmatpush1.msra.mxu0 %v1296
  %1319 = vmatprep.subr.mxu0 0.0
  %1320 = vmatpush1.msra.mxu0 0.0
  %1321 = vmatprep.subr.mxu0 0.0
  %1322 = vmatpush1.msra.mxu0 0.0
  %1323 = vmatprep.subr.mxu0 0.0
  %1324 = vmatpush1.msra.mxu0 0.0
  %1325 = vmatprep.subr.mxu0 0.0
  %1326 = vmatpush1.msra.mxu0 0.0
  %1327 = vmatprep.subr.mxu0 0.0
  %1328 = vmatpush1.msra.mxu0 0.0
  %1329 = vmatprep.subr.mxu0 0.0
  %1330 = vmatpush1.msra.mxu0 0.0
  %1331 = vmatprep.subr.mxu0 0.0
  %1332 = vmatpush1.msra.mxu0 0.0
  %1333 = vmatprep.subr.mxu0 0.0
  %1334 = vmatpush1.msra.mxu0 0.0
  %1335 = vmatprep.subr.mxu0 0.0
  %1336 = vmatpush1.msra.mxu0 0.0
  %1337 = vmatprep.subr.mxu0 0.0
  %1338 = vmatpush1.msra.mxu0 0.0
  %1339 = vmatprep.subr.mxu0 0.0
  %1340 = vmatpush1.msra.mxu0 0.0
  %1341 = vmatprep.subr.mxu0 0.0
  %1342 = vmatpush1.msra.mxu0 0.0
  %1343 = vmatprep.subr.mxu0 0.0
  %1344 = vmatpush1.msra.mxu0 0.0
  %1345 = vmatprep.subr.mxu0 0.0
  %1346 = vmatpush1.msra.mxu0 0.0
  %1347 = vmatprep.subr.mxu0 0.0
  %1348 = vmatpush1.msra.mxu0 0.0
  %1349 = vmatprep.subr.mxu0 0.0
  %1350 = vmatpush1.msra.mxu0 0.0
  %1351 = vmatprep.subr.mxu0 0.0
  %1352 = vmatpush1.msra.mxu0 0.0
  %1353 = vmatprep.subr.mxu0 0.0
  %1354 = vmatpush1.msra.mxu0 0.0
  %1355 = vmatprep.subr.mxu0 0.0
  %1356 = vmatpush1.msra.mxu0 0.0
  %1357 = vmatprep.subr.mxu0 0.0
  %1358 = vmatpush1.msra.mxu0 0.0
  %1359 = vmatprep.subr.mxu0 0.0
  %1360 = vmatpush1.msra.mxu0 0.0
  %1361 = vmatprep.subr.mxu0 0.0
  %1362 = vmatpush1.msra.mxu0 0.0
  %1363 = vmatprep.subr.mxu0 0.0
  %1364 = vmatpush1.msra.mxu0 0.0
  %1365 = vmatprep.subr.mxu0 0.0
  %1366 = vmatpush1.msra.mxu0 0.0
  %1367 = vmatprep.mubr.f32.mxu0 0.0
  %1368 = vmatmul.mubr.f32.gmra.mrb[0].mxu0 %v1301
  %v1369 = vpop.f32.mrb[0].mxu0
  %v1370 = vadd.f32 0.0, %v1369
  %v1371 = vpop.f32.mrb[0].mxu0
  %v1372 = vadd.f32 0.0, %v1371
  %1373 = vdwg.mxu0
  %v1376 = vrot.slane %v1370, 4
  %v1377 = vrot.slane %v1372, 4
  %v1380 = vadd.f32 %v1023, %v1376
  %v1381 = vadd.f32 %v1025, %v1377
  %v1382 = vsub.f32 0.0, %v1380
  %v1383 = vmul.f32 %v1382, 1.442695
  %v1384 = vpow.pop %v1383
  %v1385 = vadd.f32 %v1384, 1.0
  %v1386 = vrcp.pop %v1385
  %v1387 = vmul.f32 1.0, %v1386
  %v1388 = vtanh.pop %v1381
  %v1389 = vsub.f32 0.0, %v1381
  %v1390 = vmul.f32 %v1389, 1.442695
  %v1391 = vpow.pop %v1390
  %v1392 = vadd.f32 %v1391, 1.0
  %v1393 = vrcp.pop %v1392
  %v1394 = vmul.f32 1.0, %v1393
  %v1396 = vrot.slane %v1273, 6
  %v1398 = vmul.f32 %v1387, %v1396
  %v1399 = vmul.f32 %v1387, %v1388
  %1401 = vrot.lane.b32.xlu0 %v1399, 64
  %v1402 = vpop.permute.xlu0 %1401
  %v1404 = vadd.f32 %v1398, %v1402
  %v1405 = vtanh.pop %v1404
  %v1406 = vmul.f32 %v1394, %v1405
  %1408 = vrot.lane.b32.xlu0 %v1406, 64
  %v1409 = vpop.permute.xlu0 %1408
  %vm1411 = vcmask 521220
  %1412 = vst.msk [vmem:[#allocation2] sm:$0x30] %vm1411, %v1409
  %v1413 = vld [vmem:[%s15] sm:$0xff]
  %v1414 = vld [vmem:[%s15 + $0x8] sm:$0xff]
  %v1415 = vld [vmem:[%s15 + $0x10] sm:$0xff]
  %v1416 = vld [vmem:[%s15 + $0x18] sm:$0xff]
  %v1417 = vld [vmem:[%s15 + $0x20] sm:$0xff]
  %v1418 = vld [vmem:[%s15 + $0x28] sm:$0xff]
  %v1419 = vld [vmem:[%s15 + $0x30] sm:$0xff]
  %v1420 = vld [vmem:[%s15 + $0x38] sm:$0xff]
  %v1421 = vld [vmem:[%s15 + $0x40] sm:$0xff]
  %v1422 = vld [vmem:[%s15 + $0x48] sm:$0xff]
  %v1423 = vld [vmem:[%s15 + $0x50] sm:$0xff]
  %v1424 = vld [vmem:[%s15 + $0x58] sm:$0xff]
  %v1425 = vld [vmem:[%s15 + $0x60] sm:$0xff]
  %v1426 = vld [vmem:[%s15 + $0x68] sm:$0xff]
  %v1427 = vld [vmem:[%s15 + $0x70] sm:$0xff]
  %v1428 = vld [vmem:[%s15 + $0x78] sm:$0xff]
  %v1429 = vrot.slane %v1406, 4
  %1430 = vrot.lane.b32.xlu0 %v1429, 64
  %v1431 = vpop.permute.xlu0 %1430
  %v1432 = vsel %vm1049, %v1431, 0
  %1434 = vmatprep.subr.mxu0 %v1414
  %1435 = vmatpush1.msra.mxu0 %v1413
  %1436 = vmatprep.subr.mxu0 %v1416
  %1437 = vmatpush1.msra.mxu0 %v1415
  %1438 = vmatprep.subr.mxu0 %v1418
  %1439 = vmatpush1.msra.mxu0 %v1417
  %1440 = vmatprep.subr.mxu0 %v1420
  %1441 = vmatpush1.msra.mxu0 %v1419
  %1442 = vmatprep.subr.mxu0 %v1422
  %1443 = vmatpush1.msra.mxu0 %v1421
  %1444 = vmatprep.subr.mxu0 %v1424
  %1445 = vmatpush1.msra.mxu0 %v1423
  %1446 = vmatprep.subr.mxu0 %v1426
  %1447 = vmatpush1.msra.mxu0 %v1425
  %1448 = vmatprep.subr.mxu0 %v1428
  %1449 = vmatpush1.msra.mxu0 %v1427
  %1450 = vmatprep.subr.mxu0 0.0
  %1451 = vmatpush1.msra.mxu0 0.0
  %1452 = vmatprep.subr.mxu0 0.0
  %1453 = vmatpush1.msra.mxu0 0.0
  %1454 = vmatprep.subr.mxu0 0.0
  %1455 = vmatpush1.msra.mxu0 0.0
  %1456 = vmatprep.subr.mxu0 0.0
  %1457 = vmatpush1.msra.mxu0 0.0
  %1458 = vmatprep.subr.mxu0 0.0
  %1459 = vmatpush1.msra.mxu0 0.0
  %1460 = vmatprep.subr.mxu0 0.0
  %1461 = vmatpush1.msra.mxu0 0.0
  %1462 = vmatprep.subr.mxu0 0.0
  %1463 = vmatpush1.msra.mxu0 0.0
  %1464 = vmatprep.subr.mxu0 0.0
  %1465 = vmatpush1.msra.mxu0 0.0
  %1466 = vmatprep.subr.mxu0 0.0
  %1467 = vmatpush1.msra.mxu0 0.0
  %1468 = vmatprep.subr.mxu0 0.0
  %1469 = vmatpush1.msra.mxu0 0.0
  %1470 = vmatprep.subr.mxu0 0.0
  %1471 = vmatpush1.msra.mxu0 0.0
  %1472 = vmatprep.subr.mxu0 0.0
  %1473 = vmatpush1.msra.mxu0 0.0
  %1474 = vmatprep.subr.mxu0 0.0
  %1475 = vmatpush1.msra.mxu0 0.0
  %1476 = vmatprep.subr.mxu0 0.0
  %1477 = vmatpush1.msra.mxu0 0.0
  %1478 = vmatprep.subr.mxu0 0.0
  %1479 = vmatpush1.msra.mxu0 0.0
  %1480 = vmatprep.subr.mxu0 0.0
  %1481 = vmatpush1.msra.mxu0 0.0
  %1482 = vmatprep.subr.mxu0 0.0
  %1483 = vmatpush1.msra.mxu0 0.0
  %1484 = vmatprep.subr.mxu0 0.0
  %1485 = vmatpush1.msra.mxu0 0.0
  %1486 = vmatprep.subr.mxu0 0.0
  %1487 = vmatpush1.msra.mxu0 0.0
  %1488 = vmatprep.subr.mxu0 0.0
  %1489 = vmatpush1.msra.mxu0 0.0
  %1490 = vmatprep.subr.mxu0 0.0
  %1491 = vmatpush1.msra.mxu0 0.0
  %1492 = vmatprep.subr.mxu0 0.0
  %1493 = vmatpush1.msra.mxu0 0.0
  %1494 = vmatprep.subr.mxu0 0.0
  %1495 = vmatpush1.msra.mxu0 0.0
  %1496 = vmatprep.subr.mxu0 0.0
  %1497 = vmatpush1.msra.mxu0 0.0
  %1498 = vmatprep.mubr.f32.mxu0 0.0
  %1499 = vmatmul.mubr.f32.gmra.mrb[0].mxu0 %v1432
  %v1500 = vpop.f32.mrb[0].mxu0
  %v1501 = vadd.f32 0.0, %v1500
  %v1502 = vpop.f32.mrb[0].mxu0
  %v1503 = vadd.f32 0.0, %v1502
  %1504 = vdwg.mxu0
  %v1507 = vrot.slane %v1501, 2
  %v1508 = vrot.slane %v1503, 2
  %v1511 = vadd.f32 %v1023, %v1507
  %v1512 = vadd.f32 %v1025, %v1508
  %v1513 = vsub.f32 0.0, %v1511
  %v1514 = vmul.f32 %v1513, 1.442695
  %v1515 = vpow.pop %v1514
  %v1516 = vadd.f32 %v1515, 1.0
  %v1517 = vrcp.pop %v1516
  %v1518 = vmul.f32 1.0, %v1517
  %v1519 = vtanh.pop %v1512
  %v1520 = vsub.f32 0.0, %v1512
  %v1521 = vmul.f32 %v1520, 1.442695
  %v1522 = vpow.pop %v1521
  %v1523 = vadd.f32 %v1522, 1.0
  %v1524 = vrcp.pop %v1523
  %v1525 = vmul.f32 1.0, %v1524
  %v1527 = vrot.slane %v1404, 6
  %v1529 = vmul.f32 %v1518, %v1527
  %v1530 = vmul.f32 %v1518, %v1519
  %1532 = vrot.lane.b32.xlu0 %v1530, 64
  %v1533 = vpop.permute.xlu0 %1532
  %v1535 = vadd.f32 %v1529, %v1533
  %v1536 = vtanh.pop %v1535
  %v1537 = vmul.f32 %v1525, %v1536
  %1539 = vrot.lane.b32.xlu0 %v1537, 64
  %v1540 = vpop.permute.xlu0 %1539
  %vm1542 = vcmask 523270
  %1543 = vst.msk [vmem:[#allocation2] sm:$0xc0] %vm1542, %v1540
  %v1544 = vld [vmem:[%s15] sm:$0xff]
  %v1545 = vld [vmem:[%s15 + $0x8] sm:$0xff]
  %v1546 = vld [vmem:[%s15 + $0x10] sm:$0xff]
  %v1547 = vld [vmem:[%s15 + $0x18] sm:$0xff]
  %v1548 = vld [vmem:[%s15 + $0x20] sm:$0xff]
  %v1549 = vld [vmem:[%s15 + $0x28] sm:$0xff]
  %v1550 = vld [vmem:[%s15 + $0x30] sm:$0xff]
  %v1551 = vld [vmem:[%s15 + $0x38] sm:$0xff]
  %v1552 = vld [vmem:[%s15 + $0x40] sm:$0xff]
  %v1553 = vld [vmem:[%s15 + $0x48] sm:$0xff]
  %v1554 = vld [vmem:[%s15 + $0x50] sm:$0xff]
  %v1555 = vld [vmem:[%s15 + $0x58] sm:$0xff]
  %v1556 = vld [vmem:[%s15 + $0x60] sm:$0xff]
  %v1557 = vld [vmem:[%s15 + $0x68] sm:$0xff]
  %v1558 = vld [vmem:[%s15 + $0x70] sm:$0xff]
  %v1559 = vld [vmem:[%s15 + $0x78] sm:$0xff]
  %v1560 = vrot.slane %v1537, 6
  %1561 = vrot.lane.b32.xlu0 %v1560, 64
  %v1562 = vpop.permute.xlu0 %1561
  %v1563 = vsel %vm1049, %v1562, 0
  %1565 = vmatprep.subr.mxu0 %v1545
  %1566 = vmatpush1.msra.mxu0 %v1544
  %1567 = vmatprep.subr.mxu0 %v1547
  %1568 = vmatpush1.msra.mxu0 %v1546
  %1569 = vmatprep.subr.mxu0 %v1549
  %1570 = vmatpush1.msra.mxu0 %v1548
  %1571 = vmatprep.subr.mxu0 %v1551
  %1572 = vmatpush1.msra.mxu0 %v1550
  %1573 = vmatprep.subr.mxu0 %v1553
  %1574 = vmatpush1.msra.mxu0 %v1552
  %1575 = vmatprep.subr.mxu0 %v1555
  %1576 = vmatpush1.msra.mxu0 %v1554
  %1577 = vmatprep.subr.mxu0 %v1557
  %1578 = vmatpush1.msra.mxu0 %v1556
  %1579 = vmatprep.subr.mxu0 %v1559
  %1580 = vmatpush1.msra.mxu0 %v1558
  %1581 = vmatprep.subr.mxu0 0.0
  %1582 = vmatpush1.msra.mxu0 0.0
  %1583 = vmatprep.subr.mxu0 0.0
  %1584 = vmatpush1.msra.mxu0 0.0
  %1585 = vmatprep.subr.mxu0 0.0
  %1586 = vmatpush1.msra.mxu0 0.0
  %1587 = vmatprep.subr.mxu0 0.0
  %1588 = vmatpush1.msra.mxu0 0.0
  %1589 = vmatprep.subr.mxu0 0.0
  %1590 = vmatpush1.msra.mxu0 0.0
  %1591 = vmatprep.subr.mxu0 0.0
  %1592 = vmatpush1.msra.mxu0 0.0
  %1593 = vmatprep.subr.mxu0 0.0
  %1594 = vmatpush1.msra.mxu0 0.0
  %1595 = vmatprep.subr.mxu0 0.0
  %1596 = vmatpush1.msra.mxu0 0.0
  %1597 = vmatprep.subr.mxu0 0.0
  %1598 = vmatpush1.msra.mxu0 0.0
  %1599 = vmatprep.subr.mxu0 0.0
  %1600 = vmatpush1.msra.mxu0 0.0
  %1601 = vmatprep.subr.mxu0 0.0
  %1602 = vmatpush1.msra.mxu0 0.0
  %1603 = vmatprep.subr.mxu0 0.0
  %1604 = vmatpush1.msra.mxu0 0.0
  %1605 = vmatprep.subr.mxu0 0.0
  %1606 = vmatpush1.msra.mxu0 0.0
  %1607 = vmatprep.subr.mxu0 0.0
  %1608 = vmatpush1.msra.mxu0 0.0
  %1609 = vmatprep.subr.mxu0 0.0
  %1610 = vmatpush1.msra.mxu0 0.0
  %1611 = vmatprep.subr.mxu0 0.0
  %1612 = vmatpush1.msra.mxu0 0.0
  %1613 = vmatprep.subr.mxu0 0.0
  %1614 = vmatpush1.msra.mxu0 0.0
  %1615 = vmatprep.subr.mxu0 0.0
  %1616 = vmatpush1.msra.mxu0 0.0
  %1617 = vmatprep.subr.mxu0 0.0
  %1618 = vmatpush1.msra.mxu0 0.0
  %1619 = vmatprep.subr.mxu0 0.0
  %1620 = vmatpush1.msra.mxu0 0.0
  %1621 = vmatprep.subr.mxu0 0.0
  %1622 = vmatpush1.msra.mxu0 0.0
  %1623 = vmatprep.subr.mxu0 0.0
  %1624 = vmatpush1.msra.mxu0 0.0
  %1625 = vmatprep.subr.mxu0 0.0
  %1626 = vmatpush1.msra.mxu0 0.0
  %1627 = vmatprep.subr.mxu0 0.0
  %1628 = vmatpush1.msra.mxu0 0.0
  %1629 = vmatprep.mubr.f32.mxu0 0.0
  %1630 = vmatmul.mubr.f32.gmra.mrb[0].mxu0 %v1563
  %v1631 = vpop.f32.mrb[0].mxu0
  %v1632 = vadd.f32 0.0, %v1631
  %v1633 = vpop.f32.mrb[0].mxu0
  %v1634 = vadd.f32 0.0, %v1633
  %1635 = vdwg.mxu0
  %v1636 = vadd.f32 %v1029, %v1632
  %v1637 = vadd.f32 %v1031, %v1634
  %v1638 = vsub.f32 0.0, %v1636
  %v1639 = vmul.f32 %v1638, 1.442695
  %v1640 = vpow.pop %v1639
  %v1641 = vadd.f32 %v1640, 1.0
  %v1642 = vrcp.pop %v1641
  %v1643 = vmul.f32 1.0, %v1642
  %v1644 = vtanh.pop %v1637
  %v1645 = vsub.f32 0.0, %v1637
  %v1646 = vmul.f32 %v1645, 1.442695
  %v1647 = vpow.pop %v1646
  %v1648 = vadd.f32 %v1647, 1.0
  %v1649 = vrcp.pop %v1648
  %v1650 = vmul.f32 1.0, %v1649
  %v1652 = vrot.slane %v1535, 6
  %v1654 = vmul.f32 %v1643, %v1652
  %v1655 = vmul.f32 %v1643, %v1644
  %1657 = vrot.lane.b32.xlu0 %v1655, 64
  %v1658 = vpop.permute.xlu0 %1657
  %v1660 = vadd.f32 %v1654, %v1658
  %v1661 = vtanh.pop %v1660
  %v1662 = vmul.f32 %v1650, %v1661
  %1664 = vrot.lane.b32.xlu0 %v1662, 64
  %v1665 = vpop.permute.xlu0 %1664
  %1667 = vst.msk [vmem:[#allocation2 + $0x8] sm:$0x3] %vm1152, %v1665
  %v1668 = vld [vmem:[%s15] sm:$0xff]
  %v1669 = vld [vmem:[%s15 + $0x8] sm:$0xff]
  %v1670 = vld [vmem:[%s15 + $0x10] sm:$0xff]
  %v1671 = vld [vmem:[%s15 + $0x18] sm:$0xff]
  %v1672 = vld [vmem:[%s15 + $0x20] sm:$0xff]
  %v1673 = vld [vmem:[%s15 + $0x28] sm:$0xff]
  %v1674 = vld [vmem:[%s15 + $0x30] sm:$0xff]
  %v1675 = vld [vmem:[%s15 + $0x38] sm:$0xff]
  %v1676 = vld [vmem:[%s15 + $0x40] sm:$0xff]
  %v1677 = vld [vmem:[%s15 + $0x48] sm:$0xff]
  %v1678 = vld [vmem:[%s15 + $0x50] sm:$0xff]
  %v1679 = vld [vmem:[%s15 + $0x58] sm:$0xff]
  %v1680 = vld [vmem:[%s15 + $0x60] sm:$0xff]
  %v1681 = vld [vmem:[%s15 + $0x68] sm:$0xff]
  %v1682 = vld [vmem:[%s15 + $0x70] sm:$0xff]
  %v1683 = vld [vmem:[%s15 + $0x78] sm:$0xff]
  %v1684 = vsel %vm1049, %v1665, 0
  %1686 = vmatprep.subr.mxu0 %v1669
  %1687 = vmatpush1.msra.mxu0 %v1668
  %1688 = vmatprep.subr.mxu0 %v1671
  %1689 = vmatpush1.msra.mxu0 %v1670
  %1690 = vmatprep.subr.mxu0 %v1673
  %1691 = vmatpush1.msra.mxu0 %v1672
  %1692 = vmatprep.subr.mxu0 %v1675
  %1693 = vmatpush1.msra.mxu0 %v1674
  %1694 = vmatprep.subr.mxu0 %v1677
  %1695 = vmatpush1.msra.mxu0 %v1676
  %1696 = vmatprep.subr.mxu0 %v1679
  %1697 = vmatpush1.msra.mxu0 %v1678
  %1698 = vmatprep.subr.mxu0 %v1681
  %1699 = vmatpush1.msra.mxu0 %v1680
  %1700 = vmatprep.subr.mxu0 %v1683
  %1701 = vmatpush1.msra.mxu0 %v1682
  %1702 = vmatprep.subr.mxu0 0.0
  %1703 = vmatpush1.msra.mxu0 0.0
  %1704 = vmatprep.subr.mxu0 0.0
  %1705 = vmatpush1.msra.mxu0 0.0
  %1706 = vmatprep.subr.mxu0 0.0
  %1707 = vmatpush1.msra.mxu0 0.0
  %1708 = vmatprep.subr.mxu0 0.0
  %1709 = vmatpush1.msra.mxu0 0.0
  %1710 = vmatprep.subr.mxu0 0.0
  %1711 = vmatpush1.msra.mxu0 0.0
  %1712 = vmatprep.subr.mxu0 0.0
  %1713 = vmatpush1.msra.mxu0 0.0
  %1714 = vmatprep.subr.mxu0 0.0
  %1715 = vmatpush1.msra.mxu0 0.0
  %1716 = vmatprep.subr.mxu0 0.0
  %1717 = vmatpush1.msra.mxu0 0.0
  %1718 = vmatprep.subr.mxu0 0.0
  %1719 = vmatpush1.msra.mxu0 0.0
  %1720 = vmatprep.subr.mxu0 0.0
  %1721 = vmatpush1.msra.mxu0 0.0
  %1722 = vmatprep.subr.mxu0 0.0
  %1723 = vmatpush1.msra.mxu0 0.0
  %1724 = vmatprep.subr.mxu0 0.0
  %1725 = vmatpush1.msra.mxu0 0.0
  %1726 = vmatprep.subr.mxu0 0.0
  %1727 = vmatpush1.msra.mxu0 0.0
  %1728 = vmatprep.subr.mxu0 0.0
  %1729 = vmatpush1.msra.mxu0 0.0
  %1730 = vmatprep.subr.mxu0 0.0
  %1731 = vmatpush1.msra.mxu0 0.0
  %1732 = vmatprep.subr.mxu0 0.0
  %1733 = vmatpush1.msra.mxu0 0.0
  %1734 = vmatprep.subr.mxu0 0.0
  %1735 = vmatpush1.msra.mxu0 0.0
  %1736 = vmatprep.subr.mxu0 0.0
  %1737 = vmatpush1.msra.mxu0 0.0
  %1738 = vmatprep.subr.mxu0 0.0
  %1739 = vmatpush1.msra.mxu0 0.0
  %1740 = vmatprep.subr.mxu0 0.0
  %1741 = vmatpush1.msra.mxu0 0.0
  %1742 = vmatprep.subr.mxu0 0.0
  %1743 = vmatpush1.msra.mxu0 0.0
  %1744 = vmatprep.subr.mxu0 0.0
  %1745 = vmatpush1.msra.mxu0 0.0
  %1746 = vmatprep.subr.mxu0 0.0
  %1747 = vmatpush1.msra.mxu0 0.0
  %1748 = vmatprep.subr.mxu0 0.0
  %1749 = vmatpush1.msra.mxu0 0.0
  %1750 = vmatprep.mubr.f32.mxu0 0.0
  %1751 = vmatmul.mubr.f32.gmra.mrb[0].mxu0 %v1684
  %v1752 = vpop.f32.mrb[0].mxu0
  %v1753 = vadd.f32 0.0, %v1752
  %v1754 = vpop.f32.mrb[0].mxu0
  %v1755 = vadd.f32 0.0, %v1754
  %1756 = vdwg.mxu0
  %v1759 = vrot.slane %v1753, 6
  %v1760 = vrot.slane %v1755, 6
  %v1763 = vadd.f32 %v1029, %v1759
  %v1764 = vadd.f32 %v1031, %v1760
  %v1765 = vsub.f32 0.0, %v1763
  %v1766 = vmul.f32 %v1765, 1.442695
  %v1767 = vpow.pop %v1766
  %v1768 = vadd.f32 %v1767, 1.0
  %v1769 = vrcp.pop %v1768
  %v1770 = vmul.f32 1.0, %v1769
  %v1771 = vtanh.pop %v1764
  %v1772 = vsub.f32 0.0, %v1764
  %v1773 = vmul.f32 %v1772, 1.442695
  %v1774 = vpow.pop %v1773
  %v1775 = vadd.f32 %v1774, 1.0
  %v1776 = vrcp.pop %v1775
  %v1777 = vmul.f32 1.0, %v1776
  %v1779 = vrot.slane %v1660, 6
  %v1781 = vmul.f32 %v1770, %v1779
  %v1782 = vmul.f32 %v1770, %v1771
  %1784 = vrot.lane.b32.xlu0 %v1782, 64
  %v1785 = vpop.permute.xlu0 %1784
  %v1787 = vadd.f32 %v1781, %v1785
  %v1788 = vtanh.pop %v1787
  %v1789 = vmul.f32 %v1777, %v1788
  %1791 = vrot.lane.b32.xlu0 %v1789, 64
  %v1792 = vpop.permute.xlu0 %1791
  %1794 = vst.msk [vmem:[#allocation2 + $0x8] sm:$0xc] %vm1280, %v1792
  %v1795 = vld [vmem:[%s15] sm:$0xff]
  %v1796 = vld [vmem:[%s15 + $0x8] sm:$0xff]
  %v1797 = vld [vmem:[%s15 + $0x10] sm:$0xff]
  %v1798 = vld [vmem:[%s15 + $0x18] sm:$0xff]
  %v1799 = vld [vmem:[%s15 + $0x20] sm:$0xff]
  %v1800 = vld [vmem:[%s15 + $0x28] sm:$0xff]
  %v1801 = vld [vmem:[%s15 + $0x30] sm:$0xff]
  %v1802 = vld [vmem:[%s15 + $0x38] sm:$0xff]
  %v1803 = vld [vmem:[%s15 + $0x40] sm:$0xff]
  %v1804 = vld [vmem:[%s15 + $0x48] sm:$0xff]
  %v1805 = vld [vmem:[%s15 + $0x50] sm:$0xff]
  %v1806 = vld [vmem:[%s15 + $0x58] sm:$0xff]
  %v1807 = vld [vmem:[%s15 + $0x60] sm:$0xff]
  %v1808 = vld [vmem:[%s15 + $0x68] sm:$0xff]
  %v1809 = vld [vmem:[%s15 + $0x70] sm:$0xff]
  %v1810 = vld [vmem:[%s15 + $0x78] sm:$0xff]
  %v1811 = vrot.slane %v1789, 2
  %1812 = vrot.lane.b32.xlu0 %v1811, 64
  %v1813 = vpop.permute.xlu0 %1812
  %v1814 = vsel %vm1049, %v1813, 0
  %1816 = vmatprep.subr.mxu0 %v1796
  %1817 = vmatpush1.msra.mxu0 %v1795
  %1818 = vmatprep.subr.mxu0 %v1798
  %1819 = vmatpush1.msra.mxu0 %v1797
  %1820 = vmatprep.subr.mxu0 %v1800
  %1821 = vmatpush1.msra.mxu0 %v1799
  %1822 = vmatprep.subr.mxu0 %v1802
  %1823 = vmatpush1.msra.mxu0 %v1801
  %1824 = vmatprep.subr.mxu0 %v1804
  %1825 = vmatpush1.msra.mxu0 %v1803
  %1826 = vmatprep.subr.mxu0 %v1806
  %1827 = vmatpush1.msra.mxu0 %v1805
  %1828 = vmatprep.subr.mxu0 %v1808
  %1829 = vmatpush1.msra.mxu0 %v1807
  %1830 = vmatprep.subr.mxu0 %v1810
  %1831 = vmatpush1.msra.mxu0 %v1809
  %1832 = vmatprep.subr.mxu0 0.0
  %1833 = vmatpush1.msra.mxu0 0.0
  %1834 = vmatprep.subr.mxu0 0.0
  %1835 = vmatpush1.msra.mxu0 0.0
  %1836 = vmatprep.subr.mxu0 0.0
  %1837 = vmatpush1.msra.mxu0 0.0
  %1838 = vmatprep.subr.mxu0 0.0
  %1839 = vmatpush1.msra.mxu0 0.0
  %1840 = vmatprep.subr.mxu0 0.0
  %1841 = vmatpush1.msra.mxu0 0.0
  %1842 = vmatprep.subr.mxu0 0.0
  %1843 = vmatpush1.msra.mxu0 0.0
  %1844 = vmatprep.subr.mxu0 0.0
  %1845 = vmatpush1.msra.mxu0 0.0
  %1846 = vmatprep.subr.mxu0 0.0
  %1847 = vmatpush1.msra.mxu0 0.0
  %1848 = vmatprep.subr.mxu0 0.0
  %1849 = vmatpush1.msra.mxu0 0.0
  %1850 = vmatprep.subr.mxu0 0.0
  %1851 = vmatpush1.msra.mxu0 0.0
  %1852 = vmatprep.subr.mxu0 0.0
  %1853 = vmatpush1.msra.mxu0 0.0
  %1854 = vmatprep.subr.mxu0 0.0
  %1855 = vmatpush1.msra.mxu0 0.0
  %1856 = vmatprep.subr.mxu0 0.0
  %1857 = vmatpush1.msra.mxu0 0.0
  %1858 = vmatprep.subr.mxu0 0.0
  %1859 = vmatpush1.msra.mxu0 0.0
  %1860 = vmatprep.subr.mxu0 0.0
  %1861 = vmatpush1.msra.mxu0 0.0
  %1862 = vmatprep.subr.mxu0 0.0
  %1863 = vmatpush1.msra.mxu0 0.0
  %1864 = vmatprep.subr.mxu0 0.0
  %1865 = vmatpush1.msra.mxu0 0.0
  %1866 = vmatprep.subr.mxu0 0.0
  %1867 = vmatpush1.msra.mxu0 0.0
  %1868 = vmatprep.subr.mxu0 0.0
  %1869 = vmatpush1.msra.mxu0 0.0
  %1870 = vmatprep.subr.mxu0 0.0
  %1871 = vmatpush1.msra.mxu0 0.0
  %1872 = vmatprep.subr.mxu0 0.0
  %1873 = vmatpush1.msra.mxu0 0.0
  %1874 = vmatprep.subr.mxu0 0.0
  %1875 = vmatpush1.msra.mxu0 0.0
  %1876 = vmatprep.subr.mxu0 0.0
  %1877 = vmatpush1.msra.mxu0 0.0
  %1878 = vmatprep.subr.mxu0 0.0
  %1879 = vmatpush1.msra.mxu0 0.0
  %1880 = vmatprep.mubr.f32.mxu0 0.0
  %1881 = vmatmul.mubr.f32.gmra.mrb[0].mxu0 %v1814
  %v1882 = vpop.f32.mrb[0].mxu0
  %v1883 = vadd.f32 0.0, %v1882
  %v1884 = vpop.f32.mrb[0].mxu0
  %v1885 = vadd.f32 0.0, %v1884
  %1886 = vdwg.mxu0
  %v1889 = vrot.slane %v1883, 4
  %v1890 = vrot.slane %v1885, 4
  %v1893 = vadd.f32 %v1029, %v1889
  %v1894 = vadd.f32 %v1031, %v1890
  %v1895 = vsub.f32 0.0, %v1893
  %v1896 = vmul.f32 %v1895, 1.442695
  %v1897 = vpow.pop %v1896
  %v1898 = vadd.f32 %v1897, 1.0
  %v1899 = vrcp.pop %v1898
  %v1900 = vmul.f32 1.0, %v1899
  %v1901 = vtanh.pop %v1894
  %v1902 = vsub.f32 0.0, %v1894
  %v1903 = vmul.f32 %v1902, 1.442695
  %v1904 = vpow.pop %v1903
  %v1905 = vadd.f32 %v1904, 1.0
  %v1906 = vrcp.pop %v1905
  %v1907 = vmul.f32 1.0, %v1906
  %v1909 = vrot.slane %v1787, 6
  %v1911 = vmul.f32 %v1900, %v1909
  %v1912 = vmul.f32 %v1900, %v1901
  %1914 = vrot.lane.b32.xlu0 %v1912, 64
  %v1915 = vpop.permute.xlu0 %1914
  %v1917 = vadd.f32 %v1911, %v1915
  %v1918 = vtanh.pop %v1917
  %v1919 = vmul.f32 %v1907, %v1918
  %1921 = vrot.lane.b32.xlu0 %v1919, 64
  %v1922 = vpop.permute.xlu0 %1921
  %1924 = vst.msk [vmem:[#allocation2 + $0x8] sm:$0x30] %vm1411, %v1922
  %v1925 = vld [vmem:[%s15] sm:$0xff]
  %v1926 = vld [vmem:[%s15 + $0x8] sm:$0xff]
  %v1927 = vld [vmem:[%s15 + $0x10] sm:$0xff]
  %v1928 = vld [vmem:[%s15 + $0x18] sm:$0xff]
  %v1929 = vld [vmem:[%s15 + $0x20] sm:$0xff]
  %v1930 = vld [vmem:[%s15 + $0x28] sm:$0xff]
  %v1931 = vld [vmem:[%s15 + $0x30] sm:$0xff]
  %v1932 = vld [vmem:[%s15 + $0x38] sm:$0xff]
  %v1933 = vld [vmem:[%s15 + $0x40] sm:$0xff]
  %v1934 = vld [vmem:[%s15 + $0x48] sm:$0xff]
  %v1935 = vld [vmem:[%s15 + $0x50] sm:$0xff]
  %v1936 = vld [vmem:[%s15 + $0x58] sm:$0xff]
  %v1937 = vld [vmem:[%s15 + $0x60] sm:$0xff]
  %v1938 = vld [vmem:[%s15 + $0x68] sm:$0xff]
  %v1939 = vld [vmem:[%s15 + $0x70] sm:$0xff]
  %v1940 = vld [vmem:[%s15 + $0x78] sm:$0xff]
  %v1941 = vrot.slane %v1919, 4
  %1942 = vrot.lane.b32.xlu0 %v1941, 64
  %v1943 = vpop.permute.xlu0 %1942
  %v1944 = vsel %vm1049, %v1943, 0
  %1946 = vmatprep.subr.mxu0 %v1926
  %1947 = vmatpush1.msra.mxu0 %v1925
  %1948 = vmatprep.subr.mxu0 %v1928
  %1949 = vmatpush1.msra.mxu0 %v1927
  %1950 = vmatprep.subr.mxu0 %v1930
  %1951 = vmatpush1.msra.mxu0 %v1929
  %1952 = vmatprep.subr.mxu0 %v1932
  %1953 = vmatpush1.msra.mxu0 %v1931
  %1954 = vmatprep.subr.mxu0 %v1934
  %1955 = vmatpush1.msra.mxu0 %v1933
  %1956 = vmatprep.subr.mxu0 %v1936
  %1957 = vmatpush1.msra.mxu0 %v1935
  %1958 = vmatprep.subr.mxu0 %v1938
  %1959 = vmatpush1.msra.mxu0 %v1937
  %1960 = vmatprep.subr.mxu0 %v1940
  %1961 = vmatpush1.msra.mxu0 %v1939
  %1962 = vmatprep.subr.mxu0 0.0
  %1963 = vmatpush1.msra.mxu0 0.0
  %1964 = vmatprep.subr.mxu0 0.0
  %1965 = vmatpush1.msra.mxu0 0.0
  %1966 = vmatprep.subr.mxu0 0.0
  %1967 = vmatpush1.msra.mxu0 0.0
  %1968 = vmatprep.subr.mxu0 0.0
  %1969 = vmatpush1.msra.mxu0 0.0
  %1970 = vmatprep.subr.mxu0 0.0
  %1971 = vmatpush1.msra.mxu0 0.0
  %1972 = vmatprep.subr.mxu0 0.0
  %1973 = vmatpush1.msra.mxu0 0.0
  %1974 = vmatprep.subr.mxu0 0.0
  %1975 = vmatpush1.msra.mxu0 0.0
  %1976 = vmatprep.subr.mxu0 0.0
  %1977 = vmatpush1.msra.mxu0 0.0
  %1978 = vmatprep.subr.mxu0 0.0
  %1979 = vmatpush1.msra.mxu0 0.0
  %1980 = vmatprep.subr.mxu0 0.0
  %1981 = vmatpush1.msra.mxu0 0.0
  %1982 = vmatprep.subr.mxu0 0.0
  %1983 = vmatpush1.msra.mxu0 0.0
  %1984 = vmatprep.subr.mxu0 0.0
  %1985 = vmatpush1.msra.mxu0 0.0
  %1986 = vmatprep.subr.mxu0 0.0
  %1987 = vmatpush1.msra.mxu0 0.0
  %1988 = vmatprep.subr.mxu0 0.0
  %1989 = vmatpush1.msra.mxu0 0.0
  %1990 = vmatprep.subr.mxu0 0.0
  %1991 = vmatpush1.msra.mxu0 0.0
  %1992 = vmatprep.subr.mxu0 0.0
  %1993 = vmatpush1.msra.mxu0 0.0
  %1994 = vmatprep.subr.mxu0 0.0
  %1995 = vmatpush1.msra.mxu0 0.0
  %1996 = vmatprep.subr.mxu0 0.0
  %1997 = vmatpush1.msra.mxu0 0.0
  %1998 = vmatprep.subr.mxu0 0.0
  %1999 = vmatpush1.msra.mxu0 0.0
  %2000 = vmatprep.subr.mxu0 0.0
  %2001 = vmatpush1.msra.mxu0 0.0
  %2002 = vmatprep.subr.mxu0 0.0
  %2003 = vmatpush1.msra.mxu0 0.0
  %2004 = vmatprep.subr.mxu0 0.0
  %2005 = vmatpush1.msra.mxu0 0.0
  %2006 = vmatprep.subr.mxu0 0.0
  %2007 = vmatpush1.msra.mxu0 0.0
  %2008 = vmatprep.subr.mxu0 0.0
  %2009 = vmatpush1.msra.mxu0 0.0
  %2010 = vmatprep.mubr.f32.mxu0 0.0
  %2011 = vmatmul.mubr.f32.gmra.mrb[0].mxu0 %v1944
  %v2012 = vpop.f32.mrb[0].mxu0
  %v2013 = vadd.f32 0.0, %v2012
  %v2014 = vpop.f32.mrb[0].mxu0
  %v2015 = vadd.f32 0.0, %v2014
  %2016 = vdwg.mxu0
  %v2019 = vrot.slane %v2013, 2
  %v2020 = vrot.slane %v2015, 2
  %v2023 = vadd.f32 %v1029, %v2019
  %v2024 = vadd.f32 %v1031, %v2020
  %v2025 = vsub.f32 0.0, %v2023
  %v2026 = vmul.f32 %v2025, 1.442695
  %v2027 = vpow.pop %v2026
  %v2028 = vadd.f32 %v2027, 1.0
  %v2029 = vrcp.pop %v2028
  %v2030 = vmul.f32 1.0, %v2029
  %v2031 = vtanh.pop %v2024
  %v2032 = vsub.f32 0.0, %v2024
  %v2033 = vmul.f32 %v2032, 1.442695
  %v2034 = vpow.pop %v2033
  %v2035 = vadd.f32 %v2034, 1.0
  %v2036 = vrcp.pop %v2035
  %v2037 = vmul.f32 1.0, %v2036
  %v2039 = vrot.slane %v1917, 6
  %v2041 = vmul.f32 %v2030, %v2039
  %v2042 = vmul.f32 %v2030, %v2031
  %2044 = vrot.lane.b32.xlu0 %v2042, 64
  %v2045 = vpop.permute.xlu0 %2044
  %v2047 = vadd.f32 %v2041, %v2045
  %v2048 = vtanh.pop %v2047
  %v2049 = vmul.f32 %v2037, %v2048
  %2051 = vrot.lane.b32.xlu0 %v2049, 64
  %v2052 = vpop.permute.xlu0 %2051
  %2054 = vst.msk [vmem:[#allocation2 + $0x8] sm:$0xc0] %vm1542, %v2052
  %v2055 = vld [vmem:[#allocation2] sm:$0xff]
  %v2056 = vld [vmem:[#allocation2 + $0x8] sm:$0xff]
  %v2057 = vld [vmem:[%s17] sm:$0xff]
  %v2058 = vld [vmem:[%s17 + $0x8] sm:$0xff]
  %v2059 = vld [vmem:[%s17 + $0x10] sm:$0xff]
  %v2060 = vld [vmem:[%s17 + $0x18] sm:$0xff]
  %v2061 = vld [vmem:[%s17 + $0x20] sm:$0xff]
  %v2062 = vld [vmem:[%s17 + $0x28] sm:$0xff]
  %v2063 = vld [vmem:[%s17 + $0x30] sm:$0xff]
  %v2064 = vld [vmem:[%s17 + $0x38] sm:$0xff]
  %v2065 = vld [vmem:[%s18] sm:$0x1]
  %v2067 = vlaneseq
  %v2068 = vshrl.u32 %v2067, 7
  %v2069 = vsub.s32 0, %v2068
  %v2070 = vrot.slane %v2065, %v2069
  %v2073 = vsel %vm1049, %v2055, 0
  %v2076 = vsel %vm1049, %v2056, 0
  %2078 = vmatprep.subr.mxu0 0.0
  %2079 = vmatpush1.msra.mxu0 %v2057
  %2080 = vmatprep.subr.mxu0 0.0
  %2081 = vmatpush1.msra.mxu0 %v2058
  %2082 = vmatprep.subr.mxu0 0.0
  %2083 = vmatpush1.msra.mxu0 %v2059
  %2084 = vmatprep.subr.mxu0 0.0
  %2085 = vmatpush1.msra.mxu0 %v2060
  %2086 = vmatprep.subr.mxu0 0.0
  %2087 = vmatpush1.msra.mxu0 %v2061
  %2088 = vmatprep.subr.mxu0 0.0
  %2089 = vmatpush1.msra.mxu0 %v2062
  %2090 = vmatprep.subr.mxu0 0.0
  %2091 = vmatpush1.msra.mxu0 %v2063
  %2092 = vmatprep.subr.mxu0 0.0
  %2093 = vmatpush1.msra.mxu0 %v2064
  %2094 = vmatprep.subr.mxu0 0.0
  %2095 = vmatpush1.msra.mxu0 0.0
  %2096 = vmatprep.subr.mxu0 0.0
  %2097 = vmatpush1.msra.mxu0 0.0
  %2098 = vmatprep.subr.mxu0 0.0
  %2099 = vmatpush1.msra.mxu0 0.0
  %2100 = vmatprep.subr.mxu0 0.0
  %2101 = vmatpush1.msra.mxu0 0.0
  %2102 = vmatprep.subr.mxu0 0.0
  %2103 = vmatpush1.msra.mxu0 0.0
  %2104 = vmatprep.subr.mxu0 0.0
  %2105 = vmatpush1.msra.mxu0 0.0
  %2106 = vmatprep.subr.mxu0 0.0
  %2107 = vmatpush1.msra.mxu0 0.0
  %2108 = vmatprep.subr.mxu0 0.0
  %2109 = vmatpush1.msra.mxu0 0.0
  %2110 = vmatprep.subr.mxu0 0.0
  %2111 = vmatpush1.msra.mxu0 0.0
  %2112 = vmatprep.subr.mxu0 0.0
  %2113 = vmatpush1.msra.mxu0 0.0
  %2114 = vmatprep.subr.mxu0 0.0
  %2115 = vmatpush1.msra.mxu0 0.0
  %2116 = vmatprep.subr.mxu0 0.0
  %2117 = vmatpush1.msra.mxu0 0.0
  %2118 = vmatprep.subr.mxu0 0.0
  %2119 = vmatpush1.msra.mxu0 0.0
  %2120 = vmatprep.subr.mxu0 0.0
  %2121 = vmatpush1.msra.mxu0 0.0
  %2122 = vmatprep.subr.mxu0 0.0
  %2123 = vmatpush1.msra.mxu0 0.0
  %2124 = vmatprep.subr.mxu0 0.0
  %2125 = vmatpush1.msra.mxu0 0.0
  %2126 = vmatprep.subr.mxu0 0.0
  %2127 = vmatpush1.msra.mxu0 0.0
  %2128 = vmatprep.subr.mxu0 0.0
  %2129 = vmatpush1.msra.mxu0 0.0
  %2130 = vmatprep.subr.mxu0 0.0
  %2131 = vmatpush1.msra.mxu0 0.0
  %2132 = vmatprep.subr.mxu0 0.0
  %2133 = vmatpush1.msra.mxu0 0.0
  %2134 = vmatprep.subr.mxu0 0.0
  %2135 = vmatpush1.msra.mxu0 0.0
  %2136 = vmatprep.subr.mxu0 0.0
  %2137 = vmatpush1.msra.mxu0 0.0
  %2138 = vmatprep.subr.mxu0 0.0
  %2139 = vmatpush1.msra.mxu0 0.0
  %2140 = vmatprep.subr.mxu0 0.0
  %2141 = vmatpush1.msra.mxu0 0.0
  %2142 = vmatprep.mubr.f32.mxu0 0.0
  %2143 = vmatmul.mubr.f32.gmra.mrb[0].mxu0 %v2073
  %v2144 = vpop.f32.mrb[0].mxu0
  %v2145 = vadd.f32 %v2070, %v2144
  %v2146 = vpop.f32.mrb[0].mxu0
  %2147 = vmatprep.mubr.f32.mxu0 0.0
  %2148 = vmatmul.mubr.f32.gmra.mrb[0].mxu0 %v2076
  %v2149 = vpop.f32.mrb[0].mxu0
  %v2150 = vadd.f32 %v2070, %v2149
  %v2151 = vpop.f32.mrb[0].mxu0
  %2152 = vdwg.mxu0
  %v2153 = vmax.f32 %v2145, 0.0
  %v2154 = vmax.f32 %v2150, 0.0
  %v2155 = vld [vmem:[%s19] sm:$0xff]
  %v2156 = vld [vmem:[%s19 + $0x8] sm:$0xff]
  %v2157 = vld [vmem:[%s19 + $0x10] sm:$0xff]
  %v2158 = vld [vmem:[%s19 + $0x18] sm:$0xff]
  %v2159 = vld [vmem:[#allocation3] sm:$0x1]
  %v2161 = vlaneseq
  %v2162 = vshrl.u32 %v2161, 7
  %v2163 = vsub.s32 0, %v2162
  %v2164 = vrot.slane %v2159, %v2163
  %vm2166 = vcmask 261120
  %v2168 = vsel %vm2166, %v2153, 0
  %v2171 = vsel %vm2166, %v2154, 0
  %2173 = vmatprep.subr.mxu0 0.0
  %2174 = vmatpush1.msra.mxu0 %v2155
  %2175 = vmatprep.subr.mxu0 0.0
  %2176 = vmatpush1.msra.mxu0 %v2156
  %2177 = vmatprep.subr.mxu0 0.0
  %2178 = vmatpush1.msra.mxu0 %v2157
  %2179 = vmatprep.subr.mxu0 0.0
  %2180 = vmatpush1.msra.mxu0 %v2158
  %2181 = vmatprep.subr.mxu0 0.0
  %2182 = vmatpush1.msra.mxu0 0.0
  %2183 = vmatprep.subr.mxu0 0.0
  %2184 = vmatpush1.msra.mxu0 0.0
  %2185 = vmatprep.subr.mxu0 0.0
  %2186 = vmatpush1.msra.mxu0 0.0
  %2187 = vmatprep.subr.mxu0 0.0
  %2188 = vmatpush1.msra.mxu0 0.0
  %2189 = vmatprep.subr.mxu0 0.0
  %2190 = vmatpush1.msra.mxu0 0.0
  %2191 = vmatprep.subr.mxu0 0.0
  %2192 = vmatpush1.msra.mxu0 0.0
  %2193 = vmatprep.subr.mxu0 0.0
  %2194 = vmatpush1.msra.mxu0 0.0
  %2195 = vmatprep.subr.mxu0 0.0
  %2196 = vmatpush1.msra.mxu0 0.0
  %2197 = vmatprep.subr.mxu0 0.0
  %2198 = vmatpush1.msra.mxu0 0.0
  %2199 = vmatprep.subr.mxu0 0.0
  %2200 = vmatpush1.msra.mxu0 0.0
  %2201 = vmatprep.subr.mxu0 0.0
  %2202 = vmatpush1.msra.mxu0 0.0
  %2203 = vmatprep.subr.mxu0 0.0
  %2204 = vmatpush1.msra.mxu0 0.0
  %2205 = vmatprep.subr.mxu0 0.0
  %2206 = vmatpush1.msra.mxu0 0.0
  %2207 = vmatprep.subr.mxu0 0.0
  %2208 = vmatpush1.msra.mxu0 0.0
  %2209 = vmatprep.subr.mxu0 0.0
  %2210 = vmatpush1.msra.mxu0 0.0
  %2211 = vmatprep.subr.mxu0 0.0
  %2212 = vmatpush1.msra.mxu0 0.0
  %2213 = vmatprep.subr.mxu0 0.0
  %2214 = vmatpush1.msra.mxu0 0.0
  %2215 = vmatprep.subr.mxu0 0.0
  %2216 = vmatpush1.msra.mxu0 0.0
  %2217 = vmatprep.subr.mxu0 0.0
  %2218 = vmatpush1.msra.mxu0 0.0
  %2219 = vmatprep.subr.mxu0 0.0
  %2220 = vmatpush1.msra.mxu0 0.0
  %2221 = vmatprep.subr.mxu0 0.0
  %2222 = vmatpush1.msra.mxu0 0.0
  %2223 = vmatprep.subr.mxu0 0.0
  %2224 = vmatpush1.msra.mxu0 0.0
  %2225 = vmatprep.subr.mxu0 0.0
  %2226 = vmatpush1.msra.mxu0 0.0
  %2227 = vmatprep.subr.mxu0 0.0
  %2228 = vmatpush1.msra.mxu0 0.0
  %2229 = vmatprep.subr.mxu0 0.0
  %2230 = vmatpush1.msra.mxu0 0.0
  %2231 = vmatprep.subr.mxu0 0.0
  %2232 = vmatpush1.msra.mxu0 0.0
  %2233 = vmatprep.subr.mxu0 0.0
  %2234 = vmatpush1.msra.mxu0 0.0
  %2235 = vmatprep.subr.mxu0 0.0
  %2236 = vmatpush1.msra.mxu0 0.0
  %2237 = vmatprep.mubr.f32.mxu0 0.0
  %2238 = vmatmul.mubr.f32.gmra.mrb[0].mxu0 %v2168
  %v2239 = vpop.f32.mrb[0].mxu0
  %v2240 = vadd.f32 %v2164, %v2239
  %v2241 = vpop.f32.mrb[0].mxu0
  %2242 = vmatprep.mubr.f32.mxu0 0.0
  %2243 = vmatmul.mubr.f32.gmra.mrb[0].mxu0 %v2171
  %v2244 = vpop.f32.mrb[0].mxu0
  %v2245 = vadd.f32 %v2164, %v2244
  %v2246 = vpop.f32.mrb[0].mxu0
  %2247 = vdwg.mxu0
  %v2248 = vld [vmem:[%s21] sm:$0xff]
  %v2249 = vld [vmem:[%s21 + $0x8] sm:$0xff]
  %v2250 = vld [vmem:[%s21 + $0x10] sm:$0xff]
  %v2251 = vld [vmem:[%s21 + $0x18] sm:$0xff]
  %v2252 = vld [vmem:[%s21 + $0x20] sm:$0xff]
  %v2253 = vld [vmem:[%s21 + $0x28] sm:$0xff]
  %v2254 = vld [vmem:[%s21 + $0x30] sm:$0xff]
  %v2255 = vld [vmem:[%s21 + $0x38] sm:$0xff]
  %v2256 = vld [vmem:[%s22] sm:$0x1]
  %v2258 = vlaneseq
  %v2259 = vshrl.u32 %v2258, 7
  %v2260 = vsub.s32 0, %v2259
  %v2261 = vrot.slane %v2256, %v2260
  %2263 = vmatprep.subr.mxu0 0.0
  %2264 = vmatpush1.msra.mxu0 %v2248
  %2265 = vmatprep.subr.mxu0 0.0
  %2266 = vmatpush1.msra.mxu0 %v2249
  %2267 = vmatprep.subr.mxu0 0.0
  %2268 = vmatpush1.msra.mxu0 %v2250
  %2269 = vmatprep.subr.mxu0 0.0
  %2270 = vmatpush1.msra.mxu0 %v2251
  %2271 = vmatprep.subr.mxu0 0.0
  %2272 = vmatpush1.msra.mxu0 %v2252
  %2273 = vmatprep.subr.mxu0 0.0
  %2274 = vmatpush1.msra.mxu0 %v2253
  %2275 = vmatprep.subr.mxu0 0.0
  %2276 = vmatpush1.msra.mxu0 %v2254
  %2277 = vmatprep.subr.mxu0 0.0
  %2278 = vmatpush1.msra.mxu0 %v2255
  %2279 = vmatprep.subr.mxu0 0.0
  %2280 = vmatpush1.msra.mxu0 0.0
  %2281 = vmatprep.subr.mxu0 0.0
  %2282 = vmatpush1.msra.mxu0 0.0
  %2283 = vmatprep.subr.mxu0 0.0
  %2284 = vmatpush1.msra.mxu0 0.0
  %2285 = vmatprep.subr.mxu0 0.0
  %2286 = vmatpush1.msra.mxu0 0.0
  %2287 = vmatprep.subr.mxu0 0.0
  %2288 = vmatpush1.msra.mxu0 0.0
  %2289 = vmatprep.subr.mxu0 0.0
  %2290 = vmatpush1.msra.mxu0 0.0
  %2291 = vmatprep.subr.mxu0 0.0
  %2292 = vmatpush1.msra.mxu0 0.0
  %2293 = vmatprep.subr.mxu0 0.0
  %2294 = vmatpush1.msra.mxu0 0.0
  %2295 = vmatprep.subr.mxu0 0.0
  %2296 = vmatpush1.msra.mxu0 0.0
  %2297 = vmatprep.subr.mxu0 0.0
  %2298 = vmatpush1.msra.mxu0 0.0
  %2299 = vmatprep.subr.mxu0 0.0
  %2300 = vmatpush1.msra.mxu0 0.0
  %2301 = vmatprep.subr.mxu0 0.0
  %2302 = vmatpush1.msra.mxu0 0.0
  %2303 = vmatprep.subr.mxu0 0.0
  %2304 = vmatpush1.msra.mxu0 0.0
  %2305 = vmatprep.subr.mxu0 0.0
  %2306 = vmatpush1.msra.mxu0 0.0
  %2307 = vmatprep.subr.mxu0 0.0
  %2308 = vmatpush1.msra.mxu0 0.0
  %2309 = vmatprep.subr.mxu0 0.0
  %2310 = vmatpush1.msra.mxu0 0.0
  %2311 = vmatprep.subr.mxu0 0.0
  %2312 = vmatpush1.msra.mxu0 0.0
  %2313 = vmatprep.subr.mxu0 0.0
  %2314 = vmatpush1.msra.mxu0 0.0
  %2315 = vmatprep.subr.mxu0 0.0
  %2316 = vmatpush1.msra.mxu0 0.0
  %2317 = vmatprep.subr.mxu0 0.0
  %2318 = vmatpush1.msra.mxu0 0.0
  %2319 = vmatprep.subr.mxu0 0.0
  %2320 = vmatpush1.msra.mxu0 0.0
  %2321 = vmatprep.subr.mxu0 0.0
  %2322 = vmatpush1.msra.mxu0 0.0
  %2323 = vmatprep.subr.mxu0 0.0
  %2324 = vmatpush1.msra.mxu0 0.0
  %2325 = vmatprep.subr.mxu0 0.0
  %2326 = vmatpush1.msra.mxu0 0.0
  %2327 = vmatprep.mubr.f32.mxu0 0.0
  %2328 = vmatmul.mubr.f32.gmra.mrb[0].mxu0 %v2073
  %v2329 = vpop.f32.mrb[0].mxu0
  %v2330 = vadd.f32 %v2261, %v2329
  %v2331 = vpop.f32.mrb[0].mxu0
  %2332 = vmatprep.mubr.f32.mxu0 0.0
  %2333 = vmatmul.mubr.f32.gmra.mrb[0].mxu0 %v2076
  %v2334 = vpop.f32.mrb[0].mxu0
  %v2335 = vadd.f32 %v2261, %v2334
  %v2336 = vpop.f32.mrb[0].mxu0
  %2337 = vdwg.mxu0
  %v2338 = vmax.f32 %v2330, 0.0
  %v2339 = vmax.f32 %v2335, 0.0
  %v2340 = vld [vmem:[%s23] sm:$0xff]
  %v2341 = vld [vmem:[%s23 + $0x8] sm:$0xff]
  %v2342 = vld [vmem:[%s23 + $0x10] sm:$0xff]
  %v2343 = vld [vmem:[%s23 + $0x18] sm:$0xff]
  %v2344 = vld [vmem:[%s24] sm:$0x1]
  %v2346 = vlaneseq
  %v2347 = vshrl.u32 %v2346, 7
  %v2348 = vsub.s32 0, %v2347
  %v2349 = vrot.slane %v2344, %v2348
  %v2352 = vsel %vm2166, %v2338, 0
  %v2355 = vsel %vm2166, %v2339, 0
  %2357 = vmatprep.subr.mxu0 0.0
  %2358 = vmatpush1.msra.mxu0 %v2340
  %2359 = vmatprep.subr.mxu0 0.0
  %2360 = vmatpush1.msra.mxu0 %v2341
  %2361 = vmatprep.subr.mxu0 0.0
  %2362 = vmatpush1.msra.mxu0 %v2342
  %2363 = vmatprep.subr.mxu0 0.0
  %2364 = vmatpush1.msra.mxu0 %v2343
  %2365 = vmatprep.subr.mxu0 0.0
  %2366 = vmatpush1.msra.mxu0 0.0
  %2367 = vmatprep.subr.mxu0 0.0
  %2368 = vmatpush1.msra.mxu0 0.0
  %2369 = vmatprep.subr.mxu0 0.0
  %2370 = vmatpush1.msra.mxu0 0.0
  %2371 = vmatprep.subr.mxu0 0.0
  %2372 = vmatpush1.msra.mxu0 0.0
  %2373 = vmatprep.subr.mxu0 0.0
  %2374 = vmatpush1.msra.mxu0 0.0
  %2375 = vmatprep.subr.mxu0 0.0
  %2376 = vmatpush1.msra.mxu0 0.0
  %2377 = vmatprep.subr.mxu0 0.0
  %2378 = vmatpush1.msra.mxu0 0.0
  %2379 = vmatprep.subr.mxu0 0.0
  %2380 = vmatpush1.msra.mxu0 0.0
  %2381 = vmatprep.subr.mxu0 0.0
  %2382 = vmatpush1.msra.mxu0 0.0
  %2383 = vmatprep.subr.mxu0 0.0
  %2384 = vmatpush1.msra.mxu0 0.0
  %2385 = vmatprep.subr.mxu0 0.0
  %2386 = vmatpush1.msra.mxu0 0.0
  %2387 = vmatprep.subr.mxu0 0.0
  %2388 = vmatpush1.msra.mxu0 0.0
  %2389 = vmatprep.subr.mxu0 0.0
  %2390 = vmatpush1.msra.mxu0 0.0
  %2391 = vmatprep.subr.mxu0 0.0
  %2392 = vmatpush1.msra.mxu0 0.0
  %2393 = vmatprep.subr.mxu0 0.0
  %2394 = vmatpush1.msra.mxu0 0.0
  %2395 = vmatprep.subr.mxu0 0.0
  %2396 = vmatpush1.msra.mxu0 0.0
  %2397 = vmatprep.subr.mxu0 0.0
  %2398 = vmatpush1.msra.mxu0 0.0
  %2399 = vmatprep.subr.mxu0 0.0
  %2400 = vmatpush1.msra.mxu0 0.0
  %2401 = vmatprep.subr.mxu0 0.0
  %2402 = vmatpush1.msra.mxu0 0.0
  %2403 = vmatprep.subr.mxu0 0.0
  %2404 = vmatpush1.msra.mxu0 0.0
  %2405 = vmatprep.subr.mxu0 0.0
  %2406 = vmatpush1.msra.mxu0 0.0
  %2407 = vmatprep.subr.mxu0 0.0
  %2408 = vmatpush1.msra.mxu0 0.0
  %2409 = vmatprep.subr.mxu0 0.0
  %2410 = vmatpush1.msra.mxu0 0.0
  %2411 = vmatprep.subr.mxu0 0.0
  %2412 = vmatpush1.msra.mxu0 0.0
  %2413 = vmatprep.subr.mxu0 0.0
  %2414 = vmatpush1.msra.mxu0 0.0
  %2415 = vmatprep.subr.mxu0 0.0
  %2416 = vmatpush1.msra.mxu0 0.0
  %2417 = vmatprep.subr.mxu0 0.0
  %2418 = vmatpush1.msra.mxu0 0.0
  %2419 = vmatprep.subr.mxu0 0.0
  %2420 = vmatpush1.msra.mxu0 0.0
  %2421 = vmatprep.mubr.f32.mxu0 0.0
  %2422 = vmatmul.mubr.f32.gmra.mrb[0].mxu0 %v2352
  %v2423 = vpop.f32.mrb[0].mxu0
  %v2424 = vadd.f32 %v2349, %v2423
  %v2425 = vpop.f32.mrb[0].mxu0
  %2426 = vmatprep.mubr.f32.mxu0 0.0
  %2427 = vmatmul.mubr.f32.gmra.mrb[0].mxu0 %v2355
  %v2428 = vpop.f32.mrb[0].mxu0
  %v2429 = vadd.f32 %v2349, %v2428
  %v2430 = vpop.f32.mrb[0].mxu0
  %2431 = vdwg.mxu0
  %v2432 = vlaneseq
  %v2433 = vand.u32 %v2432, 127
  %vm2434 = vcmp.eq.s32.totalorder %v2433, 2
  %v2435 = vtanh.pop %v2424
  %v2436 = vtanh.pop %v2429
  %v2437 = vmul.f32 %v2435, 3.1415927
  %v2438 = vmul.f32 %v2436, 3.1415927
  %v2439 = vsel %vm2434, %v2437, %v2424
  %v2440 = vsel %vm2434, %v2438, %v2429
  %vm2441 = vcmask 7168
  %2442 = vst.msk [vmem:[%s25] sm:$0xff] %vm2441, %v2240
  %2443 = vst.msk [vmem:[%s25 + $0x8] sm:$0xff] %vm2441, %v2245
  %vm2444 = vcmask 23552
  %2445 = vst.msk [vmem:[%s26] sm:$0xff] %vm2444, %v2439
  %2446 = vst.msk [vmem:[%s26 + $0x8] sm:$0xff] %vm2444, %v2440
  // Predicated region
  $region102: #{badgr_forward.3} parent=0 // pred_check
    _
  $region103: #{badgr_forward.3} parent=0 // pred_check_branch
    %2448 = sbr.rel (0) target = $region105
  $region104: #{badgr_forward.3} parent=0 // pred_region
    _
  $region105: #{badgr_forward.3} parent=0 // pred_fallthru
    _
  // Predicated region
  $region106: #{badgr_forward.3} parent=0 // pred_check
    _
  $region107: #{badgr_forward.3} parent=0 // pred_check_branch
    %2450 = sbr.rel (0) target = $region109
  $region108: #{badgr_forward.3} parent=0 // pred_region
    _
  $region109: #{badgr_forward.3} parent=0 // pred_fallthru
    _
  // Predicated region
  $region110: #{badgr_forward.3} parent=0 // pred_check
    _
  $region111: #{badgr_forward.3} parent=0 // pred_check_branch
    %2452 = sbr.rel (0) target = $region113
  $region112: #{badgr_forward.3} parent=0 // pred_region
    _
  $region113: #{badgr_forward.3} parent=0 // pred_fallthru
    _
  // Predicated region
  $region114: #{badgr_forward.3} parent=0 // pred_check
    _
  $region115: #{badgr_forward.3} parent=0 // pred_check_branch
    %2454 = sbr.rel (0) target = $region117
  $region116: #{badgr_forward.3} parent=0 // pred_region
    _
  $region117: #{badgr_forward.3} parent=0 // pred_fallthru
    _

</llo_original>
